<compile_context>
chip_gen: v5e
topology: v5e:2x2
jax: 0.10.0
libtpu: 0.0.40
codegen_flags: <defaults>
</compile_context>

<pallas_src>
import jax
import jax.numpy as jnp
from jax.experimental import pallas as pl
from jax.experimental.pallas import tpu as pltpu

LEAKY_SLOPE = 0.01            # nn.LeakyReLU default negative_slope
BN_EPS = 1e-5                 # nn.BatchNorm3d default eps
LANES = 128


def _vmem_limit_bytes():
    """3/4 of per-core VMEM (96 MiB on v5e/v6e, 48 MiB on v7x), capped at 100 MiB."""
    cap = 64 * 1024 * 1024
    try:
        cap = int(pltpu.get_tpu_info().vmem_capacity_bytes)
    except Exception:
        pass  # fall back to the v7x-safe 64 MiB assumption
    return min(cap * 3 // 4, 100 * 1024 * 1024)


def _pick_depth_tile(D, HW):
    """Smallest divisor Td of D whose M = Td*HW reaches >= 256 MXU rows (else D)."""
    td = D
    for cand in range(1, D + 1):
        if D % cand == 0:
            td = cand
            if cand * HW >= 256:
                break
    return td


# ------------------------------ JAX wrapper -------------------------------- #

def conv_block_3d(x_ncdhw, w_dhwio, bias, gamma, beta):
    """ConvBlock3D forward. x: (N, Cin, D, H, W) -> (N, Cout, D, H//2, W//2) f32."""
    del bias  # exactly cancelled by training-mode BatchNorm mean subtraction
    N, Cin, D, H, W = x_ncdhw.shape
    Cout = w_dhwio.shape[-1]
    assert H % 2 == 0 and W % 2 == 0, "MaxPool3d(1,2,2) expects even H, W here"
    # TODO(synk): odd H/W (floor pooling) and ragged shapes need masked handling.
    Ho, Wo = H // 2, W // 2
    HW, HWo = H * W, Ho * Wo
    Cp = ((Cout + LANES - 1) // LANES) * LANES   # lane-dense padded channel count
    K = 27 * Cin                                 # folded contraction depth
    Td = _pick_depth_tile(D, HW)                 # depth planes per grid step
    M = Td * HW                                  # MXU LHS rows per step
    n_dblk = D // Td
    vmem_limit = _vmem_limit_bytes()

    # ---- XLA glue: NCDHW -> NDHWC (bf16) + 1-voxel halo pad. No im2col. ----
    # TODO(synk): fusing the pad / transposes into kernel A would save one HBM
    # pass each if the surrounding model can keep activations channels-last.
    x = jnp.transpose(x_ncdhw, (0, 2, 3, 4, 1)).astype(jnp.bfloat16)
    xp = jnp.pad(x, ((0, 0), (1, 1), (1, 1), (1, 1), (0, 0)))  # (N, D+2, H+2, W+2, Cin)

    # Weights: (3,3,3,Cin,Cout) -> K-folded (27*Cin, Cp) bf16, zero-padded cols.
    w = jnp.pad(w_dhwio.astype(jnp.bfloat16).reshape(K, Cout), ((0, 0), (0, Cp - Cout)))

    # ----- kernel A: K-folded 3x3x3 conv (single MXU dot) + fused BN stats -----
    def conv_stats_kernel(x_ref, w_ref, y_ref, st_ref):
        d = pl.program_id(1)
        d0 = pl.multiple_of(d * Td, Td)
        xw = x_ref[0, pl.ds(d0, Td + 2)]              # (Td+2, H+2, W+2, Cin) bf16
        # Build the K-folded tap matrix once (VMEM-only im2col; K order matches
        # the (kd, kh, kw, Cin) weight reshape above).
        taps = []
        for kd in range(3):
            for kh in range(3):
                for kw in range(3):
                    taps.append(
                        xw[kd:kd + Td, kh:kh + H, kw:kw + W, :].reshape(M, Cin))
        lhs = jnp.concatenate(taps, axis=-1)          # (M, 27*Cin) bf16
        acc = jnp.dot(lhs, w_ref[...],                # single MXU dot, K = 27*Cin
                      preferred_element_type=jnp.float32)       # (M, Cp) f32
        y_ref[...] = acc.reshape(1, Td, HW, Cp).astype(y_ref.dtype)
        s1 = jnp.sum(acc, axis=0, keepdims=True)      # (1, Cp)
        s2 = jnp.sum(acc * acc, axis=0, keepdims=True)
        st_ref[...] = jnp.concatenate([s1, s2], axis=0).reshape(1, 1, 2, Cp)

    flops = 2 * N * D * HW * K * Cp
    bytes_accessed = (xp.size * 2 + w.size * 2
                      + N * D * HW * Cp * 2 + N * n_dblk * 2 * Cp * 4)
    conv_y, stats = pl.pallas_call(
        conv_stats_kernel,
        out_shape=(jax.ShapeDtypeStruct((N, D, HW, Cp), jnp.bfloat16),
                   jax.ShapeDtypeStruct((N, n_dblk, 2, Cp), jnp.float32)),
        grid=(N, n_dblk),
        in_specs=[
            # Full padded depth per batch element; the index map ignores d, so
            # the block stays VMEM-resident across depth tiles (fetched once).
            pl.BlockSpec((1, D + 2, H + 2, W + 2, Cin),
                         lambda n, d: (n, 0, 0, 0, 0)),
            pl.BlockSpec((K, Cp), lambda n, d: (0, 0)),
        ],
        out_specs=(pl.BlockSpec((1, Td, HW, Cp), lambda n, d: (n, d, 0, 0)),
                   pl.BlockSpec((1, 1, 2, Cp), lambda n, d: (n, d, 0, 0))),
        compiler_params=pltpu.CompilerParams(
            dimension_semantics=("parallel", "parallel"),
            vmem_limit_bytes=vmem_limit),
        cost_estimate=pl.CostEstimate(flops=flops, transcendentals=0,
                                      bytes_accessed=bytes_accessed),
    )(xp, w)

    # ---- tiny XLA reduction: per-(n, depth-tile) partials -> BN scale/shift ----
    cnt = jnp.float32(N * D * HW)
    ssum = jnp.sum(stats[:, :, 0, :], axis=(0, 1))
    ssq = jnp.sum(stats[:, :, 1, :], axis=(0, 1))
    mean = ssum / cnt
    var = jnp.maximum(ssq / cnt - mean * mean, 0.0)   # biased (training-mode) var
    gamma_p = jnp.pad(gamma.astype(jnp.float32), (0, Cp - Cout))
    beta_p = jnp.pad(beta.astype(jnp.float32), (0, Cp - Cout))
    scale_v = gamma_p * jax.lax.rsqrt(var + BN_EPS)
    shift_v = beta_p - mean * scale_v
    scale = scale_v.reshape(1, Cp)
    shift = shift_v.reshape(1, Cp)

    # --------- kernel B: BN affine + LeakyReLU + (1,2,2) max-pool --------------
    def bn_act_pool_kernel(y_ref, sc_ref, sh_ref, o_ref):
        y = y_ref[0].astype(jnp.float32)              # (Td, HW, Cp)
        y = y * sc_ref[...] + sh_ref[...]             # fused BN normalize+affine
        y = jnp.where(y >= 0.0, y, LEAKY_SLOPE * y)   # LeakyReLU(0.01)
        y = jnp.max(y.reshape(Td, H, Wo, 2, Cp), axis=3)    # pool over W pairs
        y = jnp.max(y.reshape(Td, Ho, 2, Wo, Cp), axis=2)   # pool over H pairs
        o_ref[...] = y.reshape(1, Td, HWo, Cp).astype(o_ref.dtype)

    pooled = pl.pallas_call(
        bn_act_pool_kernel,
        out_shape=jax.ShapeDtypeStruct((N, D, HWo, Cp), jnp.bfloat16),
        grid=(N, n_dblk),
        in_specs=[pl.BlockSpec((1, Td, HW, Cp), lambda n, d: (n, d, 0, 0)),
                  pl.BlockSpec((1, Cp), lambda n, d: (0, 0)),
                  pl.BlockSpec((1, Cp), lambda n, d: (0, 0))],
        out_specs=pl.BlockSpec((1, Td, HWo, Cp), lambda n, d: (n, d, 0, 0)),
        compiler_params=pltpu.CompilerParams(
            dimension_semantics=("parallel", "parallel"),
            vmem_limit_bytes=vmem_limit),
    )(conv_y, scale, shift)

    # ---- XLA glue: unpad channels, back to NCDHW, restore module f32 dtype ----
    out = pooled.reshape(N, D, Ho, Wo, Cp)[..., :Cout]
    return jnp.transpose(out, (0, 4, 1, 2, 3)).astype(jnp.float32)


# ------------------------- pure-JAX reference check ------------------------ #

def ref_forward(x_ncdhw, w_dhwio, bias, gamma, beta):
    w_oidhw = jnp.transpose(w_dhwio, (4, 3, 0, 1, 2))
    out = jax.lax.conv_general_dilated(
        x_ncdhw, w_oidhw, window_strides=(1, 1, 1),
        padding=((1, 1), (1, 1), (1, 1)),
        dimension_numbers=("NCDHW", "OIDHW", "NCDHW"),
        precision=jax.lax.Precision.HIGHEST)
    out = out + bias.reshape(1, -1, 1, 1, 1)
    mean = jnp.mean(out, axis=(0, 2, 3, 4), keepdims=True)
    var = jnp.mean((out - mean) ** 2, axis=(0, 2, 3, 4), keepdims=True)
    out = (out - mean) * jax.lax.rsqrt(var + BN_EPS)
    out = out * gamma.reshape(1, -1, 1, 1, 1) + beta.reshape(1, -1, 1, 1, 1)
    out = jnp.where(out >= 0, out, LEAKY_SLOPE * out)
    out = jax.lax.reduce_window(out, -jnp.inf, jax.lax.max,
                                (1, 1, 1, 2, 2), (1, 1, 1, 2, 2), "VALID")
    return out


# ---------------------------------- main ----------------------------------- #

if __name__ == "__main__":
    N, Cin, Cout, D, H, W = 2, 4, 8, 4, 8, 8

    key = jax.random.PRNGKey(0)
    kw_key, kb_key, kx_key = jax.random.split(key, 3)

    # Deterministic param init mirroring PyTorch defaults:
    # Conv3d: kaiming_uniform(a=sqrt(5)) -> U(-1/sqrt(fan_in), 1/sqrt(fan_in)); bias same bound.
    fan_in = Cin * 3 * 3 * 3
    bound = 1.0 / (fan_in ** 0.5)
    w = jax.random.uniform(kw_key, (3, 3, 3, Cin, Cout), jnp.float32, -bound, bound)
    b = jax.random.uniform(kb_key, (Cout,), jnp.float32, -bound, bound)
    # BatchNorm3d: weight=1, bias=0
    gamma = jnp.ones((Cout,), jnp.float32)
    beta = jnp.zeros((Cout,), jnp.float32)

    x = jax.random.normal(kx_key, (N, Cin, D, H, W), jnp.float32)

    out = jax.block_until_ready(conv_block_3d(x, w, b, gamma, beta))
    assert out.shape == (N, Cout, D, H // 2, W // 2)

    ref = ref_forward(x, w, b, gamma, beta)
    # bf16 MXU operands + bf16 intermediate/pooled activations vs. full-f32 reference.
    assert jnp.allclose(out, ref, atol=4e-2, rtol=4e-2), "mismatch vs reference"

    print("KERNEL_OK")
</pallas_src>

<mosaic_0001>
module attributes {stable_mosaic.version = 11 : i64} {
  func.func @conv_stats_kernel(%arg0: i32, %arg1: i32, %arg2: memref<1x6x10x10x4xbf16, #tpu.memory_space<vmem>>, %arg3: memref<108x128xbf16, #tpu.memory_space<vmem>>, %arg4: memref<1x4x64x128xbf16, #tpu.memory_space<vmem>>, %arg5: memref<1x1x2x128xf32, #tpu.memory_space<vmem>>) attributes {dimension_semantics = [#tpu.dimension_semantics<parallel>, #tpu.dimension_semantics<parallel>], iteration_bounds = array<i64: 2, 1>, scalar_prefetch = 0 : i64, scratch_operands = 0 : i64, tpu.core_type = #tpu.core_type<tc>, window_params = [{transform_indices = @transform_0, window_bounds = array<i64: 1, 6, 10, 10, 4>}, {pipeline_mode = #tpu.pipeline_mode<synchronous>, transform_indices = @transform_1, window_bounds = array<i64: 108, 128>}, {transform_indices = @transform_2, window_bounds = array<i64: 1, 4, 64, 128>}, {transform_indices = @transform_3, window_bounds = array<i64: 1, 1, 2, 128>}]} {
    %c4_i32 = arith.constant 4 : i32
    %0 = arith.muli %arg1, %c4_i32 : i32
    %1 = tpu.assume_multiple %0, 4 : i32
    %c0 = arith.constant 0 : index
    %2 = arith.index_cast %1 : i32 to index
    %c0_0 = arith.constant 0 : index
    %c0_1 = arith.constant 0 : index
    %c0_2 = arith.constant 0 : index
    %3 = vector.load %arg2[%c0, %2, %c0_0, %c0_1, %c0_2] : memref<1x6x10x10x4xbf16, #tpu.memory_space<vmem>>, vector<1x6x10x10x4xbf16>
    %4 = vector.shape_cast %3 : vector<1x6x10x10x4xbf16> to vector<6x10x10x4xbf16>
    %5 = vector.extract_strided_slice %4 {offsets = [0, 0, 0, 0], sizes = [4, 8, 8, 4], strides = [1, 1, 1, 1]} : vector<6x10x10x4xbf16> to vector<4x8x8x4xbf16>
    %6 = vector.shape_cast %5 : vector<4x8x8x4xbf16> to vector<256x4xbf16>
    %7 = vector.extract_strided_slice %4 {offsets = [0, 0, 1, 0], sizes = [4, 8, 8, 4], strides = [1, 1, 1, 1]} : vector<6x10x10x4xbf16> to vector<4x8x8x4xbf16>
    %8 = vector.shape_cast %7 : vector<4x8x8x4xbf16> to vector<256x4xbf16>
    %9 = vector.extract_strided_slice %4 {offsets = [0, 0, 2, 0], sizes = [4, 8, 8, 4], strides = [1, 1, 1, 1]} : vector<6x10x10x4xbf16> to vector<4x8x8x4xbf16>
    %10 = vector.shape_cast %9 : vector<4x8x8x4xbf16> to vector<256x4xbf16>
    %11 = vector.extract_strided_slice %4 {offsets = [0, 1, 0, 0], sizes = [4, 8, 8, 4], strides = [1, 1, 1, 1]} : vector<6x10x10x4xbf16> to vector<4x8x8x4xbf16>
    %12 = vector.shape_cast %11 : vector<4x8x8x4xbf16> to vector<256x4xbf16>
    %13 = vector.extract_strided_slice %4 {offsets = [0, 1, 1, 0], sizes = [4, 8, 8, 4], strides = [1, 1, 1, 1]} : vector<6x10x10x4xbf16> to vector<4x8x8x4xbf16>
    %14 = vector.shape_cast %13 : vector<4x8x8x4xbf16> to vector<256x4xbf16>
    %15 = vector.extract_strided_slice %4 {offsets = [0, 1, 2, 0], sizes = [4, 8, 8, 4], strides = [1, 1, 1, 1]} : vector<6x10x10x4xbf16> to vector<4x8x8x4xbf16>
    %16 = vector.shape_cast %15 : vector<4x8x8x4xbf16> to vector<256x4xbf16>
    %17 = vector.extract_strided_slice %4 {offsets = [0, 2, 0, 0], sizes = [4, 8, 8, 4], strides = [1, 1, 1, 1]} : vector<6x10x10x4xbf16> to vector<4x8x8x4xbf16>
    %18 = vector.shape_cast %17 : vector<4x8x8x4xbf16> to vector<256x4xbf16>
    %19 = vector.extract_strided_slice %4 {offsets = [0, 2, 1, 0], sizes = [4, 8, 8, 4], strides = [1, 1, 1, 1]} : vector<6x10x10x4xbf16> to vector<4x8x8x4xbf16>
    %20 = vector.shape_cast %19 : vector<4x8x8x4xbf16> to vector<256x4xbf16>
    %21 = vector.extract_strided_slice %4 {offsets = [0, 2, 2, 0], sizes = [4, 8, 8, 4], strides = [1, 1, 1, 1]} : vector<6x10x10x4xbf16> to vector<4x8x8x4xbf16>
    %22 = vector.shape_cast %21 : vector<4x8x8x4xbf16> to vector<256x4xbf16>
    %23 = vector.extract_strided_slice %4 {offsets = [1, 0, 0, 0], sizes = [4, 8, 8, 4], strides = [1, 1, 1, 1]} : vector<6x10x10x4xbf16> to vector<4x8x8x4xbf16>
    %24 = vector.shape_cast %23 : vector<4x8x8x4xbf16> to vector<256x4xbf16>
    %25 = vector.extract_strided_slice %4 {offsets = [1, 0, 1, 0], sizes = [4, 8, 8, 4], strides = [1, 1, 1, 1]} : vector<6x10x10x4xbf16> to vector<4x8x8x4xbf16>
    %26 = vector.shape_cast %25 : vector<4x8x8x4xbf16> to vector<256x4xbf16>
    %27 = vector.extract_strided_slice %4 {offsets = [1, 0, 2, 0], sizes = [4, 8, 8, 4], strides = [1, 1, 1, 1]} : vector<6x10x10x4xbf16> to vector<4x8x8x4xbf16>
    %28 = vector.shape_cast %27 : vector<4x8x8x4xbf16> to vector<256x4xbf16>
    %29 = vector.extract_strided_slice %4 {offsets = [1, 1, 0, 0], sizes = [4, 8, 8, 4], strides = [1, 1, 1, 1]} : vector<6x10x10x4xbf16> to vector<4x8x8x4xbf16>
    %30 = vector.shape_cast %29 : vector<4x8x8x4xbf16> to vector<256x4xbf16>
    %31 = vector.extract_strided_slice %4 {offsets = [1, 1, 1, 0], sizes = [4, 8, 8, 4], strides = [1, 1, 1, 1]} : vector<6x10x10x4xbf16> to vector<4x8x8x4xbf16>
    %32 = vector.shape_cast %31 : vector<4x8x8x4xbf16> to vector<256x4xbf16>
    %33 = vector.extract_strided_slice %4 {offsets = [1, 1, 2, 0], sizes = [4, 8, 8, 4], strides = [1, 1, 1, 1]} : vector<6x10x10x4xbf16> to vector<4x8x8x4xbf16>
    %34 = vector.shape_cast %33 : vector<4x8x8x4xbf16> to vector<256x4xbf16>
    %35 = vector.extract_strided_slice %4 {offsets = [1, 2, 0, 0], sizes = [4, 8, 8, 4], strides = [1, 1, 1, 1]} : vector<6x10x10x4xbf16> to vector<4x8x8x4xbf16>
    %36 = vector.shape_cast %35 : vector<4x8x8x4xbf16> to vector<256x4xbf16>
    %37 = vector.extract_strided_slice %4 {offsets = [1, 2, 1, 0], sizes = [4, 8, 8, 4], strides = [1, 1, 1, 1]} : vector<6x10x10x4xbf16> to vector<4x8x8x4xbf16>
    %38 = vector.shape_cast %37 : vector<4x8x8x4xbf16> to vector<256x4xbf16>
    %39 = vector.extract_strided_slice %4 {offsets = [1, 2, 2, 0], sizes = [4, 8, 8, 4], strides = [1, 1, 1, 1]} : vector<6x10x10x4xbf16> to vector<4x8x8x4xbf16>
    %40 = vector.shape_cast %39 : vector<4x8x8x4xbf16> to vector<256x4xbf16>
    %41 = vector.extract_strided_slice %4 {offsets = [2, 0, 0, 0], sizes = [4, 8, 8, 4], strides = [1, 1, 1, 1]} : vector<6x10x10x4xbf16> to vector<4x8x8x4xbf16>
    %42 = vector.shape_cast %41 : vector<4x8x8x4xbf16> to vector<256x4xbf16>
    %43 = vector.extract_strided_slice %4 {offsets = [2, 0, 1, 0], sizes = [4, 8, 8, 4], strides = [1, 1, 1, 1]} : vector<6x10x10x4xbf16> to vector<4x8x8x4xbf16>
    %44 = vector.shape_cast %43 : vector<4x8x8x4xbf16> to vector<256x4xbf16>
    %45 = vector.extract_strided_slice %4 {offsets = [2, 0, 2, 0], sizes = [4, 8, 8, 4], strides = [1, 1, 1, 1]} : vector<6x10x10x4xbf16> to vector<4x8x8x4xbf16>
    %46 = vector.shape_cast %45 : vector<4x8x8x4xbf16> to vector<256x4xbf16>
    %47 = vector.extract_strided_slice %4 {offsets = [2, 1, 0, 0], sizes = [4, 8, 8, 4], strides = [1, 1, 1, 1]} : vector<6x10x10x4xbf16> to vector<4x8x8x4xbf16>
    %48 = vector.shape_cast %47 : vector<4x8x8x4xbf16> to vector<256x4xbf16>
    %49 = vector.extract_strided_slice %4 {offsets = [2, 1, 1, 0], sizes = [4, 8, 8, 4], strides = [1, 1, 1, 1]} : vector<6x10x10x4xbf16> to vector<4x8x8x4xbf16>
    %50 = vector.shape_cast %49 : vector<4x8x8x4xbf16> to vector<256x4xbf16>
    %51 = vector.extract_strided_slice %4 {offsets = [2, 1, 2, 0], sizes = [4, 8, 8, 4], strides = [1, 1, 1, 1]} : vector<6x10x10x4xbf16> to vector<4x8x8x4xbf16>
    %52 = vector.shape_cast %51 : vector<4x8x8x4xbf16> to vector<256x4xbf16>
    %53 = vector.extract_strided_slice %4 {offsets = [2, 2, 0, 0], sizes = [4, 8, 8, 4], strides = [1, 1, 1, 1]} : vector<6x10x10x4xbf16> to vector<4x8x8x4xbf16>
    %54 = vector.shape_cast %53 : vector<4x8x8x4xbf16> to vector<256x4xbf16>
    %55 = vector.extract_strided_slice %4 {offsets = [2, 2, 1, 0], sizes = [4, 8, 8, 4], strides = [1, 1, 1, 1]} : vector<6x10x10x4xbf16> to vector<4x8x8x4xbf16>
    %56 = vector.shape_cast %55 : vector<4x8x8x4xbf16> to vector<256x4xbf16>
    %57 = vector.extract_strided_slice %4 {offsets = [2, 2, 2, 0], sizes = [4, 8, 8, 4], strides = [1, 1, 1, 1]} : vector<6x10x10x4xbf16> to vector<4x8x8x4xbf16>
    %58 = vector.shape_cast %57 : vector<4x8x8x4xbf16> to vector<256x4xbf16>
    %59 = tpu.concatenate %6, %8, %10, %12, %14, %16, %18, %20, %22, %24, %26, %28, %30, %32, %34, %36 in 1 : vector<256x4xbf16>, vector<256x4xbf16>, vector<256x4xbf16>, vector<256x4xbf16>, vector<256x4xbf16>, vector<256x4xbf16>, vector<256x4xbf16>, vector<256x4xbf16>, vector<256x4xbf16>, vector<256x4xbf16>, vector<256x4xbf16>, vector<256x4xbf16>, vector<256x4xbf16>, vector<256x4xbf16>, vector<256x4xbf16>, vector<256x4xbf16> -> vector<256x64xbf16>
    %60 = tpu.concatenate %38, %40, %42, %44, %46, %48, %50, %52, %54, %56, %58 in 1 : vector<256x4xbf16>, vector<256x4xbf16>, vector<256x4xbf16>, vector<256x4xbf16>, vector<256x4xbf16>, vector<256x4xbf16>, vector<256x4xbf16>, vector<256x4xbf16>, vector<256x4xbf16>, vector<256x4xbf16>, vector<256x4xbf16> -> vector<256x44xbf16>
    %61 = tpu.concatenate %59, %60 in 1 : vector<256x64xbf16>, vector<256x44xbf16> -> vector<256x108xbf16>
    %c0_3 = arith.constant 0 : index
    %c0_4 = arith.constant 0 : index
    %62 = vector.load %arg3[%c0_3, %c0_4] : memref<108x128xbf16, #tpu.memory_space<vmem>>, vector<108x128xbf16>
    %cst = arith.constant dense<0.000000e+00> : vector<256x128xf32>
    %63 = tpu.matmul %61, %62, %cst {dimension_numbers = #tpu.dot_dimension_numbers<[1], [0], [0], [1], [0, 0, 1, 1], [], []>} : vector<256x108xbf16>, vector<108x128xbf16>, vector<256x128xf32> -> vector<256x128xf32>
    %64 = vector.shape_cast %63 : vector<256x128xf32> to vector<1x4x64x128xf32>
    %65 = arith.truncf %64 : vector<1x4x64x128xf32> to vector<1x4x64x128xbf16>
    %c0_5 = arith.constant 0 : index
    %c0_6 = arith.constant 0 : index
    %c0_7 = arith.constant 0 : index
    %c0_8 = arith.constant 0 : index
    %66 = vector.load %arg4[%c0_5, %c0_6, %c0_7, %c0_8] : memref<1x4x64x128xbf16, #tpu.memory_space<vmem>>, vector<1x4x64x128xbf16>
    tpu.vector_store %arg4[%c0_5, %c0_6, %c0_7, %c0_8], %65 {strides = array<i32>} : memref<1x4x64x128xbf16, #tpu.memory_space<vmem>>, vector<1x4x64x128xbf16>,
    %cst_9 = arith.constant dense<0.000000e+00> : vector<128xf32>
    %67 = vector.multi_reduction <add>, %63, %cst_9 [0] : vector<256x128xf32> to vector<128xf32>
    %68 = vector.shape_cast %67 : vector<128xf32> to vector<1x128xf32>
    %69 = arith.mulf %63, %63 : vector<256x128xf32>
    %cst_10 = arith.constant dense<0.000000e+00> : vector<128xf32>
    %70 = vector.multi_reduction <add>, %69, %cst_10 [0] : vector<256x128xf32> to vector<128xf32>
    %71 = vector.shape_cast %70 : vector<128xf32> to vector<1x128xf32>
    %72 = tpu.concatenate %68, %71 in 0 : vector<1x128xf32>, vector<1x128xf32> -> vector<2x128xf32>
    %73 = vector.shape_cast %72 : vector<2x128xf32> to vector<1x1x2x128xf32>
    %c0_11 = arith.constant 0 : index
    %c0_12 = arith.constant 0 : index
    %c0_13 = arith.constant 0 : index
    %c0_14 = arith.constant 0 : index
    %74 = vector.load %arg5[%c0_11, %c0_12, %c0_13, %c0_14] : memref<1x1x2x128xf32, #tpu.memory_space<vmem>>, vector<1x1x2x128xf32>
    tpu.vector_store %arg5[%c0_11, %c0_12, %c0_13, %c0_14], %73 {strides = array<i32>} : memref<1x1x2x128xf32, #tpu.memory_space<vmem>>, vector<1x1x2x128xf32>,
    return
  }
  func.func @transform_0(%arg0: i32, %arg1: i32) -> (i32, i32, i32, i32, i32) {
    %c0_i32 = arith.constant 0 : i32
    %c0_i32_0 = arith.constant 0 : i32
    %c0_i32_1 = arith.constant 0 : i32
    %c0_i32_2 = arith.constant 0 : i32
    %c0_i32_3 = arith.constant 0 : i32
    return %arg0, %c0_i32, %c0_i32_0, %c0_i32_1, %c0_i32_2 : i32, i32, i32, i32, i32
  }
  func.func @transform_1(%arg0: i32, %arg1: i32) -> (i32, i32) {
    %c0_i32 = arith.constant 0 : i32
    %c0_i32_0 = arith.constant 0 : i32
    %c0_i32_1 = arith.constant 0 : i32
    return %c0_i32, %c0_i32_0 : i32, i32
  }
  func.func @transform_2(%arg0: i32, %arg1: i32) -> (i32, i32, i32, i32) {
    %c0_i32 = arith.constant 0 : i32
    %c0_i32_0 = arith.constant 0 : i32
    %c0_i32_1 = arith.constant 0 : i32
    return %arg0, %arg1, %c0_i32, %c0_i32_0 : i32, i32, i32, i32
  }
  func.func @transform_3(%arg0: i32, %arg1: i32) -> (i32, i32, i32, i32) {
    %c0_i32 = arith.constant 0 : i32
    %c0_i32_0 = arith.constant 0 : i32
    %c0_i32_1 = arith.constant 0 : i32
    return %arg0, %arg1, %c0_i32, %c0_i32_0 : i32, i32, i32, i32
  }
}

</mosaic_0001>

<llo_original>
// kernel: tpu_custom_call.1
$region0: #{tpu_custom_call.1}
  #allocation0 [shape = 'u32[]', space=smem, size = 0x4, offset = 0x4, fixed_abs, tag = 'smem constant byte address 0x4 - core index']
  #allocation1 [shape = 'u32[72,128]{1,0:T(1,128)}', space=vmem, size = 0x9000, scoped, tag = 'internal scratch']
  %s0 = inlined_call_operand.vmem [shape: bf16[2,6,10,10,4], index: 0, kind: input, shape index: {}]
  %s1 = inlined_call_operand.vmem [shape: bf16[108,128], index: 1, kind: input, shape index: {}]
  %s2 = inlined_call_operand.hbm [shape: bf16[2,4,64,128], index: 2, kind: output, shape index: {0}]
  %s3 = inlined_call_operand.hbm [shape: f32[2,1,2,128], index: 3, kind: output, shape index: {1}]
  %4 = xla_tuple %s2, %s3
  %s5 = sld [smem:[#allocation0]]
  $region49: #{tpu_custom_call.1} parent=0
    _
  %s7 = ssub.s32 1, %s5
  %s8 = scalar_select 0, %s7, %s5
  $region1: #{tpu_custom_call.1} parent=0
    #allocation2 [shape = 'u8[131072]{0}', space=vmem, size = 0x20000, scoped, tag = 'output window, operand 0']
    #allocation3 [shape = 's32[2]{0}', space=sflag, size = 0x8, scoped, tag = 'scoped memory for tpu_custom_call.1']
    #allocation4 [shape = 'u8[2048]{0}', space=vmem, size = 0x800, scoped, tag = 'output window, operand 1']
    #allocation5 [shape = 's32[2]{0}', space=sflag, size = 0x8, scoped, tag = 'scoped memory for tpu_custom_call.1']
    %9 = vsyncpa [#allocation3], 0
    %s10 = scalar_lea.sflag [#allocation3], 1
    %11 = vsyncpa %s10, 0
    %12 = vsyncpa [#allocation5], 0
    %s13 = scalar_lea.sflag [#allocation5], 1
    %14 = vsyncpa %s13, 0
    loop: start=0, step=1, limit=4
    $region2: #{tpu_custom_call.1} parent=1 // loop_pre_header
      _
    $region3: #{tpu_custom_call.1} parent=1 // loop_header
      %s16 = sphi 0, %s20
      %p17 = scmp.ge.s32.totalorder %s16, 4
      %s23 = sphi 0, %s35
      %s24 = sphi 0, %s31
      %s25 = sphi 0, %s23
      %s26 = sphi 0, %s24
      %s27 = sphi 0, %s25
      %s28 = sphi 0, %s26
      %s38 = sphi 0, %s40
      %s41 = sphi 0, %s38
      %s42 = sphi 0, %s41
      %s58 = sphi 0, %s42
      %s62 = sphi 0, %s62
      %s64 = sphi 0, %s62
      %s65 = sphi 0, %s64
      %s79 = sphi 0, %s65
      %s87 = sphi 0, %s89
      %s90 = sphi 0, %s87
      %s91 = sphi 0, %s90
      %s107 = sphi 0, %s91
      %s115 = sphi 0, %s117
      %s118 = sphi 0, %s115
      %s119 = sphi 0, %s118
      %s135 = sphi 0, %s119
    $region4: #{tpu_custom_call.1} parent=1 // loop_header_branch
      %19 = sbr.rel (%p17) target = $region8
    $region5: #{tpu_custom_call.1} parent=1 // loop_body
      %s21 = ssub.s32 %s16, 1
      %s22 = ssub.s32 %s16, 2
      %s29 = sadd.s32 1, %s24
      %p30 = scmp.ge.s32.totalorder %s29, 1
      %s31 = scalar_select %p30, 0, %s29
      %s32 = sadd.s32 1, %s23
      %s33 = scalar_select %p30, %s32, %s23
      %p34 = scmp.ge.s32.totalorder %s33, 2
      %s35 = scalar_select %p34, 0, %s33
      %s36 = ssub.s32 %s23, %s35
      %p37 = scmp.eq.s32.totalorder %s36, 0
      %s39 = sadd.s32 %s38, 1
      %s40 = scalar_select %p37, %s38, %s39
      %p43 = pneg %p37
      %p44 = scmp.eq.s32.totalorder %s16, 1
      %p45 = por %p43, %p44
      %p46 = scmp.ne.s32.totalorder %s38, %s41
      %p47 = scmp.eq.s32.totalorder %s16, 0
      %p48 = por %p46, %p47
      %p49 = scmp.ne.s32.totalorder %s38, %s41
      %p50 = scmp.eq.s32.totalorder %s21, 1
      %p51 = por %p49, %p50
      %p52 = scmp.ne.s32.totalorder %s41, %s42
      %p53 = scmp.eq.s32.totalorder %s21, 0
      %p54 = por %p52, %p53
      %p55 = scmp.ne.s32.totalorder %s41, %s42
      %p56 = scmp.eq.s32.totalorder %s22, 1
      %p57 = por %p55, %p56
      %p59 = scmp.ne.s32.totalorder %s42, %s58
      %p60 = scmp.eq.s32.totalorder %s22, 0
      %p61 = por %p59, %p60
      %s63 = sadd.s32 %s62, 1
      %p66 = scmp.eq.s32.totalorder %s16, 1
      %p67 = scmp.ne.s32.totalorder %s62, %s64
      %p68 = scmp.eq.s32.totalorder %s16, 0
      %p69 = por %p67, %p68
      %p70 = scmp.ne.s32.totalorder %s62, %s64
      %p71 = scmp.eq.s32.totalorder %s21, 1
      %p72 = por %p70, %p71
      %p73 = scmp.ne.s32.totalorder %s64, %s65
      %p74 = scmp.eq.s32.totalorder %s21, 0
      %p75 = por %p73, %p74
      %p76 = scmp.ne.s32.totalorder %s64, %s65
      %p77 = scmp.eq.s32.totalorder %s22, 1
      %p78 = por %p76, %p77
      %p80 = scmp.ne.s32.totalorder %s65, %s79
      %p81 = scmp.eq.s32.totalorder %s22, 0
      %p82 = por %p80, %p81
      %s83 = ssub.s32 %s23, %s35
      %s84 = ssub.s32 %s24, %s31
      %s85 = sor.u32 %s83, %s84
      %p86 = scmp.eq.s32.totalorder %s85, 0
      %s88 = sadd.s32 %s87, 1
      %s89 = scalar_select %p86, %s87, %s88
      %p92 = pneg %p86
      %p93 = scmp.eq.s32.totalorder %s16, 1
      %p94 = por %p92, %p93
      %p95 = scmp.ne.s32.totalorder %s87, %s90
      %p96 = scmp.eq.s32.totalorder %s16, 0
      %p97 = por %p95, %p96
      %p98 = scmp.ne.s32.totalorder %s87, %s90
      %p99 = scmp.eq.s32.totalorder %s21, 1
      %p100 = por %p98, %p99
      %p101 = scmp.ne.s32.totalorder %s90, %s91
      %p102 = scmp.eq.s32.totalorder %s21, 0
      %p103 = por %p101, %p102
      %p104 = scmp.ne.s32.totalorder %s90, %s91
      %p105 = scmp.eq.s32.totalorder %s22, 1
      %p106 = por %p104, %p105
      %p108 = scmp.ne.s32.totalorder %s91, %s107
      %p109 = scmp.eq.s32.totalorder %s22, 0
      %p110 = por %p108, %p109
      %s111 = ssub.s32 %s23, %s35
      %s112 = ssub.s32 %s24, %s31
      %s113 = sor.u32 %s111, %s112
      %p114 = scmp.eq.s32.totalorder %s113, 0
      %s116 = sadd.s32 %s115, 1
      %s117 = scalar_select %p114, %s115, %s116
      %p120 = pneg %p114
      %p121 = scmp.eq.s32.totalorder %s16, 1
      %p122 = por %p120, %p121
      %p123 = scmp.ne.s32.totalorder %s115, %s118
      %p124 = scmp.eq.s32.totalorder %s16, 0
      %p125 = por %p123, %p124
      %p126 = scmp.ne.s32.totalorder %s115, %s118
      %p127 = scmp.eq.s32.totalorder %s21, 1
      %p128 = por %p126, %p127
      %p129 = scmp.ne.s32.totalorder %s118, %s119
      %p130 = scmp.eq.s32.totalorder %s21, 0
      %p131 = por %p129, %p130
      %p132 = scmp.ne.s32.totalorder %s118, %s119
      %p133 = scmp.eq.s32.totalorder %s22, 1
      %p134 = por %p132, %p133
      %p136 = scmp.ne.s32.totalorder %s119, %s135
      %p137 = scmp.eq.s32.totalorder %s22, 0
      %p138 = por %p136, %p137
      %p139 = scmp.le.s32.totalorder 1, %s16
      %p140 = scmp.lt.s32.totalorder %s16, 3
      %p141 = pnand %p139, %p140
      %p142 = pneg %p141
      // Predicated region
      $region9: #{tpu_custom_call.1} parent=5 // pred_check
        _
      $region10: #{tpu_custom_call.1} parent=5 // pred_check_branch
        %144 = sbr.rel (%p141) target = $region12
      $region11: #{tpu_custom_call.1} parent=5 // pred_region
        %s145 = ssub.s32 %s16, 1
        // Predicated region
        $region13: #{tpu_custom_call.1} parent=11 // pred_check
          %p146 = pneg %p75
        $region14: #{tpu_custom_call.1} parent=11 // pred_check_branch
          %148 = sbr.rel (%p146) target = $region16
        $region15: #{tpu_custom_call.1} parent=11 // pred_region
          _
        $region16: #{tpu_custom_call.1} parent=11 // pred_fallthru
          _
      $region12: #{tpu_custom_call.1} parent=5 // pred_fallthru
        _
      %p149 = scmp.lt.s32.totalorder %s16, 2
      // Predicated region
      $region17: #{tpu_custom_call.1} parent=5 // pred_check
        %p150 = pneg %p149
      $region18: #{tpu_custom_call.1} parent=5 // pred_check_branch
        %152 = sbr.rel (%p150) target = $region20
      $region19: #{tpu_custom_call.1} parent=5 // pred_region
        // Predicated region
        $region21: #{tpu_custom_call.1} parent=19 // pred_check
          %p153 = pneg %p48
        $region22: #{tpu_custom_call.1} parent=19 // pred_check_branch
          %155 = sbr.rel (%p153) target = $region24
        $region23: #{tpu_custom_call.1} parent=19 // pred_region
          %p156 = scmp.lt.s32.totalorder %s23, 1
          %s157 = scalar_select %p156, %s23, 1
          %s158 = smul.addr %s157, 120
          %s159 = smul.addr %s158, 4
          %s160 = scalar_lea.vmem %s0, %s159
        $region24: #{tpu_custom_call.1} parent=19 // pred_fallthru
          _
      $region20: #{tpu_custom_call.1} parent=5 // pred_fallthru
        _
      %p161 = scmp.le.s32.totalorder 1, %s16
      %p162 = scmp.lt.s32.totalorder %s16, 3
      %p163 = pnand %p161, %p162
      %p164 = pneg %p163
      // Predicated region
      $region25: #{tpu_custom_call.1} parent=5 // pred_check
        _
      $region26: #{tpu_custom_call.1} parent=5 // pred_check_branch
        %166 = sbr.rel (%p163) target = $region28
      $region27: #{tpu_custom_call.1} parent=5 // pred_region
        %s167 = ssub.s32 %s16, 1
        %p168 = scmp.lt.s32.totalorder %s25, 1
        %s169 = scalar_select %p168, %s25, 1
        %s170 = smul.addr %s169, 120
        %s171 = smul.addr %s170, 4
        %s172 = scalar_lea.vmem %s0, %s171
        %p173 = pneg %p54
        %p174 = pneg %p51
        %p175 = pneg %p75
        %p176 = pneg %p72
        %p177 = pneg %p103
        %p178 = pneg %p100
        %s179 = sand.u32 %s90, 1
        %s180 = scalar_lea.sflag [#allocation3], %s179
        %s181 = sand.u32 %s90, 1
        %s182 = smul.addr %s181, 128
        %s183 = scalar_lea.vmem [#allocation2], %s182
        %p184 = pneg %p131
        %p185 = pneg %p128
        %s186 = sand.u32 %s118, 1
        %s187 = scalar_lea.sflag [#allocation5], %s186
        %s188 = sand.u32 %s118, 1
        %s189 = smul.addr %s188, 2
        %s190 = scalar_lea.vmem [#allocation4], %s189
        %p191 = scmp.lt.s32.totalorder %s25, 1
        %s192 = scalar_select %p191, %s25, 1
        %s193 = smul.addr %s192, 120
        %s194 = smul.addr %s193, 4
        %s195 = scalar_lea.vmem %s0, %s194
        %s196 = smul.u32 4, %s26
        %s198 = smul.u32 %s26, 4
        %s199 = smul.u32 %s198, 20
        %s200 = smul.addr %s199, 4
        %s201 = scalar_lea.vmem %s195, %s200
        %v202 = vld [vmem:[%s201] sm:$0xf]
        %v203 = vld [vmem:[%s201 + $0x4] sm:$0x1]
        %v204 = vld [vmem:[%s201 + $0x8] sm:$0xf]
        %v205 = vld [vmem:[%s201 + $0xc] sm:$0x1]
        %v206 = vld [vmem:[%s201 + $0x10] sm:$0xf]
        %v207 = vld [vmem:[%s201 + $0x14] sm:$0x1]
        %v208 = vld [vmem:[%s201 + $0x18] sm:$0xf]
        %v209 = vld [vmem:[%s201 + $0x1c] sm:$0x1]
        %v210 = vld [vmem:[%s201 + $0x20] sm:$0xf]
        %v211 = vld [vmem:[%s201 + $0x24] sm:$0x1]
        %v212 = vld [vmem:[%s201 + $0x28] sm:$0xf]
        %v213 = vld [vmem:[%s201 + $0x2c] sm:$0x1]
        %v214 = vld [vmem:[%s201 + $0x30] sm:$0xf]
        %v215 = vld [vmem:[%s201 + $0x34] sm:$0x1]
        %v216 = vld [vmem:[%s201 + $0x38] sm:$0xf]
        %v217 = vld [vmem:[%s201 + $0x3c] sm:$0x1]
        %v218 = vld [vmem:[%s201 + $0x40] sm:$0xf]
        %v219 = vld [vmem:[%s201 + $0x44] sm:$0x1]
        %v220 = vld [vmem:[%s201 + $0x48] sm:$0xf]
        %v221 = vld [vmem:[%s201 + $0x4c] sm:$0x1]
        %v222 = vld [vmem:[%s201 + $0x50] sm:$0xf]
        %v223 = vld [vmem:[%s201 + $0x54] sm:$0x1]
        %v224 = vld [vmem:[%s201 + $0x58] sm:$0xf]
        %v225 = vld [vmem:[%s201 + $0x5c] sm:$0x1]
        %v226 = vld [vmem:[%s201 + $0x60] sm:$0xf]
        %v227 = vld [vmem:[%s201 + $0x64] sm:$0x1]
        %v228 = vld [vmem:[%s201 + $0x68] sm:$0xf]
        %v229 = vld [vmem:[%s201 + $0x6c] sm:$0x1]
        %v230 = vld [vmem:[%s201 + $0x70] sm:$0xf]
        %v231 = vld [vmem:[%s201 + $0x74] sm:$0x1]
        %v232 = vld [vmem:[%s201 + $0x78] sm:$0xf]
        %v233 = vld [vmem:[%s201 + $0x7c] sm:$0x1]
        %v234 = vld [vmem:[%s201 + $0x80] sm:$0xf]
        %v235 = vld [vmem:[%s201 + $0x84] sm:$0x1]
        %v236 = vld [vmem:[%s201 + $0x88] sm:$0xf]
        %v237 = vld [vmem:[%s201 + $0x8c] sm:$0x1]
        %v238 = vld [vmem:[%s201 + $0x90] sm:$0xf]
        %v239 = vld [vmem:[%s201 + $0x94] sm:$0x1]
        %v240 = vld [vmem:[%s201 + $0x98] sm:$0xf]
        %v241 = vld [vmem:[%s201 + $0x9c] sm:$0x1]
        %v242 = vld [vmem:[%s201 + $0xa0] sm:$0xf]
        %v243 = vld [vmem:[%s201 + $0xa4] sm:$0x1]
        %v244 = vld [vmem:[%s201 + $0xa8] sm:$0xf]
        %v245 = vld [vmem:[%s201 + $0xac] sm:$0x1]
        %v246 = vld [vmem:[%s201 + $0xb0] sm:$0xf]
        %v247 = vld [vmem:[%s201 + $0xb4] sm:$0x1]
        %v248 = vld [vmem:[%s201 + $0xb8] sm:$0xf]
        %v249 = vld [vmem:[%s201 + $0xbc] sm:$0x1]
        %v250 = vld [vmem:[%s201 + $0xc0] sm:$0xf]
        %v251 = vld [vmem:[%s201 + $0xc4] sm:$0x1]
        %v252 = vld [vmem:[%s201 + $0xc8] sm:$0xf]
        %v253 = vld [vmem:[%s201 + $0xcc] sm:$0x1]
        %v254 = vld [vmem:[%s201 + $0xd0] sm:$0xf]
        %v255 = vld [vmem:[%s201 + $0xd4] sm:$0x1]
        %v256 = vld [vmem:[%s201 + $0xd8] sm:$0xf]
        %v257 = vld [vmem:[%s201 + $0xdc] sm:$0x1]
        %v258 = vld [vmem:[%s201 + $0xe0] sm:$0xf]
        %v259 = vld [vmem:[%s201 + $0xe4] sm:$0x1]
        %v260 = vld [vmem:[%s201 + $0xe8] sm:$0xf]
        %v261 = vld [vmem:[%s201 + $0xec] sm:$0x1]
        %v262 = vld [vmem:[%s201 + $0xf0] sm:$0xf]
        %v263 = vld [vmem:[%s201 + $0xf4] sm:$0x1]
        %v264 = vld [vmem:[%s201 + $0xf8] sm:$0xf]
        %v265 = vld [vmem:[%s201 + $0xfc] sm:$0x1]
        %v266 = vld [vmem:[%s201 + $0x100] sm:$0xf]
        %v267 = vld [vmem:[%s201 + $0x104] sm:$0x1]
        %v268 = vld [vmem:[%s201 + $0x108] sm:$0xf]
        %v269 = vld [vmem:[%s201 + $0x10c] sm:$0x1]
        %v270 = vld [vmem:[%s201 + $0x110] sm:$0xf]
        %v271 = vld [vmem:[%s201 + $0x114] sm:$0x1]
        %v272 = vld [vmem:[%s201 + $0x118] sm:$0xf]
        %v273 = vld [vmem:[%s201 + $0x11c] sm:$0x1]
        %v274 = vld [vmem:[%s201 + $0x120] sm:$0xf]
        %v275 = vld [vmem:[%s201 + $0x124] sm:$0x1]
        %v276 = vld [vmem:[%s201 + $0x128] sm:$0xf]
        %v277 = vld [vmem:[%s201 + $0x12c] sm:$0x1]
        %v278 = vld [vmem:[%s201 + $0x130] sm:$0xf]
        %v279 = vld [vmem:[%s201 + $0x134] sm:$0x1]
        %v280 = vld [vmem:[%s201 + $0x138] sm:$0xf]
        %v281 = vld [vmem:[%s201 + $0x13c] sm:$0x1]
        %v282 = vld [vmem:[%s201 + $0x140] sm:$0xf]
        %v283 = vld [vmem:[%s201 + $0x144] sm:$0x1]
        %v284 = vld [vmem:[%s201 + $0x148] sm:$0xf]
        %v285 = vld [vmem:[%s201 + $0x14c] sm:$0x1]
        %v286 = vld [vmem:[%s201 + $0x150] sm:$0xf]
        %v287 = vld [vmem:[%s201 + $0x154] sm:$0x1]
        %v288 = vld [vmem:[%s201 + $0x158] sm:$0xf]
        %v289 = vld [vmem:[%s201 + $0x15c] sm:$0x1]
        %v290 = vld [vmem:[%s201 + $0x160] sm:$0xf]
        %v291 = vld [vmem:[%s201 + $0x164] sm:$0x1]
        %v292 = vld [vmem:[%s201 + $0x168] sm:$0xf]
        %v293 = vld [vmem:[%s201 + $0x16c] sm:$0x1]
        %v294 = vld [vmem:[%s201 + $0x170] sm:$0xf]
        %v295 = vld [vmem:[%s201 + $0x174] sm:$0x1]
        %v296 = vld [vmem:[%s201 + $0x178] sm:$0xf]
        %v297 = vld [vmem:[%s201 + $0x17c] sm:$0x1]
        %v298 = vld [vmem:[%s201 + $0x180] sm:$0xf]
        %v299 = vld [vmem:[%s201 + $0x184] sm:$0x1]
        %v300 = vld [vmem:[%s201 + $0x188] sm:$0xf]
        %v301 = vld [vmem:[%s201 + $0x18c] sm:$0x1]
        %v302 = vld [vmem:[%s201 + $0x190] sm:$0xf]
        %v303 = vld [vmem:[%s201 + $0x194] sm:$0x1]
        %v304 = vld [vmem:[%s201 + $0x198] sm:$0xf]
        %v305 = vld [vmem:[%s201 + $0x19c] sm:$0x1]
        %v306 = vld [vmem:[%s201 + $0x1a0] sm:$0xf]
        %v307 = vld [vmem:[%s201 + $0x1a4] sm:$0x1]
        %v308 = vld [vmem:[%s201 + $0x1a8] sm:$0xf]
        %v309 = vld [vmem:[%s201 + $0x1ac] sm:$0x1]
        %v310 = vld [vmem:[%s201 + $0x1b0] sm:$0xf]
        %v311 = vld [vmem:[%s201 + $0x1b4] sm:$0x1]
        %v312 = vld [vmem:[%s201 + $0x1b8] sm:$0xf]
        %v313 = vld [vmem:[%s201 + $0x1bc] sm:$0x1]
        %v314 = vld [vmem:[%s201 + $0x1c0] sm:$0xf]
        %v315 = vld [vmem:[%s201 + $0x1c4] sm:$0x1]
        %v316 = vld [vmem:[%s201 + $0x1c8] sm:$0xf]
        %v317 = vld [vmem:[%s201 + $0x1cc] sm:$0x1]
        %v318 = vld [vmem:[%s201 + $0x1d0] sm:$0xf]
        %v319 = vld [vmem:[%s201 + $0x1d4] sm:$0x1]
        %v320 = vld [vmem:[%s201 + $0x1d8] sm:$0xf]
        %v321 = vld [vmem:[%s201 + $0x1dc] sm:$0x1]
        %vm322 = vsmask.f32 3328
        %vm323 = vsmask.f32 7440
        %vm324 = vmor %vm322, %vm323
        %v326 = vshrl.u32 %v202, 16
        %v328 = vrot.slane %v326, 4
        %v329 = vshll.u32 %v202, 16
        %v331 = vrot.slane %v329, 5
        %v332 = vor.u32 %v328, %v331
        %v333 = vrot.slane %v332, 4
        %v335 = vshll.u32 %v203, 16
        %v337 = vrot.slane %v335, 5
        %v338 = vsel %vm324, %v333, %v337
        %v340 = vshrl.u32 %v204, 16
        %v342 = vrot.slane %v340, 4
        %v343 = vshll.u32 %v204, 16
        %v345 = vrot.slane %v343, 5
        %v346 = vor.u32 %v342, %v345
        %v347 = vrot.slane %v346, 4
        %v349 = vshll.u32 %v205, 16
        %v351 = vrot.slane %v349, 5
        %v352 = vsel %vm324, %v347, %v351
        %v354 = vshrl.u32 %v206, 16
        %v356 = vrot.slane %v354, 4
        %v357 = vshll.u32 %v206, 16
        %v359 = vrot.slane %v357, 5
        %v360 = vor.u32 %v356, %v359
        %v361 = vrot.slane %v360, 4
        %v363 = vshll.u32 %v207, 16
        %v365 = vrot.slane %v363, 5
        %v366 = vsel %vm324, %v361, %v365
        %v368 = vshrl.u32 %v208, 16
        %v370 = vrot.slane %v368, 4
        %v371 = vshll.u32 %v208, 16
        %v373 = vrot.slane %v371, 5
        %v374 = vor.u32 %v370, %v373
        %v375 = vrot.slane %v374, 4
        %v377 = vshll.u32 %v209, 16
        %v379 = vrot.slane %v377, 5
        %v380 = vsel %vm324, %v375, %v379
        %v382 = vshrl.u32 %v210, 16
        %v384 = vrot.slane %v382, 4
        %v385 = vshll.u32 %v210, 16
        %v387 = vrot.slane %v385, 5
        %v388 = vor.u32 %v384, %v387
        %v389 = vrot.slane %v388, 4
        %v391 = vshll.u32 %v211, 16
        %v393 = vrot.slane %v391, 5
        %v394 = vsel %vm324, %v389, %v393
        %v396 = vshrl.u32 %v212, 16
        %v398 = vrot.slane %v396, 4
        %v399 = vshll.u32 %v212, 16
        %v401 = vrot.slane %v399, 5
        %v402 = vor.u32 %v398, %v401
        %v403 = vrot.slane %v402, 4
        %v405 = vshll.u32 %v213, 16
        %v407 = vrot.slane %v405, 5
        %v408 = vsel %vm324, %v403, %v407
        %v410 = vshrl.u32 %v214, 16
        %v412 = vrot.slane %v410, 4
        %v413 = vshll.u32 %v214, 16
        %v415 = vrot.slane %v413, 5
        %v416 = vor.u32 %v412, %v415
        %v417 = vrot.slane %v416, 4
        %v419 = vshll.u32 %v215, 16
        %v421 = vrot.slane %v419, 5
        %v422 = vsel %vm324, %v417, %v421
        %v424 = vshrl.u32 %v216, 16
        %v426 = vrot.slane %v424, 4
        %v427 = vshll.u32 %v216, 16
        %v429 = vrot.slane %v427, 5
        %v430 = vor.u32 %v426, %v429
        %v431 = vrot.slane %v430, 4
        %v433 = vshll.u32 %v217, 16
        %v435 = vrot.slane %v433, 5
        %v436 = vsel %vm324, %v431, %v435
        %v438 = vshrl.u32 %v222, 16
        %v440 = vrot.slane %v438, 4
        %v441 = vshll.u32 %v222, 16
        %v443 = vrot.slane %v441, 5
        %v444 = vor.u32 %v440, %v443
        %v445 = vrot.slane %v444, 4
        %v447 = vshll.u32 %v223, 16
        %v449 = vrot.slane %v447, 5
        %v450 = vsel %vm324, %v445, %v449
        %v452 = vshrl.u32 %v224, 16
        %v454 = vrot.slane %v452, 4
        %v455 = vshll.u32 %v224, 16
        %v457 = vrot.slane %v455, 5
        %v458 = vor.u32 %v454, %v457
        %v459 = vrot.slane %v458, 4
        %v461 = vshll.u32 %v225, 16
        %v463 = vrot.slane %v461, 5
        %v464 = vsel %vm324, %v459, %v463
        %v466 = vshrl.u32 %v226, 16
        %v468 = vrot.slane %v466, 4
        %v469 = vshll.u32 %v226, 16
        %v471 = vrot.slane %v469, 5
        %v472 = vor.u32 %v468, %v471
        %v473 = vrot.slane %v472, 4
        %v475 = vshll.u32 %v227, 16
        %v477 = vrot.slane %v475, 5
        %v478 = vsel %vm324, %v473, %v477
        %v480 = vshrl.u32 %v228, 16
        %v482 = vrot.slane %v480, 4
        %v483 = vshll.u32 %v228, 16
        %v485 = vrot.slane %v483, 5
        %v486 = vor.u32 %v482, %v485
        %v487 = vrot.slane %v486, 4
        %v489 = vshll.u32 %v229, 16
        %v491 = vrot.slane %v489, 5
        %v492 = vsel %vm324, %v487, %v491
        %v494 = vshrl.u32 %v230, 16
        %v496 = vrot.slane %v494, 4
        %v497 = vshll.u32 %v230, 16
        %v499 = vrot.slane %v497, 5
        %v500 = vor.u32 %v496, %v499
        %v501 = vrot.slane %v500, 4
        %v503 = vshll.u32 %v231, 16
        %v505 = vrot.slane %v503, 5
        %v506 = vsel %vm324, %v501, %v505
        %v508 = vshrl.u32 %v232, 16
        %v510 = vrot.slane %v508, 4
        %v511 = vshll.u32 %v232, 16
        %v513 = vrot.slane %v511, 5
        %v514 = vor.u32 %v510, %v513
        %v515 = vrot.slane %v514, 4
        %v517 = vshll.u32 %v233, 16
        %v519 = vrot.slane %v517, 5
        %v520 = vsel %vm324, %v515, %v519
        %v522 = vshrl.u32 %v234, 16
        %v524 = vrot.slane %v522, 4
        %v525 = vshll.u32 %v234, 16
        %v527 = vrot.slane %v525, 5
        %v528 = vor.u32 %v524, %v527
        %v529 = vrot.slane %v528, 4
        %v531 = vshll.u32 %v235, 16
        %v533 = vrot.slane %v531, 5
        %v534 = vsel %vm324, %v529, %v533
        %v536 = vshrl.u32 %v236, 16
        %v538 = vrot.slane %v536, 4
        %v539 = vshll.u32 %v236, 16
        %v541 = vrot.slane %v539, 5
        %v542 = vor.u32 %v538, %v541
        %v543 = vrot.slane %v542, 4
        %v545 = vshll.u32 %v237, 16
        %v547 = vrot.slane %v545, 5
        %v548 = vsel %vm324, %v543, %v547
        %v550 = vshrl.u32 %v242, 16
        %v552 = vrot.slane %v550, 4
        %v553 = vshll.u32 %v242, 16
        %v555 = vrot.slane %v553, 5
        %v556 = vor.u32 %v552, %v555
        %v557 = vrot.slane %v556, 4
        %v559 = vshll.u32 %v243, 16
        %v561 = vrot.slane %v559, 5
        %v562 = vsel %vm324, %v557, %v561
        %v564 = vshrl.u32 %v244, 16
        %v566 = vrot.slane %v564, 4
        %v567 = vshll.u32 %v244, 16
        %v569 = vrot.slane %v567, 5
        %v570 = vor.u32 %v566, %v569
        %v571 = vrot.slane %v570, 4
        %v573 = vshll.u32 %v245, 16
        %v575 = vrot.slane %v573, 5
        %v576 = vsel %vm324, %v571, %v575
        %v578 = vshrl.u32 %v246, 16
        %v580 = vrot.slane %v578, 4
        %v581 = vshll.u32 %v246, 16
        %v583 = vrot.slane %v581, 5
        %v584 = vor.u32 %v580, %v583
        %v585 = vrot.slane %v584, 4
        %v587 = vshll.u32 %v247, 16
        %v589 = vrot.slane %v587, 5
        %v590 = vsel %vm324, %v585, %v589
        %v592 = vshrl.u32 %v248, 16
        %v594 = vrot.slane %v592, 4
        %v595 = vshll.u32 %v248, 16
        %v597 = vrot.slane %v595, 5
        %v598 = vor.u32 %v594, %v597
        %v599 = vrot.slane %v598, 4
        %v601 = vshll.u32 %v249, 16
        %v603 = vrot.slane %v601, 5
        %v604 = vsel %vm324, %v599, %v603
        %v606 = vshrl.u32 %v250, 16
        %v608 = vrot.slane %v606, 4
        %v609 = vshll.u32 %v250, 16
        %v611 = vrot.slane %v609, 5
        %v612 = vor.u32 %v608, %v611
        %v613 = vrot.slane %v612, 4
        %v615 = vshll.u32 %v251, 16
        %v617 = vrot.slane %v615, 5
        %v618 = vsel %vm324, %v613, %v617
        %v620 = vshrl.u32 %v252, 16
        %v622 = vrot.slane %v620, 4
        %v623 = vshll.u32 %v252, 16
        %v625 = vrot.slane %v623, 5
        %v626 = vor.u32 %v622, %v625
        %v627 = vrot.slane %v626, 4
        %v629 = vshll.u32 %v253, 16
        %v631 = vrot.slane %v629, 5
        %v632 = vsel %vm324, %v627, %v631
        %v634 = vshrl.u32 %v254, 16
        %v636 = vrot.slane %v634, 4
        %v637 = vshll.u32 %v254, 16
        %v639 = vrot.slane %v637, 5
        %v640 = vor.u32 %v636, %v639
        %v641 = vrot.slane %v640, 4
        %v643 = vshll.u32 %v255, 16
        %v645 = vrot.slane %v643, 5
        %v646 = vsel %vm324, %v641, %v645
        %v648 = vshrl.u32 %v256, 16
        %v650 = vrot.slane %v648, 4
        %v651 = vshll.u32 %v256, 16
        %v653 = vrot.slane %v651, 5
        %v654 = vor.u32 %v650, %v653
        %v655 = vrot.slane %v654, 4
        %v657 = vshll.u32 %v257, 16
        %v659 = vrot.slane %v657, 5
        %v660 = vsel %vm324, %v655, %v659
        %v662 = vshrl.u32 %v262, 16
        %v664 = vrot.slane %v662, 4
        %v665 = vshll.u32 %v262, 16
        %v667 = vrot.slane %v665, 5
        %v668 = vor.u32 %v664, %v667
        %v669 = vrot.slane %v668, 4
        %v671 = vshll.u32 %v263, 16
        %v673 = vrot.slane %v671, 5
        %v674 = vsel %vm324, %v669, %v673
        %v676 = vshrl.u32 %v264, 16
        %v678 = vrot.slane %v676, 4
        %v679 = vshll.u32 %v264, 16
        %v681 = vrot.slane %v679, 5
        %v682 = vor.u32 %v678, %v681
        %v683 = vrot.slane %v682, 4
        %v685 = vshll.u32 %v265, 16
        %v687 = vrot.slane %v685, 5
        %v688 = vsel %vm324, %v683, %v687
        %v690 = vshrl.u32 %v266, 16
        %v692 = vrot.slane %v690, 4
        %v693 = vshll.u32 %v266, 16
        %v695 = vrot.slane %v693, 5
        %v696 = vor.u32 %v692, %v695
        %v697 = vrot.slane %v696, 4
        %v699 = vshll.u32 %v267, 16
        %v701 = vrot.slane %v699, 5
        %v702 = vsel %vm324, %v697, %v701
        %v704 = vshrl.u32 %v268, 16
        %v706 = vrot.slane %v704, 4
        %v707 = vshll.u32 %v268, 16
        %v709 = vrot.slane %v707, 5
        %v710 = vor.u32 %v706, %v709
        %v711 = vrot.slane %v710, 4
        %v713 = vshll.u32 %v269, 16
        %v715 = vrot.slane %v713, 5
        %v716 = vsel %vm324, %v711, %v715
        %v718 = vshrl.u32 %v270, 16
        %v720 = vrot.slane %v718, 4
        %v721 = vshll.u32 %v270, 16
        %v723 = vrot.slane %v721, 5
        %v724 = vor.u32 %v720, %v723
        %v725 = vrot.slane %v724, 4
        %v727 = vshll.u32 %v271, 16
        %v729 = vrot.slane %v727, 5
        %v730 = vsel %vm324, %v725, %v729
        %v732 = vshrl.u32 %v272, 16
        %v734 = vrot.slane %v732, 4
        %v735 = vshll.u32 %v272, 16
        %v737 = vrot.slane %v735, 5
        %v738 = vor.u32 %v734, %v737
        %v739 = vrot.slane %v738, 4
        %v741 = vshll.u32 %v273, 16
        %v743 = vrot.slane %v741, 5
        %v744 = vsel %vm324, %v739, %v743
        %v746 = vshrl.u32 %v274, 16
        %v748 = vrot.slane %v746, 4
        %v749 = vshll.u32 %v274, 16
        %v751 = vrot.slane %v749, 5
        %v752 = vor.u32 %v748, %v751
        %v753 = vrot.slane %v752, 4
        %v755 = vshll.u32 %v275, 16
        %v757 = vrot.slane %v755, 5
        %v758 = vsel %vm324, %v753, %v757
        %v760 = vshrl.u32 %v276, 16
        %v762 = vrot.slane %v760, 4
        %v763 = vshll.u32 %v276, 16
        %v765 = vrot.slane %v763, 5
        %v766 = vor.u32 %v762, %v765
        %v767 = vrot.slane %v766, 4
        %v769 = vshll.u32 %v277, 16
        %v771 = vrot.slane %v769, 5
        %v772 = vsel %vm324, %v767, %v771
        %vm837 = vcmask 1042432
        %vm838 = vcmask 1046532
        %vm839 = vmor %vm837, %vm838
        %v840 = vrot.slane %v202, 5
        %v841 = vrot.slane %v840, 4
        %v842 = vrot.slane %v203, 5
        %v843 = vsel %vm839, %v841, %v842
        %v844 = vrot.slane %v204, 5
        %v845 = vrot.slane %v844, 4
        %v846 = vrot.slane %v205, 5
        %v847 = vsel %vm839, %v845, %v846
        %v848 = vrot.slane %v206, 5
        %v849 = vrot.slane %v848, 4
        %v850 = vrot.slane %v207, 5
        %v851 = vsel %vm839, %v849, %v850
        %v852 = vrot.slane %v208, 5
        %v853 = vrot.slane %v852, 4
        %v854 = vrot.slane %v209, 5
        %v855 = vsel %vm839, %v853, %v854
        %v856 = vrot.slane %v210, 5
        %v857 = vrot.slane %v856, 4
        %v858 = vrot.slane %v211, 5
        %v859 = vsel %vm839, %v857, %v858
        %v860 = vrot.slane %v212, 5
        %v861 = vrot.slane %v860, 4
        %v862 = vrot.slane %v213, 5
        %v863 = vsel %vm839, %v861, %v862
        %v864 = vrot.slane %v214, 5
        %v865 = vrot.slane %v864, 4
        %v866 = vrot.slane %v215, 5
        %v867 = vsel %vm839, %v865, %v866
        %v868 = vrot.slane %v216, 5
        %v869 = vrot.slane %v868, 4
        %v870 = vrot.slane %v217, 5
        %v871 = vsel %vm839, %v869, %v870
        %v872 = vrot.slane %v222, 5
        %v873 = vrot.slane %v872, 4
        %v874 = vrot.slane %v223, 5
        %v875 = vsel %vm839, %v873, %v874
        %v876 = vrot.slane %v224, 5
        %v877 = vrot.slane %v876, 4
        %v878 = vrot.slane %v225, 5
        %v879 = vsel %vm839, %v877, %v878
        %v880 = vrot.slane %v226, 5
        %v881 = vrot.slane %v880, 4
        %v882 = vrot.slane %v227, 5
        %v883 = vsel %vm839, %v881, %v882
        %v884 = vrot.slane %v228, 5
        %v885 = vrot.slane %v884, 4
        %v886 = vrot.slane %v229, 5
        %v887 = vsel %vm839, %v885, %v886
        %v888 = vrot.slane %v230, 5
        %v889 = vrot.slane %v888, 4
        %v890 = vrot.slane %v231, 5
        %v891 = vsel %vm839, %v889, %v890
        %v892 = vrot.slane %v232, 5
        %v893 = vrot.slane %v892, 4
        %v894 = vrot.slane %v233, 5
        %v895 = vsel %vm839, %v893, %v894
        %v896 = vrot.slane %v234, 5
        %v897 = vrot.slane %v896, 4
        %v898 = vrot.slane %v235, 5
        %v899 = vsel %vm839, %v897, %v898
        %v900 = vrot.slane %v236, 5
        %v901 = vrot.slane %v900, 4
        %v902 = vrot.slane %v237, 5
        %v903 = vsel %vm839, %v901, %v902
        %v904 = vrot.slane %v242, 5
        %v905 = vrot.slane %v904, 4
        %v906 = vrot.slane %v243, 5
        %v907 = vsel %vm839, %v905, %v906
        %v908 = vrot.slane %v244, 5
        %v909 = vrot.slane %v908, 4
        %v910 = vrot.slane %v245, 5
        %v911 = vsel %vm839, %v909, %v910
        %v912 = vrot.slane %v246, 5
        %v913 = vrot.slane %v912, 4
        %v914 = vrot.slane %v247, 5
        %v915 = vsel %vm839, %v913, %v914
        %v916 = vrot.slane %v248, 5
        %v917 = vrot.slane %v916, 4
        %v918 = vrot.slane %v249, 5
        %v919 = vsel %vm839, %v917, %v918
        %v920 = vrot.slane %v250, 5
        %v921 = vrot.slane %v920, 4
        %v922 = vrot.slane %v251, 5
        %v923 = vsel %vm839, %v921, %v922
        %v924 = vrot.slane %v252, 5
        %v925 = vrot.slane %v924, 4
        %v926 = vrot.slane %v253, 5
        %v927 = vsel %vm839, %v925, %v926
        %v928 = vrot.slane %v254, 5
        %v929 = vrot.slane %v928, 4
        %v930 = vrot.slane %v255, 5
        %v931 = vsel %vm839, %v929, %v930
        %v932 = vrot.slane %v256, 5
        %v933 = vrot.slane %v932, 4
        %v934 = vrot.slane %v257, 5
        %v935 = vsel %vm839, %v933, %v934
        %v936 = vrot.slane %v262, 5
        %v937 = vrot.slane %v936, 4
        %v938 = vrot.slane %v263, 5
        %v939 = vsel %vm839, %v937, %v938
        %v940 = vrot.slane %v264, 5
        %v941 = vrot.slane %v940, 4
        %v942 = vrot.slane %v265, 5
        %v943 = vsel %vm839, %v941, %v942
        %v944 = vrot.slane %v266, 5
        %v945 = vrot.slane %v944, 4
        %v946 = vrot.slane %v267, 5
        %v947 = vsel %vm839, %v945, %v946
        %v948 = vrot.slane %v268, 5
        %v949 = vrot.slane %v948, 4
        %v950 = vrot.slane %v269, 5
        %v951 = vsel %vm839, %v949, %v950
        %v952 = vrot.slane %v270, 5
        %v953 = vrot.slane %v952, 4
        %v954 = vrot.slane %v271, 5
        %v955 = vsel %vm839, %v953, %v954
        %v956 = vrot.slane %v272, 5
        %v957 = vrot.slane %v956, 4
        %v958 = vrot.slane %v273, 5
        %v959 = vsel %vm839, %v957, %v958
        %v960 = vrot.slane %v274, 5
        %v961 = vrot.slane %v960, 4
        %v962 = vrot.slane %v275, 5
        %v963 = vsel %vm839, %v961, %v962
        %v964 = vrot.slane %v276, 5
        %v965 = vrot.slane %v964, 4
        %v966 = vrot.slane %v277, 5
        %v967 = vsel %vm839, %v965, %v966
        %v969 = vshrl.u32 %v218, 16
        %v971 = vrot.slane %v969, 4
        %v972 = vshll.u32 %v218, 16
        %v974 = vrot.slane %v972, 5
        %v975 = vor.u32 %v971, %v974
        %v976 = vrot.slane %v975, 4
        %v978 = vshll.u32 %v219, 16
        %v980 = vrot.slane %v978, 5
        %v981 = vsel %vm324, %v976, %v980
        %v983 = vshrl.u32 %v238, 16
        %v985 = vrot.slane %v983, 4
        %v986 = vshll.u32 %v238, 16
        %v988 = vrot.slane %v986, 5
        %v989 = vor.u32 %v985, %v988
        %v990 = vrot.slane %v989, 4
        %v992 = vshll.u32 %v239, 16
        %v994 = vrot.slane %v992, 5
        %v995 = vsel %vm324, %v990, %v994
        %v997 = vshrl.u32 %v258, 16
        %v999 = vrot.slane %v997, 4
        %v1000 = vshll.u32 %v258, 16
        %v1002 = vrot.slane %v1000, 5
        %v1003 = vor.u32 %v999, %v1002
        %v1004 = vrot.slane %v1003, 4
        %v1006 = vshll.u32 %v259, 16
        %v1008 = vrot.slane %v1006, 5
        %v1009 = vsel %vm324, %v1004, %v1008
        %v1011 = vshrl.u32 %v278, 16
        %v1013 = vrot.slane %v1011, 4
        %v1014 = vshll.u32 %v278, 16
        %v1016 = vrot.slane %v1014, 5
        %v1017 = vor.u32 %v1013, %v1016
        %v1018 = vrot.slane %v1017, 4
        %v1020 = vshll.u32 %v279, 16
        %v1022 = vrot.slane %v1020, 5
        %v1023 = vsel %vm324, %v1018, %v1022
        %v1032 = vrot.slane %v218, 5
        %v1033 = vrot.slane %v1032, 4
        %v1034 = vrot.slane %v219, 5
        %v1035 = vsel %vm839, %v1033, %v1034
        %v1036 = vrot.slane %v238, 5
        %v1037 = vrot.slane %v1036, 4
        %v1038 = vrot.slane %v239, 5
        %v1039 = vsel %vm839, %v1037, %v1038
        %v1040 = vrot.slane %v258, 5
        %v1041 = vrot.slane %v1040, 4
        %v1042 = vrot.slane %v259, 5
        %v1043 = vsel %vm839, %v1041, %v1042
        %v1044 = vrot.slane %v278, 5
        %v1045 = vrot.slane %v1044, 4
        %v1046 = vrot.slane %v279, 5
        %v1047 = vsel %vm839, %v1045, %v1046
        %v1049 = vshrl.u32 %v220, 16
        %v1051 = vrot.slane %v1049, 4
        %v1052 = vshll.u32 %v220, 16
        %v1054 = vrot.slane %v1052, 5
        %v1055 = vor.u32 %v1051, %v1054
        %v1056 = vrot.slane %v1055, 4
        %v1058 = vshll.u32 %v221, 16
        %v1060 = vrot.slane %v1058, 5
        %v1061 = vsel %vm324, %v1056, %v1060
        %v1063 = vshrl.u32 %v240, 16
        %v1065 = vrot.slane %v1063, 4
        %v1066 = vshll.u32 %v240, 16
        %v1068 = vrot.slane %v1066, 5
        %v1069 = vor.u32 %v1065, %v1068
        %v1070 = vrot.slane %v1069, 4
        %v1072 = vshll.u32 %v241, 16
        %v1074 = vrot.slane %v1072, 5
        %v1075 = vsel %vm324, %v1070, %v1074
        %v1077 = vshrl.u32 %v260, 16
        %v1079 = vrot.slane %v1077, 4
        %v1080 = vshll.u32 %v260, 16
        %v1082 = vrot.slane %v1080, 5
        %v1083 = vor.u32 %v1079, %v1082
        %v1084 = vrot.slane %v1083, 4
        %v1086 = vshll.u32 %v261, 16
        %v1088 = vrot.slane %v1086, 5
        %v1089 = vsel %vm324, %v1084, %v1088
        %v1091 = vshrl.u32 %v280, 16
        %v1093 = vrot.slane %v1091, 4
        %v1094 = vshll.u32 %v280, 16
        %v1096 = vrot.slane %v1094, 5
        %v1097 = vor.u32 %v1093, %v1096
        %v1098 = vrot.slane %v1097, 4
        %v1100 = vshll.u32 %v281, 16
        %v1102 = vrot.slane %v1100, 5
        %v1103 = vsel %vm324, %v1098, %v1102
        %v1112 = vrot.slane %v220, 5
        %v1113 = vrot.slane %v1112, 4
        %v1114 = vrot.slane %v221, 5
        %v1115 = vsel %vm839, %v1113, %v1114
        %v1116 = vrot.slane %v240, 5
        %v1117 = vrot.slane %v1116, 4
        %v1118 = vrot.slane %v241, 5
        %v1119 = vsel %vm839, %v1117, %v1118
        %v1120 = vrot.slane %v260, 5
        %v1121 = vrot.slane %v1120, 4
        %v1122 = vrot.slane %v261, 5
        %v1123 = vsel %vm839, %v1121, %v1122
        %v1124 = vrot.slane %v280, 5
        %v1125 = vrot.slane %v1124, 4
        %v1126 = vrot.slane %v281, 5
        %v1127 = vsel %vm839, %v1125, %v1126
        %v1129 = vshrl.u32 %v282, 16
        %v1131 = vrot.slane %v1129, 4
        %v1132 = vshll.u32 %v282, 16
        %v1134 = vrot.slane %v1132, 5
        %v1135 = vor.u32 %v1131, %v1134
        %v1136 = vrot.slane %v1135, 4
        %v1138 = vshll.u32 %v283, 16
        %v1140 = vrot.slane %v1138, 5
        %v1141 = vsel %vm324, %v1136, %v1140
        %v1143 = vshrl.u32 %v284, 16
        %v1145 = vrot.slane %v1143, 4
        %v1146 = vshll.u32 %v284, 16
        %v1148 = vrot.slane %v1146, 5
        %v1149 = vor.u32 %v1145, %v1148
        %v1150 = vrot.slane %v1149, 4
        %v1152 = vshll.u32 %v285, 16
        %v1154 = vrot.slane %v1152, 5
        %v1155 = vsel %vm324, %v1150, %v1154
        %v1157 = vshrl.u32 %v286, 16
        %v1159 = vrot.slane %v1157, 4
        %v1160 = vshll.u32 %v286, 16
        %v1162 = vrot.slane %v1160, 5
        %v1163 = vor.u32 %v1159, %v1162
        %v1164 = vrot.slane %v1163, 4
        %v1166 = vshll.u32 %v287, 16
        %v1168 = vrot.slane %v1166, 5
        %v1169 = vsel %vm324, %v1164, %v1168
        %v1171 = vshrl.u32 %v288, 16
        %v1173 = vrot.slane %v1171, 4
        %v1174 = vshll.u32 %v288, 16
        %v1176 = vrot.slane %v1174, 5
        %v1177 = vor.u32 %v1173, %v1176
        %v1178 = vrot.slane %v1177, 4
        %v1180 = vshll.u32 %v289, 16
        %v1182 = vrot.slane %v1180, 5
        %v1183 = vsel %vm324, %v1178, %v1182
        %v1185 = vshrl.u32 %v290, 16
        %v1187 = vrot.slane %v1185, 4
        %v1188 = vshll.u32 %v290, 16
        %v1190 = vrot.slane %v1188, 5
        %v1191 = vor.u32 %v1187, %v1190
        %v1192 = vrot.slane %v1191, 4
        %v1194 = vshll.u32 %v291, 16
        %v1196 = vrot.slane %v1194, 5
        %v1197 = vsel %vm324, %v1192, %v1196
        %v1199 = vshrl.u32 %v292, 16
        %v1201 = vrot.slane %v1199, 4
        %v1202 = vshll.u32 %v292, 16
        %v1204 = vrot.slane %v1202, 5
        %v1205 = vor.u32 %v1201, %v1204
        %v1206 = vrot.slane %v1205, 4
        %v1208 = vshll.u32 %v293, 16
        %v1210 = vrot.slane %v1208, 5
        %v1211 = vsel %vm324, %v1206, %v1210
        %v1213 = vshrl.u32 %v294, 16
        %v1215 = vrot.slane %v1213, 4
        %v1216 = vshll.u32 %v294, 16
        %v1218 = vrot.slane %v1216, 5
        %v1219 = vor.u32 %v1215, %v1218
        %v1220 = vrot.slane %v1219, 4
        %v1222 = vshll.u32 %v295, 16
        %v1224 = vrot.slane %v1222, 5
        %v1225 = vsel %vm324, %v1220, %v1224
        %v1227 = vshrl.u32 %v296, 16
        %v1229 = vrot.slane %v1227, 4
        %v1230 = vshll.u32 %v296, 16
        %v1232 = vrot.slane %v1230, 5
        %v1233 = vor.u32 %v1229, %v1232
        %v1234 = vrot.slane %v1233, 4
        %v1236 = vshll.u32 %v297, 16
        %v1238 = vrot.slane %v1236, 5
        %v1239 = vsel %vm324, %v1234, %v1238
        %v1256 = vrot.slane %v282, 5
        %v1257 = vrot.slane %v1256, 4
        %v1258 = vrot.slane %v283, 5
        %v1259 = vsel %vm839, %v1257, %v1258
        %v1260 = vrot.slane %v284, 5
        %v1261 = vrot.slane %v1260, 4
        %v1262 = vrot.slane %v285, 5
        %v1263 = vsel %vm839, %v1261, %v1262
        %v1264 = vrot.slane %v286, 5
        %v1265 = vrot.slane %v1264, 4
        %v1266 = vrot.slane %v287, 5
        %v1267 = vsel %vm839, %v1265, %v1266
        %v1268 = vrot.slane %v288, 5
        %v1269 = vrot.slane %v1268, 4
        %v1270 = vrot.slane %v289, 5
        %v1271 = vsel %vm839, %v1269, %v1270
        %v1272 = vrot.slane %v290, 5
        %v1273 = vrot.slane %v1272, 4
        %v1274 = vrot.slane %v291, 5
        %v1275 = vsel %vm839, %v1273, %v1274
        %v1276 = vrot.slane %v292, 5
        %v1277 = vrot.slane %v1276, 4
        %v1278 = vrot.slane %v293, 5
        %v1279 = vsel %vm839, %v1277, %v1278
        %v1280 = vrot.slane %v294, 5
        %v1281 = vrot.slane %v1280, 4
        %v1282 = vrot.slane %v295, 5
        %v1283 = vsel %vm839, %v1281, %v1282
        %v1284 = vrot.slane %v296, 5
        %v1285 = vrot.slane %v1284, 4
        %v1286 = vrot.slane %v297, 5
        %v1287 = vsel %vm839, %v1285, %v1286
        %v1289 = vshrl.u32 %v298, 16
        %v1291 = vrot.slane %v1289, 4
        %v1292 = vshll.u32 %v298, 16
        %v1294 = vrot.slane %v1292, 5
        %v1295 = vor.u32 %v1291, %v1294
        %v1296 = vrot.slane %v1295, 4
        %v1298 = vshll.u32 %v299, 16
        %v1300 = vrot.slane %v1298, 5
        %v1301 = vsel %vm324, %v1296, %v1300
        %v1304 = vrot.slane %v298, 5
        %v1305 = vrot.slane %v1304, 4
        %v1306 = vrot.slane %v299, 5
        %v1307 = vsel %vm839, %v1305, %v1306
        %v1309 = vshrl.u32 %v300, 16
        %v1311 = vrot.slane %v1309, 4
        %v1312 = vshll.u32 %v300, 16
        %v1314 = vrot.slane %v1312, 5
        %v1315 = vor.u32 %v1311, %v1314
        %v1316 = vrot.slane %v1315, 4
        %v1318 = vshll.u32 %v301, 16
        %v1320 = vrot.slane %v1318, 5
        %v1321 = vsel %vm324, %v1316, %v1320
        %v1324 = vrot.slane %v300, 5
        %v1325 = vrot.slane %v1324, 4
        %v1326 = vrot.slane %v301, 5
        %v1327 = vsel %vm839, %v1325, %v1326
        %v1329 = vshrl.u32 %v302, 16
        %v1331 = vrot.slane %v1329, 4
        %v1332 = vshll.u32 %v302, 16
        %v1334 = vrot.slane %v1332, 5
        %v1335 = vor.u32 %v1331, %v1334
        %v1336 = vrot.slane %v1335, 4
        %v1338 = vshll.u32 %v303, 16
        %v1340 = vrot.slane %v1338, 5
        %v1341 = vsel %vm324, %v1336, %v1340
        %v1343 = vshrl.u32 %v304, 16
        %v1345 = vrot.slane %v1343, 4
        %v1346 = vshll.u32 %v304, 16
        %v1348 = vrot.slane %v1346, 5
        %v1349 = vor.u32 %v1345, %v1348
        %v1350 = vrot.slane %v1349, 4
        %v1352 = vshll.u32 %v305, 16
        %v1354 = vrot.slane %v1352, 5
        %v1355 = vsel %vm324, %v1350, %v1354
        %v1357 = vshrl.u32 %v306, 16
        %v1359 = vrot.slane %v1357, 4
        %v1360 = vshll.u32 %v306, 16
        %v1362 = vrot.slane %v1360, 5
        %v1363 = vor.u32 %v1359, %v1362
        %v1364 = vrot.slane %v1363, 4
        %v1366 = vshll.u32 %v307, 16
        %v1368 = vrot.slane %v1366, 5
        %v1369 = vsel %vm324, %v1364, %v1368
        %v1371 = vshrl.u32 %v308, 16
        %v1373 = vrot.slane %v1371, 4
        %v1374 = vshll.u32 %v308, 16
        %v1376 = vrot.slane %v1374, 5
        %v1377 = vor.u32 %v1373, %v1376
        %v1378 = vrot.slane %v1377, 4
        %v1380 = vshll.u32 %v309, 16
        %v1382 = vrot.slane %v1380, 5
        %v1383 = vsel %vm324, %v1378, %v1382
        %v1385 = vshrl.u32 %v310, 16
        %v1387 = vrot.slane %v1385, 4
        %v1388 = vshll.u32 %v310, 16
        %v1390 = vrot.slane %v1388, 5
        %v1391 = vor.u32 %v1387, %v1390
        %v1392 = vrot.slane %v1391, 4
        %v1394 = vshll.u32 %v311, 16
        %v1396 = vrot.slane %v1394, 5
        %v1397 = vsel %vm324, %v1392, %v1396
        %v1399 = vshrl.u32 %v312, 16
        %v1401 = vrot.slane %v1399, 4
        %v1402 = vshll.u32 %v312, 16
        %v1404 = vrot.slane %v1402, 5
        %v1405 = vor.u32 %v1401, %v1404
        %v1406 = vrot.slane %v1405, 4
        %v1408 = vshll.u32 %v313, 16
        %v1410 = vrot.slane %v1408, 5
        %v1411 = vsel %vm324, %v1406, %v1410
        %v1413 = vshrl.u32 %v314, 16
        %v1415 = vrot.slane %v1413, 4
        %v1416 = vshll.u32 %v314, 16
        %v1418 = vrot.slane %v1416, 5
        %v1419 = vor.u32 %v1415, %v1418
        %v1420 = vrot.slane %v1419, 4
        %v1422 = vshll.u32 %v315, 16
        %v1424 = vrot.slane %v1422, 5
        %v1425 = vsel %vm324, %v1420, %v1424
        %v1427 = vshrl.u32 %v316, 16
        %v1429 = vrot.slane %v1427, 4
        %v1430 = vshll.u32 %v316, 16
        %v1432 = vrot.slane %v1430, 5
        %v1433 = vor.u32 %v1429, %v1432
        %v1434 = vrot.slane %v1433, 4
        %v1436 = vshll.u32 %v317, 16
        %v1438 = vrot.slane %v1436, 5
        %v1439 = vsel %vm324, %v1434, %v1438
        %v1456 = vrot.slane %v302, 5
        %v1457 = vrot.slane %v1456, 4
        %v1458 = vrot.slane %v303, 5
        %v1459 = vsel %vm839, %v1457, %v1458
        %v1460 = vrot.slane %v304, 5
        %v1461 = vrot.slane %v1460, 4
        %v1462 = vrot.slane %v305, 5
        %v1463 = vsel %vm839, %v1461, %v1462
        %v1464 = vrot.slane %v306, 5
        %v1465 = vrot.slane %v1464, 4
        %v1466 = vrot.slane %v307, 5
        %v1467 = vsel %vm839, %v1465, %v1466
        %v1468 = vrot.slane %v308, 5
        %v1469 = vrot.slane %v1468, 4
        %v1470 = vrot.slane %v309, 5
        %v1471 = vsel %vm839, %v1469, %v1470
        %v1472 = vrot.slane %v310, 5
        %v1473 = vrot.slane %v1472, 4
        %v1474 = vrot.slane %v311, 5
        %v1475 = vsel %vm839, %v1473, %v1474
        %v1476 = vrot.slane %v312, 5
        %v1477 = vrot.slane %v1476, 4
        %v1478 = vrot.slane %v313, 5
        %v1479 = vsel %vm839, %v1477, %v1478
        %v1480 = vrot.slane %v314, 5
        %v1481 = vrot.slane %v1480, 4
        %v1482 = vrot.slane %v315, 5
        %v1483 = vsel %vm839, %v1481, %v1482
        %v1484 = vrot.slane %v316, 5
        %v1485 = vrot.slane %v1484, 4
        %v1486 = vrot.slane %v317, 5
        %v1487 = vsel %vm839, %v1485, %v1486
        %v1489 = vshrl.u32 %v318, 16
        %v1491 = vrot.slane %v1489, 4
        %v1492 = vshll.u32 %v318, 16
        %v1494 = vrot.slane %v1492, 5
        %v1495 = vor.u32 %v1491, %v1494
        %v1496 = vrot.slane %v1495, 4
        %v1498 = vshll.u32 %v319, 16
        %v1500 = vrot.slane %v1498, 5
        %v1501 = vsel %vm324, %v1496, %v1500
        %v1504 = vrot.slane %v318, 5
        %v1505 = vrot.slane %v1504, 4
        %v1506 = vrot.slane %v319, 5
        %v1507 = vsel %vm839, %v1505, %v1506
        %v1509 = vshrl.u32 %v320, 16
        %v1511 = vrot.slane %v1509, 4
        %v1512 = vshll.u32 %v320, 16
        %v1514 = vrot.slane %v1512, 5
        %v1515 = vor.u32 %v1511, %v1514
        %v1516 = vrot.slane %v1515, 4
        %v1518 = vshll.u32 %v321, 16
        %v1520 = vrot.slane %v1518, 5
        %v1521 = vsel %vm324, %v1516, %v1520
        %v1524 = vrot.slane %v320, 5
        %v1525 = vrot.slane %v1524, 4
        %v1526 = vrot.slane %v321, 5
        %v1527 = vsel %vm839, %v1525, %v1526
        %v1528 = vunpack.c.l.b16 %v202
        %v1529 = vunpack.c.l.b16 %v204
        %v1530 = vunpack.c.l.b16 %v206
        %v1531 = vunpack.c.l.b16 %v208
        %v1532 = vunpack.c.l.b16 %v210
        %v1533 = vunpack.c.l.b16 %v212
        %v1534 = vunpack.c.l.b16 %v214
        %v1535 = vunpack.c.l.b16 %v216
        %v1536 = vunpack.c.l.b16 %v222
        %v1537 = vunpack.c.l.b16 %v224
        %v1538 = vunpack.c.l.b16 %v226
        %v1539 = vunpack.c.l.b16 %v228
        %v1540 = vunpack.c.l.b16 %v230
        %v1541 = vunpack.c.l.b16 %v232
        %v1542 = vunpack.c.l.b16 %v234
        %v1543 = vunpack.c.l.b16 %v236
        %v1544 = vunpack.c.l.b16 %v242
        %v1545 = vunpack.c.l.b16 %v244
        %v1546 = vunpack.c.l.b16 %v246
        %v1547 = vunpack.c.l.b16 %v248
        %v1548 = vunpack.c.l.b16 %v250
        %v1549 = vunpack.c.l.b16 %v252
        %v1550 = vunpack.c.l.b16 %v254
        %v1551 = vunpack.c.l.b16 %v256
        %v1552 = vunpack.c.l.b16 %v262
        %v1553 = vunpack.c.l.b16 %v264
        %v1554 = vunpack.c.l.b16 %v266
        %v1555 = vunpack.c.l.b16 %v268
        %v1556 = vunpack.c.l.b16 %v270
        %v1557 = vunpack.c.l.b16 %v272
        %v1558 = vunpack.c.l.b16 %v274
        %v1559 = vunpack.c.l.b16 %v276
        %v1560 = vpack.c.b16 %v1529, %v1528
        %v1561 = vpack.c.b16 %v1531, %v1530
        %v1562 = vpack.c.b16 %v1533, %v1532
        %v1563 = vpack.c.b16 %v1535, %v1534
        %v1564 = vpack.c.b16 %v1537, %v1536
        %v1565 = vpack.c.b16 %v1539, %v1538
        %v1566 = vpack.c.b16 %v1541, %v1540
        %v1567 = vpack.c.b16 %v1543, %v1542
        %v1568 = vpack.c.b16 %v1545, %v1544
        %v1569 = vpack.c.b16 %v1547, %v1546
        %v1570 = vpack.c.b16 %v1549, %v1548
        %v1571 = vpack.c.b16 %v1551, %v1550
        %v1572 = vpack.c.b16 %v1553, %v1552
        %v1573 = vpack.c.b16 %v1555, %v1554
        %v1574 = vpack.c.b16 %v1557, %v1556
        %v1575 = vpack.c.b16 %v1559, %v1558
        %v1576 = vunpack.c.l.b16 %v338
        %v1577 = vunpack.c.l.b16 %v352
        %v1578 = vunpack.c.l.b16 %v366
        %v1579 = vunpack.c.l.b16 %v380
        %v1580 = vunpack.c.l.b16 %v394
        %v1581 = vunpack.c.l.b16 %v408
        %v1582 = vunpack.c.l.b16 %v422
        %v1583 = vunpack.c.l.b16 %v436
        %v1584 = vunpack.c.l.b16 %v450
        %v1585 = vunpack.c.l.b16 %v464
        %v1586 = vunpack.c.l.b16 %v478
        %v1587 = vunpack.c.l.b16 %v492
        %v1588 = vunpack.c.l.b16 %v506
        %v1589 = vunpack.c.l.b16 %v520
        %v1590 = vunpack.c.l.b16 %v534
        %v1591 = vunpack.c.l.b16 %v548
        %v1592 = vunpack.c.l.b16 %v562
        %v1593 = vunpack.c.l.b16 %v576
        %v1594 = vunpack.c.l.b16 %v590
        %v1595 = vunpack.c.l.b16 %v604
        %v1596 = vunpack.c.l.b16 %v618
        %v1597 = vunpack.c.l.b16 %v632
        %v1598 = vunpack.c.l.b16 %v646
        %v1599 = vunpack.c.l.b16 %v660
        %v1600 = vunpack.c.l.b16 %v674
        %v1601 = vunpack.c.l.b16 %v688
        %v1602 = vunpack.c.l.b16 %v702
        %v1603 = vunpack.c.l.b16 %v716
        %v1604 = vunpack.c.l.b16 %v730
        %v1605 = vunpack.c.l.b16 %v744
        %v1606 = vunpack.c.l.b16 %v758
        %v1607 = vunpack.c.l.b16 %v772
        %v1608 = vpack.c.b16 %v1577, %v1576
        %v1609 = vpack.c.b16 %v1579, %v1578
        %v1610 = vpack.c.b16 %v1581, %v1580
        %v1611 = vpack.c.b16 %v1583, %v1582
        %v1612 = vpack.c.b16 %v1585, %v1584
        %v1613 = vpack.c.b16 %v1587, %v1586
        %v1614 = vpack.c.b16 %v1589, %v1588
        %v1615 = vpack.c.b16 %v1591, %v1590
        %v1616 = vpack.c.b16 %v1593, %v1592
        %v1617 = vpack.c.b16 %v1595, %v1594
        %v1618 = vpack.c.b16 %v1597, %v1596
        %v1619 = vpack.c.b16 %v1599, %v1598
        %v1620 = vpack.c.b16 %v1601, %v1600
        %v1621 = vpack.c.b16 %v1603, %v1602
        %v1622 = vpack.c.b16 %v1605, %v1604
        %v1623 = vpack.c.b16 %v1607, %v1606
        %1624 = vrot.lane.b32.xlu0 %v1608, 4
        %v1625 = vpop.permute.xlu0 %1624
        %1626 = vrot.lane.b32.xlu0 %v1609, 4
        %v1627 = vpop.permute.xlu0 %1626
        %1628 = vrot.lane.b32.xlu0 %v1610, 4
        %v1629 = vpop.permute.xlu0 %1628
        %1630 = vrot.lane.b32.xlu0 %v1611, 4
        %v1631 = vpop.permute.xlu0 %1630
        %1632 = vrot.lane.b32.xlu0 %v1612, 4
        %v1633 = vpop.permute.xlu0 %1632
        %1634 = vrot.lane.b32.xlu0 %v1613, 4
        %v1635 = vpop.permute.xlu0 %1634
        %1636 = vrot.lane.b32.xlu0 %v1614, 4
        %v1637 = vpop.permute.xlu0 %1636
        %1638 = vrot.lane.b32.xlu0 %v1615, 4
        %v1639 = vpop.permute.xlu0 %1638
        %1640 = vrot.lane.b32.xlu0 %v1616, 4
        %v1641 = vpop.permute.xlu0 %1640
        %1642 = vrot.lane.b32.xlu0 %v1617, 4
        %v1643 = vpop.permute.xlu0 %1642
        %1644 = vrot.lane.b32.xlu0 %v1618, 4
        %v1645 = vpop.permute.xlu0 %1644
        %1646 = vrot.lane.b32.xlu0 %v1619, 4
        %v1647 = vpop.permute.xlu0 %1646
        %1648 = vrot.lane.b32.xlu0 %v1620, 4
        %v1649 = vpop.permute.xlu0 %1648
        %1650 = vrot.lane.b32.xlu0 %v1621, 4
        %v1651 = vpop.permute.xlu0 %1650
        %1652 = vrot.lane.b32.xlu0 %v1622, 4
        %v1653 = vpop.permute.xlu0 %1652
        %1654 = vrot.lane.b32.xlu0 %v1623, 4
        %v1655 = vpop.permute.xlu0 %1654
        %v1656 = vunpack.c.l.b16 %v843
        %v1657 = vunpack.c.l.b16 %v847
        %v1658 = vunpack.c.l.b16 %v851
        %v1659 = vunpack.c.l.b16 %v855
        %v1660 = vunpack.c.l.b16 %v859
        %v1661 = vunpack.c.l.b16 %v863
        %v1662 = vunpack.c.l.b16 %v867
        %v1663 = vunpack.c.l.b16 %v871
        %v1664 = vunpack.c.l.b16 %v875
        %v1665 = vunpack.c.l.b16 %v879
        %v1666 = vunpack.c.l.b16 %v883
        %v1667 = vunpack.c.l.b16 %v887
        %v1668 = vunpack.c.l.b16 %v891
        %v1669 = vunpack.c.l.b16 %v895
        %v1670 = vunpack.c.l.b16 %v899
        %v1671 = vunpack.c.l.b16 %v903
        %v1672 = vunpack.c.l.b16 %v907
        %v1673 = vunpack.c.l.b16 %v911
        %v1674 = vunpack.c.l.b16 %v915
        %v1675 = vunpack.c.l.b16 %v919
        %v1676 = vunpack.c.l.b16 %v923
        %v1677 = vunpack.c.l.b16 %v927
        %v1678 = vunpack.c.l.b16 %v931
        %v1679 = vunpack.c.l.b16 %v935
        %v1680 = vunpack.c.l.b16 %v939
        %v1681 = vunpack.c.l.b16 %v943
        %v1682 = vunpack.c.l.b16 %v947
        %v1683 = vunpack.c.l.b16 %v951
        %v1684 = vunpack.c.l.b16 %v955
        %v1685 = vunpack.c.l.b16 %v959
        %v1686 = vunpack.c.l.b16 %v963
        %v1687 = vunpack.c.l.b16 %v967
        %v1688 = vpack.c.b16 %v1657, %v1656
        %v1689 = vpack.c.b16 %v1659, %v1658
        %v1690 = vpack.c.b16 %v1661, %v1660
        %v1691 = vpack.c.b16 %v1663, %v1662
        %v1692 = vpack.c.b16 %v1665, %v1664
        %v1693 = vpack.c.b16 %v1667, %v1666
        %v1694 = vpack.c.b16 %v1669, %v1668
        %v1695 = vpack.c.b16 %v1671, %v1670
        %v1696 = vpack.c.b16 %v1673, %v1672
        %v1697 = vpack.c.b16 %v1675, %v1674
        %v1698 = vpack.c.b16 %v1677, %v1676
        %v1699 = vpack.c.b16 %v1679, %v1678
        %v1700 = vpack.c.b16 %v1681, %v1680
        %v1701 = vpack.c.b16 %v1683, %v1682
        %v1702 = vpack.c.b16 %v1685, %v1684
        %v1703 = vpack.c.b16 %v1687, %v1686
        %1704 = vrot.lane.b32.xlu0 %v1688, 8
        %v1705 = vpop.permute.xlu0 %1704
        %1706 = vrot.lane.b32.xlu0 %v1689, 8
        %v1707 = vpop.permute.xlu0 %1706
        %1708 = vrot.lane.b32.xlu0 %v1690, 8
        %v1709 = vpop.permute.xlu0 %1708
        %1710 = vrot.lane.b32.xlu0 %v1691, 8
        %v1711 = vpop.permute.xlu0 %1710
        %1712 = vrot.lane.b32.xlu0 %v1692, 8
        %v1713 = vpop.permute.xlu0 %1712
        %1714 = vrot.lane.b32.xlu0 %v1693, 8
        %v1715 = vpop.permute.xlu0 %1714
        %1716 = vrot.lane.b32.xlu0 %v1694, 8
        %v1717 = vpop.permute.xlu0 %1716
        %1718 = vrot.lane.b32.xlu0 %v1695, 8
        %v1719 = vpop.permute.xlu0 %1718
        %1720 = vrot.lane.b32.xlu0 %v1696, 8
        %v1721 = vpop.permute.xlu0 %1720
        %1722 = vrot.lane.b32.xlu0 %v1697, 8
        %v1723 = vpop.permute.xlu0 %1722
        %1724 = vrot.lane.b32.xlu0 %v1698, 8
        %v1725 = vpop.permute.xlu0 %1724
        %1726 = vrot.lane.b32.xlu0 %v1699, 8
        %v1727 = vpop.permute.xlu0 %1726
        %1728 = vrot.lane.b32.xlu0 %v1700, 8
        %v1729 = vpop.permute.xlu0 %1728
        %1730 = vrot.lane.b32.xlu0 %v1701, 8
        %v1731 = vpop.permute.xlu0 %1730
        %1732 = vrot.lane.b32.xlu0 %v1702, 8
        %v1733 = vpop.permute.xlu0 %1732
        %1734 = vrot.lane.b32.xlu0 %v1703, 8
        %v1735 = vpop.permute.xlu0 %1734
        %v1736 = vunpack.c.l.b16 %v218
        %v1737 = vunpack.c.l.b16 %v238
        %v1738 = vunpack.c.l.b16 %v258
        %v1739 = vunpack.c.l.b16 %v278
        %v1740 = vpack.c.b16 %v1530, %v1529
        %v1741 = vpack.c.b16 %v1532, %v1531
        %v1742 = vpack.c.b16 %v1534, %v1533
        %v1743 = vpack.c.b16 %v1736, %v1535
        %v1744 = vpack.c.b16 %v1538, %v1537
        %v1745 = vpack.c.b16 %v1540, %v1539
        %v1746 = vpack.c.b16 %v1542, %v1541
        %v1747 = vpack.c.b16 %v1737, %v1543
        %v1748 = vpack.c.b16 %v1546, %v1545
        %v1749 = vpack.c.b16 %v1548, %v1547
        %v1750 = vpack.c.b16 %v1550, %v1549
        %v1751 = vpack.c.b16 %v1738, %v1551
        %v1752 = vpack.c.b16 %v1554, %v1553
        %v1753 = vpack.c.b16 %v1556, %v1555
        %v1754 = vpack.c.b16 %v1558, %v1557
        %v1755 = vpack.c.b16 %v1739, %v1559
        %1756 = vrot.lane.b32.xlu0 %v1740, 12
        %v1757 = vpop.permute.xlu0 %1756
        %1758 = vrot.lane.b32.xlu0 %v1741, 12
        %v1759 = vpop.permute.xlu0 %1758
        %1760 = vrot.lane.b32.xlu0 %v1742, 12
        %v1761 = vpop.permute.xlu0 %1760
        %1762 = vrot.lane.b32.xlu0 %v1743, 12
        %v1763 = vpop.permute.xlu0 %1762
        %1764 = vrot.lane.b32.xlu0 %v1744, 12
        %v1765 = vpop.permute.xlu0 %1764
        %1766 = vrot.lane.b32.xlu0 %v1745, 12
        %v1767 = vpop.permute.xlu0 %1766
        %1768 = vrot.lane.b32.xlu0 %v1746, 12
        %v1769 = vpop.permute.xlu0 %1768
        %1770 = vrot.lane.b32.xlu0 %v1747, 12
        %v1771 = vpop.permute.xlu0 %1770
        %1772 = vrot.lane.b32.xlu0 %v1748, 12
        %v1773 = vpop.permute.xlu0 %1772
        %1774 = vrot.lane.b32.xlu0 %v1749, 12
        %v1775 = vpop.permute.xlu0 %1774
        %1776 = vrot.lane.b32.xlu0 %v1750, 12
        %v1777 = vpop.permute.xlu0 %1776
        %1778 = vrot.lane.b32.xlu0 %v1751, 12
        %v1779 = vpop.permute.xlu0 %1778
        %1780 = vrot.lane.b32.xlu0 %v1752, 12
        %v1781 = vpop.permute.xlu0 %1780
        %1782 = vrot.lane.b32.xlu0 %v1753, 12
        %v1783 = vpop.permute.xlu0 %1782
        %1784 = vrot.lane.b32.xlu0 %v1754, 12
        %v1785 = vpop.permute.xlu0 %1784
        %1786 = vrot.lane.b32.xlu0 %v1755, 12
        %v1787 = vpop.permute.xlu0 %1786
        %v1788 = vunpack.c.l.b16 %v981
        %v1789 = vunpack.c.l.b16 %v995
        %v1790 = vunpack.c.l.b16 %v1009
        %v1791 = vunpack.c.l.b16 %v1023
        %v1792 = vpack.c.b16 %v1578, %v1577
        %v1793 = vpack.c.b16 %v1580, %v1579
        %v1794 = vpack.c.b16 %v1582, %v1581
        %v1795 = vpack.c.b16 %v1788, %v1583
        %v1796 = vpack.c.b16 %v1586, %v1585
        %v1797 = vpack.c.b16 %v1588, %v1587
        %v1798 = vpack.c.b16 %v1590, %v1589
        %v1799 = vpack.c.b16 %v1789, %v1591
        %v1800 = vpack.c.b16 %v1594, %v1593
        %v1801 = vpack.c.b16 %v1596, %v1595
        %v1802 = vpack.c.b16 %v1598, %v1597
        %v1803 = vpack.c.b16 %v1790, %v1599
        %v1804 = vpack.c.b16 %v1602, %v1601
        %v1805 = vpack.c.b16 %v1604, %v1603
        %v1806 = vpack.c.b16 %v1606, %v1605
        %v1807 = vpack.c.b16 %v1791, %v1607
        %1808 = vrot.lane.b32.xlu0 %v1792, 16
        %v1809 = vpop.permute.xlu0 %1808
        %1810 = vrot.lane.b32.xlu0 %v1793, 16
        %v1811 = vpop.permute.xlu0 %1810
        %1812 = vrot.lane.b32.xlu0 %v1794, 16
        %v1813 = vpop.permute.xlu0 %1812
        %1814 = vrot.lane.b32.xlu0 %v1795, 16
        %v1815 = vpop.permute.xlu0 %1814
        %1816 = vrot.lane.b32.xlu0 %v1796, 16
        %v1817 = vpop.permute.xlu0 %1816
        %1818 = vrot.lane.b32.xlu0 %v1797, 16
        %v1819 = vpop.permute.xlu0 %1818
        %1820 = vrot.lane.b32.xlu0 %v1798, 16
        %v1821 = vpop.permute.xlu0 %1820
        %1822 = vrot.lane.b32.xlu0 %v1799, 16
        %v1823 = vpop.permute.xlu0 %1822
        %1824 = vrot.lane.b32.xlu0 %v1800, 16
        %v1825 = vpop.permute.xlu0 %1824
        %1826 = vrot.lane.b32.xlu0 %v1801, 16
        %v1827 = vpop.permute.xlu0 %1826
        %1828 = vrot.lane.b32.xlu0 %v1802, 16
        %v1829 = vpop.permute.xlu0 %1828
        %1830 = vrot.lane.b32.xlu0 %v1803, 16
        %v1831 = vpop.permute.xlu0 %1830
        %1832 = vrot.lane.b32.xlu0 %v1804, 16
        %v1833 = vpop.permute.xlu0 %1832
        %1834 = vrot.lane.b32.xlu0 %v1805, 16
        %v1835 = vpop.permute.xlu0 %1834
        %1836 = vrot.lane.b32.xlu0 %v1806, 16
        %v1837 = vpop.permute.xlu0 %1836
        %1838 = vrot.lane.b32.xlu0 %v1807, 16
        %v1839 = vpop.permute.xlu0 %1838
        %v1840 = vunpack.c.l.b16 %v1035
        %v1841 = vunpack.c.l.b16 %v1039
        %v1842 = vunpack.c.l.b16 %v1043
        %v1843 = vunpack.c.l.b16 %v1047
        %v1844 = vpack.c.b16 %v1658, %v1657
        %v1845 = vpack.c.b16 %v1660, %v1659
        %v1846 = vpack.c.b16 %v1662, %v1661
        %v1847 = vpack.c.b16 %v1840, %v1663
        %v1848 = vpack.c.b16 %v1666, %v1665
        %v1849 = vpack.c.b16 %v1668, %v1667
        %v1850 = vpack.c.b16 %v1670, %v1669
        %v1851 = vpack.c.b16 %v1841, %v1671
        %v1852 = vpack.c.b16 %v1674, %v1673
        %v1853 = vpack.c.b16 %v1676, %v1675
        %v1854 = vpack.c.b16 %v1678, %v1677
        %v1855 = vpack.c.b16 %v1842, %v1679
        %v1856 = vpack.c.b16 %v1682, %v1681
        %v1857 = vpack.c.b16 %v1684, %v1683
        %v1858 = vpack.c.b16 %v1686, %v1685
        %v1859 = vpack.c.b16 %v1843, %v1687
        %1860 = vrot.lane.b32.xlu0 %v1844, 20
        %v1861 = vpop.permute.xlu0 %1860
        %1862 = vrot.lane.b32.xlu0 %v1845, 20
        %v1863 = vpop.permute.xlu0 %1862
        %1864 = vrot.lane.b32.xlu0 %v1846, 20
        %v1865 = vpop.permute.xlu0 %1864
        %1866 = vrot.lane.b32.xlu0 %v1847, 20
        %v1867 = vpop.permute.xlu0 %1866
        %1868 = vrot.lane.b32.xlu0 %v1848, 20
        %v1869 = vpop.permute.xlu0 %1868
        %1870 = vrot.lane.b32.xlu0 %v1849, 20
        %v1871 = vpop.permute.xlu0 %1870
        %1872 = vrot.lane.b32.xlu0 %v1850, 20
        %v1873 = vpop.permute.xlu0 %1872
        %1874 = vrot.lane.b32.xlu0 %v1851, 20
        %v1875 = vpop.permute.xlu0 %1874
        %1876 = vrot.lane.b32.xlu0 %v1852, 20
        %v1877 = vpop.permute.xlu0 %1876
        %1878 = vrot.lane.b32.xlu0 %v1853, 20
        %v1879 = vpop.permute.xlu0 %1878
        %1880 = vrot.lane.b32.xlu0 %v1854, 20
        %v1881 = vpop.permute.xlu0 %1880
        %1882 = vrot.lane.b32.xlu0 %v1855, 20
        %v1883 = vpop.permute.xlu0 %1882
        %1884 = vrot.lane.b32.xlu0 %v1856, 20
        %v1885 = vpop.permute.xlu0 %1884
        %1886 = vrot.lane.b32.xlu0 %v1857, 20
        %v1887 = vpop.permute.xlu0 %1886
        %1888 = vrot.lane.b32.xlu0 %v1858, 20
        %v1889 = vpop.permute.xlu0 %1888
        %1890 = vrot.lane.b32.xlu0 %v1859, 20
        %v1891 = vpop.permute.xlu0 %1890
        %v1892 = vunpack.c.l.b16 %v220
        %v1893 = vunpack.c.l.b16 %v240
        %v1894 = vunpack.c.l.b16 %v260
        %v1895 = vunpack.c.l.b16 %v280
        %v1896 = vpack.c.b16 %v1892, %v1736
        %v1897 = vpack.c.b16 %v1893, %v1737
        %v1898 = vpack.c.b16 %v1894, %v1738
        %v1899 = vpack.c.b16 %v1895, %v1739
        %1900 = vrot.lane.b32.xlu0 %v1561, 24
        %v1901 = vpop.permute.xlu0 %1900
        %1902 = vrot.lane.b32.xlu0 %v1562, 24
        %v1903 = vpop.permute.xlu0 %1902
        %1904 = vrot.lane.b32.xlu0 %v1563, 24
        %v1905 = vpop.permute.xlu0 %1904
        %1906 = vrot.lane.b32.xlu0 %v1896, 24
        %v1907 = vpop.permute.xlu0 %1906
        %1908 = vrot.lane.b32.xlu0 %v1565, 24
        %v1909 = vpop.permute.xlu0 %1908
        %1910 = vrot.lane.b32.xlu0 %v1566, 24
        %v1911 = vpop.permute.xlu0 %1910
        %1912 = vrot.lane.b32.xlu0 %v1567, 24
        %v1913 = vpop.permute.xlu0 %1912
        %1914 = vrot.lane.b32.xlu0 %v1897, 24
        %v1915 = vpop.permute.xlu0 %1914
        %1916 = vrot.lane.b32.xlu0 %v1569, 24
        %v1917 = vpop.permute.xlu0 %1916
        %1918 = vrot.lane.b32.xlu0 %v1570, 24
        %v1919 = vpop.permute.xlu0 %1918
        %1920 = vrot.lane.b32.xlu0 %v1571, 24
        %v1921 = vpop.permute.xlu0 %1920
        %1922 = vrot.lane.b32.xlu0 %v1898, 24
        %v1923 = vpop.permute.xlu0 %1922
        %1924 = vrot.lane.b32.xlu0 %v1573, 24
        %v1925 = vpop.permute.xlu0 %1924
        %1926 = vrot.lane.b32.xlu0 %v1574, 24
        %v1927 = vpop.permute.xlu0 %1926
        %1928 = vrot.lane.b32.xlu0 %v1575, 24
        %v1929 = vpop.permute.xlu0 %1928
        %1930 = vrot.lane.b32.xlu0 %v1899, 24
        %v1931 = vpop.permute.xlu0 %1930
        %v1932 = vunpack.c.l.b16 %v1061
        %v1933 = vunpack.c.l.b16 %v1075
        %v1934 = vunpack.c.l.b16 %v1089
        %v1935 = vunpack.c.l.b16 %v1103
        %v1936 = vpack.c.b16 %v1932, %v1788
        %v1937 = vpack.c.b16 %v1933, %v1789
        %v1938 = vpack.c.b16 %v1934, %v1790
        %v1939 = vpack.c.b16 %v1935, %v1791
        %1940 = vrot.lane.b32.xlu0 %v1609, 28
        %v1941 = vpop.permute.xlu0 %1940
        %1942 = vrot.lane.b32.xlu0 %v1610, 28
        %v1943 = vpop.permute.xlu0 %1942
        %1944 = vrot.lane.b32.xlu0 %v1611, 28
        %v1945 = vpop.permute.xlu0 %1944
        %1946 = vrot.lane.b32.xlu0 %v1936, 28
        %v1947 = vpop.permute.xlu0 %1946
        %1948 = vrot.lane.b32.xlu0 %v1613, 28
        %v1949 = vpop.permute.xlu0 %1948
        %1950 = vrot.lane.b32.xlu0 %v1614, 28
        %v1951 = vpop.permute.xlu0 %1950
        %1952 = vrot.lane.b32.xlu0 %v1615, 28
        %v1953 = vpop.permute.xlu0 %1952
        %1954 = vrot.lane.b32.xlu0 %v1937, 28
        %v1955 = vpop.permute.xlu0 %1954
        %1956 = vrot.lane.b32.xlu0 %v1617, 28
        %v1957 = vpop.permute.xlu0 %1956
        %1958 = vrot.lane.b32.xlu0 %v1618, 28
        %v1959 = vpop.permute.xlu0 %1958
        %1960 = vrot.lane.b32.xlu0 %v1619, 28
        %v1961 = vpop.permute.xlu0 %1960
        %1962 = vrot.lane.b32.xlu0 %v1938, 28
        %v1963 = vpop.permute.xlu0 %1962
        %1964 = vrot.lane.b32.xlu0 %v1621, 28
        %v1965 = vpop.permute.xlu0 %1964
        %1966 = vrot.lane.b32.xlu0 %v1622, 28
        %v1967 = vpop.permute.xlu0 %1966
        %1968 = vrot.lane.b32.xlu0 %v1623, 28
        %v1969 = vpop.permute.xlu0 %1968
        %1970 = vrot.lane.b32.xlu0 %v1939, 28
        %v1971 = vpop.permute.xlu0 %1970
        %v1972 = vunpack.c.l.b16 %v1115
        %v1973 = vunpack.c.l.b16 %v1119
        %v1974 = vunpack.c.l.b16 %v1123
        %v1975 = vunpack.c.l.b16 %v1127
        %v1976 = vpack.c.b16 %v1972, %v1840
        %v1977 = vpack.c.b16 %v1973, %v1841
        %v1978 = vpack.c.b16 %v1974, %v1842
        %v1979 = vpack.c.b16 %v1975, %v1843
        %1980 = vrot.lane.b32.xlu0 %v1689, 32
        %v1981 = vpop.permute.xlu0 %1980
        %1982 = vrot.lane.b32.xlu0 %v1690, 32
        %v1983 = vpop.permute.xlu0 %1982
        %1984 = vrot.lane.b32.xlu0 %v1691, 32
        %v1985 = vpop.permute.xlu0 %1984
        %1986 = vrot.lane.b32.xlu0 %v1976, 32
        %v1987 = vpop.permute.xlu0 %1986
        %1988 = vrot.lane.b32.xlu0 %v1693, 32
        %v1989 = vpop.permute.xlu0 %1988
        %1990 = vrot.lane.b32.xlu0 %v1694, 32
        %v1991 = vpop.permute.xlu0 %1990
        %1992 = vrot.lane.b32.xlu0 %v1695, 32
        %v1993 = vpop.permute.xlu0 %1992
        %1994 = vrot.lane.b32.xlu0 %v1977, 32
        %v1995 = vpop.permute.xlu0 %1994
        %1996 = vrot.lane.b32.xlu0 %v1697, 32
        %v1997 = vpop.permute.xlu0 %1996
        %1998 = vrot.lane.b32.xlu0 %v1698, 32
        %v1999 = vpop.permute.xlu0 %1998
        %2000 = vrot.lane.b32.xlu0 %v1699, 32
        %v2001 = vpop.permute.xlu0 %2000
        %2002 = vrot.lane.b32.xlu0 %v1978, 32
        %v2003 = vpop.permute.xlu0 %2002
        %2004 = vrot.lane.b32.xlu0 %v1701, 32
        %v2005 = vpop.permute.xlu0 %2004
        %2006 = vrot.lane.b32.xlu0 %v1702, 32
        %v2007 = vpop.permute.xlu0 %2006
        %2008 = vrot.lane.b32.xlu0 %v1703, 32
        %v2009 = vpop.permute.xlu0 %2008
        %2010 = vrot.lane.b32.xlu0 %v1979, 32
        %v2011 = vpop.permute.xlu0 %2010
        %v2012 = vunpack.c.l.b16 %v282
        %v2013 = vunpack.c.l.b16 %v284
        %v2014 = vunpack.c.l.b16 %v286
        %v2015 = vunpack.c.l.b16 %v288
        %v2016 = vunpack.c.l.b16 %v290
        %v2017 = vunpack.c.l.b16 %v292
        %v2018 = vunpack.c.l.b16 %v294
        %v2019 = vunpack.c.l.b16 %v296
        %v2020 = vpack.c.b16 %v2013, %v2012
        %v2021 = vpack.c.b16 %v2015, %v2014
        %v2022 = vpack.c.b16 %v2017, %v2016
        %v2023 = vpack.c.b16 %v2019, %v2018
        %2024 = vrot.lane.b32.xlu0 %v1564, 36
        %v2025 = vpop.permute.xlu0 %2024
        %2026 = vrot.lane.b32.xlu0 %v1565, 36
        %v2027 = vpop.permute.xlu0 %2026
        %2028 = vrot.lane.b32.xlu0 %v1566, 36
        %v2029 = vpop.permute.xlu0 %2028
        %2030 = vrot.lane.b32.xlu0 %v1567, 36
        %v2031 = vpop.permute.xlu0 %2030
        %2032 = vrot.lane.b32.xlu0 %v1568, 36
        %v2033 = vpop.permute.xlu0 %2032
        %2034 = vrot.lane.b32.xlu0 %v1569, 36
        %v2035 = vpop.permute.xlu0 %2034
        %2036 = vrot.lane.b32.xlu0 %v1570, 36
        %v2037 = vpop.permute.xlu0 %2036
        %2038 = vrot.lane.b32.xlu0 %v1571, 36
        %v2039 = vpop.permute.xlu0 %2038
        %2040 = vrot.lane.b32.xlu0 %v1572, 36
        %v2041 = vpop.permute.xlu0 %2040
        %2042 = vrot.lane.b32.xlu0 %v1573, 36
        %v2043 = vpop.permute.xlu0 %2042
        %2044 = vrot.lane.b32.xlu0 %v1574, 36
        %v2045 = vpop.permute.xlu0 %2044
        %2046 = vrot.lane.b32.xlu0 %v1575, 36
        %v2047 = vpop.permute.xlu0 %2046
        %2048 = vrot.lane.b32.xlu0 %v2020, 36
        %v2049 = vpop.permute.xlu0 %2048
        %2050 = vrot.lane.b32.xlu0 %v2021, 36
        %v2051 = vpop.permute.xlu0 %2050
        %2052 = vrot.lane.b32.xlu0 %v2022, 36
        %v2053 = vpop.permute.xlu0 %2052
        %2054 = vrot.lane.b32.xlu0 %v2023, 36
        %v2055 = vpop.permute.xlu0 %2054
        %v2056 = vunpack.c.l.b16 %v1141
        %v2057 = vunpack.c.l.b16 %v1155
        %v2058 = vunpack.c.l.b16 %v1169
        %v2059 = vunpack.c.l.b16 %v1183
        %v2060 = vunpack.c.l.b16 %v1197
        %v2061 = vunpack.c.l.b16 %v1211
        %v2062 = vunpack.c.l.b16 %v1225
        %v2063 = vunpack.c.l.b16 %v1239
        %v2064 = vpack.c.b16 %v2057, %v2056
        %v2065 = vpack.c.b16 %v2059, %v2058
        %v2066 = vpack.c.b16 %v2061, %v2060
        %v2067 = vpack.c.b16 %v2063, %v2062
        %2068 = vrot.lane.b32.xlu0 %v1612, 40
        %v2069 = vpop.permute.xlu0 %2068
        %2070 = vrot.lane.b32.xlu0 %v1613, 40
        %v2071 = vpop.permute.xlu0 %2070
        %2072 = vrot.lane.b32.xlu0 %v1614, 40
        %v2073 = vpop.permute.xlu0 %2072
        %2074 = vrot.lane.b32.xlu0 %v1615, 40
        %v2075 = vpop.permute.xlu0 %2074
        %2076 = vrot.lane.b32.xlu0 %v1616, 40
        %v2077 = vpop.permute.xlu0 %2076
        %2078 = vrot.lane.b32.xlu0 %v1617, 40
        %v2079 = vpop.permute.xlu0 %2078
        %2080 = vrot.lane.b32.xlu0 %v1618, 40
        %v2081 = vpop.permute.xlu0 %2080
        %2082 = vrot.lane.b32.xlu0 %v1619, 40
        %v2083 = vpop.permute.xlu0 %2082
        %2084 = vrot.lane.b32.xlu0 %v1620, 40
        %v2085 = vpop.permute.xlu0 %2084
        %2086 = vrot.lane.b32.xlu0 %v1621, 40
        %v2087 = vpop.permute.xlu0 %2086
        %2088 = vrot.lane.b32.xlu0 %v1622, 40
        %v2089 = vpop.permute.xlu0 %2088
        %2090 = vrot.lane.b32.xlu0 %v1623, 40
        %v2091 = vpop.permute.xlu0 %2090
        %2092 = vrot.lane.b32.xlu0 %v2064, 40
        %v2093 = vpop.permute.xlu0 %2092
        %2094 = vrot.lane.b32.xlu0 %v2065, 40
        %v2095 = vpop.permute.xlu0 %2094
        %2096 = vrot.lane.b32.xlu0 %v2066, 40
        %v2097 = vpop.permute.xlu0 %2096
        %2098 = vrot.lane.b32.xlu0 %v2067, 40
        %v2099 = vpop.permute.xlu0 %2098
        %v2100 = vunpack.c.l.b16 %v1259
        %v2101 = vunpack.c.l.b16 %v1263
        %v2102 = vunpack.c.l.b16 %v1267
        %v2103 = vunpack.c.l.b16 %v1271
        %v2104 = vunpack.c.l.b16 %v1275
        %v2105 = vunpack.c.l.b16 %v1279
        %v2106 = vunpack.c.l.b16 %v1283
        %v2107 = vunpack.c.l.b16 %v1287
        %v2108 = vpack.c.b16 %v2101, %v2100
        %v2109 = vpack.c.b16 %v2103, %v2102
        %v2110 = vpack.c.b16 %v2105, %v2104
        %v2111 = vpack.c.b16 %v2107, %v2106
        %2112 = vrot.lane.b32.xlu0 %v1692, 44
        %v2113 = vpop.permute.xlu0 %2112
        %2114 = vrot.lane.b32.xlu0 %v1693, 44
        %v2115 = vpop.permute.xlu0 %2114
        %2116 = vrot.lane.b32.xlu0 %v1694, 44
        %v2117 = vpop.permute.xlu0 %2116
        %2118 = vrot.lane.b32.xlu0 %v1695, 44
        %v2119 = vpop.permute.xlu0 %2118
        %2120 = vrot.lane.b32.xlu0 %v1696, 44
        %v2121 = vpop.permute.xlu0 %2120
        %2122 = vrot.lane.b32.xlu0 %v1697, 44
        %v2123 = vpop.permute.xlu0 %2122
        %2124 = vrot.lane.b32.xlu0 %v1698, 44
        %v2125 = vpop.permute.xlu0 %2124
        %2126 = vrot.lane.b32.xlu0 %v1699, 44
        %v2127 = vpop.permute.xlu0 %2126
        %2128 = vrot.lane.b32.xlu0 %v1700, 44
        %v2129 = vpop.permute.xlu0 %2128
        %2130 = vrot.lane.b32.xlu0 %v1701, 44
        %v2131 = vpop.permute.xlu0 %2130
        %2132 = vrot.lane.b32.xlu0 %v1702, 44
        %v2133 = vpop.permute.xlu0 %2132
        %2134 = vrot.lane.b32.xlu0 %v1703, 44
        %v2135 = vpop.permute.xlu0 %2134
        %2136 = vrot.lane.b32.xlu0 %v2108, 44
        %v2137 = vpop.permute.xlu0 %2136
        %2138 = vrot.lane.b32.xlu0 %v2109, 44
        %v2139 = vpop.permute.xlu0 %2138
        %2140 = vrot.lane.b32.xlu0 %v2110, 44
        %v2141 = vpop.permute.xlu0 %2140
        %2142 = vrot.lane.b32.xlu0 %v2111, 44
        %v2143 = vpop.permute.xlu0 %2142
        %v2144 = vunpack.c.l.b16 %v298
        %v2145 = vpack.c.b16 %v2014, %v2013
        %v2146 = vpack.c.b16 %v2016, %v2015
        %v2147 = vpack.c.b16 %v2018, %v2017
        %v2148 = vpack.c.b16 %v2144, %v2019
        %2149 = vrot.lane.b32.xlu0 %v1744, 48
        %v2150 = vpop.permute.xlu0 %2149
        %2151 = vrot.lane.b32.xlu0 %v1745, 48
        %v2152 = vpop.permute.xlu0 %2151
        %2153 = vrot.lane.b32.xlu0 %v1746, 48
        %v2154 = vpop.permute.xlu0 %2153
        %2155 = vrot.lane.b32.xlu0 %v1747, 48
        %v2156 = vpop.permute.xlu0 %2155
        %2157 = vrot.lane.b32.xlu0 %v1748, 48
        %v2158 = vpop.permute.xlu0 %2157
        %2159 = vrot.lane.b32.xlu0 %v1749, 48
        %v2160 = vpop.permute.xlu0 %2159
        %2161 = vrot.lane.b32.xlu0 %v1750, 48
        %v2162 = vpop.permute.xlu0 %2161
        %2163 = vrot.lane.b32.xlu0 %v1751, 48
        %v2164 = vpop.permute.xlu0 %2163
        %2165 = vrot.lane.b32.xlu0 %v1752, 48
        %v2166 = vpop.permute.xlu0 %2165
        %2167 = vrot.lane.b32.xlu0 %v1753, 48
        %v2168 = vpop.permute.xlu0 %2167
        %2169 = vrot.lane.b32.xlu0 %v1754, 48
        %v2170 = vpop.permute.xlu0 %2169
        %2171 = vrot.lane.b32.xlu0 %v1755, 48
        %v2172 = vpop.permute.xlu0 %2171
        %2173 = vrot.lane.b32.xlu0 %v2145, 48
        %v2174 = vpop.permute.xlu0 %2173
        %2175 = vrot.lane.b32.xlu0 %v2146, 48
        %v2176 = vpop.permute.xlu0 %2175
        %2177 = vrot.lane.b32.xlu0 %v2147, 48
        %v2178 = vpop.permute.xlu0 %2177
        %2179 = vrot.lane.b32.xlu0 %v2148, 48
        %v2180 = vpop.permute.xlu0 %2179
        %v2181 = vunpack.c.l.b16 %v1301
        %v2182 = vpack.c.b16 %v2058, %v2057
        %v2183 = vpack.c.b16 %v2060, %v2059
        %v2184 = vpack.c.b16 %v2062, %v2061
        %v2185 = vpack.c.b16 %v2181, %v2063
        %2186 = vrot.lane.b32.xlu0 %v1796, 52
        %v2187 = vpop.permute.xlu0 %2186
        %2188 = vrot.lane.b32.xlu0 %v1797, 52
        %v2189 = vpop.permute.xlu0 %2188
        %2190 = vrot.lane.b32.xlu0 %v1798, 52
        %v2191 = vpop.permute.xlu0 %2190
        %2192 = vrot.lane.b32.xlu0 %v1799, 52
        %v2193 = vpop.permute.xlu0 %2192
        %2194 = vrot.lane.b32.xlu0 %v1800, 52
        %v2195 = vpop.permute.xlu0 %2194
        %2196 = vrot.lane.b32.xlu0 %v1801, 52
        %v2197 = vpop.permute.xlu0 %2196
        %2198 = vrot.lane.b32.xlu0 %v1802, 52
        %v2199 = vpop.permute.xlu0 %2198
        %2200 = vrot.lane.b32.xlu0 %v1803, 52
        %v2201 = vpop.permute.xlu0 %2200
        %2202 = vrot.lane.b32.xlu0 %v1804, 52
        %v2203 = vpop.permute.xlu0 %2202
        %2204 = vrot.lane.b32.xlu0 %v1805, 52
        %v2205 = vpop.permute.xlu0 %2204
        %2206 = vrot.lane.b32.xlu0 %v1806, 52
        %v2207 = vpop.permute.xlu0 %2206
        %2208 = vrot.lane.b32.xlu0 %v1807, 52
        %v2209 = vpop.permute.xlu0 %2208
        %2210 = vrot.lane.b32.xlu0 %v2182, 52
        %v2211 = vpop.permute.xlu0 %2210
        %2212 = vrot.lane.b32.xlu0 %v2183, 52
        %v2213 = vpop.permute.xlu0 %2212
        %2214 = vrot.lane.b32.xlu0 %v2184, 52
        %v2215 = vpop.permute.xlu0 %2214
        %2216 = vrot.lane.b32.xlu0 %v2185, 52
        %v2217 = vpop.permute.xlu0 %2216
        %v2218 = vunpack.c.l.b16 %v1307
        %v2219 = vpack.c.b16 %v2102, %v2101
        %v2220 = vpack.c.b16 %v2104, %v2103
        %v2221 = vpack.c.b16 %v2106, %v2105
        %v2222 = vpack.c.b16 %v2218, %v2107
        %2223 = vrot.lane.b32.xlu0 %v1848, 56
        %v2224 = vpop.permute.xlu0 %2223
        %2225 = vrot.lane.b32.xlu0 %v1849, 56
        %v2226 = vpop.permute.xlu0 %2225
        %2227 = vrot.lane.b32.xlu0 %v1850, 56
        %v2228 = vpop.permute.xlu0 %2227
        %2229 = vrot.lane.b32.xlu0 %v1851, 56
        %v2230 = vpop.permute.xlu0 %2229
        %2231 = vrot.lane.b32.xlu0 %v1852, 56
        %v2232 = vpop.permute.xlu0 %2231
        %2233 = vrot.lane.b32.xlu0 %v1853, 56
        %v2234 = vpop.permute.xlu0 %2233
        %2235 = vrot.lane.b32.xlu0 %v1854, 56
        %v2236 = vpop.permute.xlu0 %2235
        %2237 = vrot.lane.b32.xlu0 %v1855, 56
        %v2238 = vpop.permute.xlu0 %2237
        %2239 = vrot.lane.b32.xlu0 %v1856, 56
        %v2240 = vpop.permute.xlu0 %2239
        %2241 = vrot.lane.b32.xlu0 %v1857, 56
        %v2242 = vpop.permute.xlu0 %2241
        %2243 = vrot.lane.b32.xlu0 %v1858, 56
        %v2244 = vpop.permute.xlu0 %2243
        %2245 = vrot.lane.b32.xlu0 %v1859, 56
        %v2246 = vpop.permute.xlu0 %2245
        %2247 = vrot.lane.b32.xlu0 %v2219, 56
        %v2248 = vpop.permute.xlu0 %2247
        %2249 = vrot.lane.b32.xlu0 %v2220, 56
        %v2250 = vpop.permute.xlu0 %2249
        %2251 = vrot.lane.b32.xlu0 %v2221, 56
        %v2252 = vpop.permute.xlu0 %2251
        %2253 = vrot.lane.b32.xlu0 %v2222, 56
        %v2254 = vpop.permute.xlu0 %2253
        %v2255 = vunpack.c.l.b16 %v300
        %v2256 = vpack.c.b16 %v2255, %v2144
        %2257 = vrot.lane.b32.xlu0 %v1565, 60
        %v2258 = vpop.permute.xlu0 %2257
        %2259 = vrot.lane.b32.xlu0 %v1566, 60
        %v2260 = vpop.permute.xlu0 %2259
        %2261 = vrot.lane.b32.xlu0 %v1567, 60
        %v2262 = vpop.permute.xlu0 %2261
        %2263 = vrot.lane.b32.xlu0 %v1897, 60
        %v2264 = vpop.permute.xlu0 %2263
        %2265 = vrot.lane.b32.xlu0 %v1569, 60
        %v2266 = vpop.permute.xlu0 %2265
        %2267 = vrot.lane.b32.xlu0 %v1570, 60
        %v2268 = vpop.permute.xlu0 %2267
        %2269 = vrot.lane.b32.xlu0 %v1571, 60
        %v2270 = vpop.permute.xlu0 %2269
        %2271 = vrot.lane.b32.xlu0 %v1898, 60
        %v2272 = vpop.permute.xlu0 %2271
        %2273 = vrot.lane.b32.xlu0 %v1573, 60
        %v2274 = vpop.permute.xlu0 %2273
        %2275 = vrot.lane.b32.xlu0 %v1574, 60
        %v2276 = vpop.permute.xlu0 %2275
        %2277 = vrot.lane.b32.xlu0 %v1575, 60
        %v2278 = vpop.permute.xlu0 %2277
        %2279 = vrot.lane.b32.xlu0 %v1899, 60
        %v2280 = vpop.permute.xlu0 %2279
        %2281 = vrot.lane.b32.xlu0 %v2021, 60
        %v2282 = vpop.permute.xlu0 %2281
        %2283 = vrot.lane.b32.xlu0 %v2022, 60
        %v2284 = vpop.permute.xlu0 %2283
        %2285 = vrot.lane.b32.xlu0 %v2023, 60
        %v2286 = vpop.permute.xlu0 %2285
        %2287 = vrot.lane.b32.xlu0 %v2256, 60
        %v2288 = vpop.permute.xlu0 %2287
        %vm2289 = vcmask 31744
        %v2292 = vsel %vm2289, %v1560, %v1625
        %v2295 = vsel %vm2289, %v1561, %v1627
        %v2298 = vsel %vm2289, %v1562, %v1629
        %v2301 = vsel %vm2289, %v1563, %v1631
        %v2304 = vsel %vm2289, %v1564, %v1633
        %v2307 = vsel %vm2289, %v1565, %v1635
        %v2310 = vsel %vm2289, %v1566, %v1637
        %v2313 = vsel %vm2289, %v1567, %v1639
        %v2316 = vsel %vm2289, %v1568, %v1641
        %v2319 = vsel %vm2289, %v1569, %v1643
        %v2322 = vsel %vm2289, %v1570, %v1645
        %v2325 = vsel %vm2289, %v1571, %v1647
        %v2328 = vsel %vm2289, %v1572, %v1649
        %v2331 = vsel %vm2289, %v1573, %v1651
        %v2334 = vsel %vm2289, %v1574, %v1653
        %v2337 = vsel %vm2289, %v1575, %v1655
        %vm2338 = vcmask 64512
        %v2340 = vsel %vm2338, %v2292, %v1705
        %v2342 = vsel %vm2338, %v2295, %v1707
        %v2344 = vsel %vm2338, %v2298, %v1709
        %v2346 = vsel %vm2338, %v2301, %v1711
        %v2348 = vsel %vm2338, %v2304, %v1713
        %v2350 = vsel %vm2338, %v2307, %v1715
        %v2352 = vsel %vm2338, %v2310, %v1717
        %v2354 = vsel %vm2338, %v2313, %v1719
        %v2356 = vsel %vm2338, %v2316, %v1721
        %v2358 = vsel %vm2338, %v2319, %v1723
        %v2360 = vsel %vm2338, %v2322, %v1725
        %v2362 = vsel %vm2338, %v2325, %v1727
        %v2364 = vsel %vm2338, %v2328, %v1729
        %v2366 = vsel %vm2338, %v2331, %v1731
        %v2368 = vsel %vm2338, %v2334, %v1733
        %v2370 = vsel %vm2338, %v2337, %v1735
        %vm2371 = vcmask 97280
        %v2373 = vsel %vm2371, %v2340, %v1757
        %v2375 = vsel %vm2371, %v2342, %v1759
        %v2377 = vsel %vm2371, %v2344, %v1761
        %v2379 = vsel %vm2371, %v2346, %v1763
        %v2381 = vsel %vm2371, %v2348, %v1765
        %v2383 = vsel %vm2371, %v2350, %v1767
        %v2385 = vsel %vm2371, %v2352, %v1769
        %v2387 = vsel %vm2371, %v2354, %v1771
        %v2389 = vsel %vm2371, %v2356, %v1773
        %v2391 = vsel %vm2371, %v2358, %v1775
        %v2393 = vsel %vm2371, %v2360, %v1777
        %v2395 = vsel %vm2371, %v2362, %v1779
        %v2397 = vsel %vm2371, %v2364, %v1781
        %v2399 = vsel %vm2371, %v2366, %v1783
        %v2401 = vsel %vm2371, %v2368, %v1785
        %v2403 = vsel %vm2371, %v2370, %v1787
        %vm2404 = vcmask 130048
        %v2406 = vsel %vm2404, %v2373, %v1809
        %v2408 = vsel %vm2404, %v2375, %v1811
        %v2410 = vsel %vm2404, %v2377, %v1813
        %v2412 = vsel %vm2404, %v2379, %v1815
        %v2414 = vsel %vm2404, %v2381, %v1817
        %v2416 = vsel %vm2404, %v2383, %v1819
        %v2418 = vsel %vm2404, %v2385, %v1821
        %v2420 = vsel %vm2404, %v2387, %v1823
        %v2422 = vsel %vm2404, %v2389, %v1825
        %v2424 = vsel %vm2404, %v2391, %v1827
        %v2426 = vsel %vm2404, %v2393, %v1829
        %v2428 = vsel %vm2404, %v2395, %v1831
        %v2430 = vsel %vm2404, %v2397, %v1833
        %v2432 = vsel %vm2404, %v2399, %v1835
        %v2434 = vsel %vm2404, %v2401, %v1837
        %v2436 = vsel %vm2404, %v2403, %v1839
        %vm2437 = vcmask 162816
        %v2439 = vsel %vm2437, %v2406, %v1861
        %v2441 = vsel %vm2437, %v2408, %v1863
        %v2443 = vsel %vm2437, %v2410, %v1865
        %v2445 = vsel %vm2437, %v2412, %v1867
        %v2447 = vsel %vm2437, %v2414, %v1869
        %v2449 = vsel %vm2437, %v2416, %v1871
        %v2451 = vsel %vm2437, %v2418, %v1873
        %v2453 = vsel %vm2437, %v2420, %v1875
        %v2455 = vsel %vm2437, %v2422, %v1877
        %v2457 = vsel %vm2437, %v2424, %v1879
        %v2459 = vsel %vm2437, %v2426, %v1881
        %v2461 = vsel %vm2437, %v2428, %v1883
        %v2463 = vsel %vm2437, %v2430, %v1885
        %v2465 = vsel %vm2437, %v2432, %v1887
        %v2467 = vsel %vm2437, %v2434, %v1889
        %v2469 = vsel %vm2437, %v2436, %v1891
        %vm2470 = vcmask 195584
        %v2472 = vsel %vm2470, %v2439, %v1901
        %v2474 = vsel %vm2470, %v2441, %v1903
        %v2476 = vsel %vm2470, %v2443, %v1905
        %v2478 = vsel %vm2470, %v2445, %v1907
        %v2480 = vsel %vm2470, %v2447, %v1909
        %v2482 = vsel %vm2470, %v2449, %v1911
        %v2484 = vsel %vm2470, %v2451, %v1913
        %v2486 = vsel %vm2470, %v2453, %v1915
        %v2488 = vsel %vm2470, %v2455, %v1917
        %v2490 = vsel %vm2470, %v2457, %v1919
        %v2492 = vsel %vm2470, %v2459, %v1921
        %v2494 = vsel %vm2470, %v2461, %v1923
        %v2496 = vsel %vm2470, %v2463, %v1925
        %v2498 = vsel %vm2470, %v2465, %v1927
        %v2500 = vsel %vm2470, %v2467, %v1929
        %v2502 = vsel %vm2470, %v2469, %v1931
        %vm2503 = vcmask 228352
        %v2505 = vsel %vm2503, %v2472, %v1941
        %v2507 = vsel %vm2503, %v2474, %v1943
        %v2509 = vsel %vm2503, %v2476, %v1945
        %v2511 = vsel %vm2503, %v2478, %v1947
        %v2513 = vsel %vm2503, %v2480, %v1949
        %v2515 = vsel %vm2503, %v2482, %v1951
        %v2517 = vsel %vm2503, %v2484, %v1953
        %v2519 = vsel %vm2503, %v2486, %v1955
        %v2521 = vsel %vm2503, %v2488, %v1957
        %v2523 = vsel %vm2503, %v2490, %v1959
        %v2525 = vsel %vm2503, %v2492, %v1961
        %v2527 = vsel %vm2503, %v2494, %v1963
        %v2529 = vsel %vm2503, %v2496, %v1965
        %v2531 = vsel %vm2503, %v2498, %v1967
        %v2533 = vsel %vm2503, %v2500, %v1969
        %v2535 = vsel %vm2503, %v2502, %v1971
        %vm2536 = vcmask 261120
        %v2538 = vsel %vm2536, %v2505, %v1981
        %v2540 = vsel %vm2536, %v2507, %v1983
        %v2542 = vsel %vm2536, %v2509, %v1985
        %v2544 = vsel %vm2536, %v2511, %v1987
        %v2546 = vsel %vm2536, %v2513, %v1989
        %v2548 = vsel %vm2536, %v2515, %v1991
        %v2550 = vsel %vm2536, %v2517, %v1993
        %v2552 = vsel %vm2536, %v2519, %v1995
        %v2554 = vsel %vm2536, %v2521, %v1997
        %v2556 = vsel %vm2536, %v2523, %v1999
        %v2558 = vsel %vm2536, %v2525, %v2001
        %v2560 = vsel %vm2536, %v2527, %v2003
        %v2562 = vsel %vm2536, %v2529, %v2005
        %v2564 = vsel %vm2536, %v2531, %v2007
        %v2566 = vsel %vm2536, %v2533, %v2009
        %v2568 = vsel %vm2536, %v2535, %v2011
        %vm2569 = vcmask 293888
        %v2571 = vsel %vm2569, %v2538, %v2025
        %v2573 = vsel %vm2569, %v2540, %v2027
        %v2575 = vsel %vm2569, %v2542, %v2029
        %v2577 = vsel %vm2569, %v2544, %v2031
        %v2579 = vsel %vm2569, %v2546, %v2033
        %v2581 = vsel %vm2569, %v2548, %v2035
        %v2583 = vsel %vm2569, %v2550, %v2037
        %v2585 = vsel %vm2569, %v2552, %v2039
        %v2587 = vsel %vm2569, %v2554, %v2041
        %v2589 = vsel %vm2569, %v2556, %v2043
        %v2591 = vsel %vm2569, %v2558, %v2045
        %v2593 = vsel %vm2569, %v2560, %v2047
        %v2595 = vsel %vm2569, %v2562, %v2049
        %v2597 = vsel %vm2569, %v2564, %v2051
        %v2599 = vsel %vm2569, %v2566, %v2053
        %v2601 = vsel %vm2569, %v2568, %v2055
        %vm2602 = vcmask 326656
        %v2604 = vsel %vm2602, %v2571, %v2069
        %v2606 = vsel %vm2602, %v2573, %v2071
        %v2608 = vsel %vm2602, %v2575, %v2073
        %v2610 = vsel %vm2602, %v2577, %v2075
        %v2612 = vsel %vm2602, %v2579, %v2077
        %v2614 = vsel %vm2602, %v2581, %v2079
        %v2616 = vsel %vm2602, %v2583, %v2081
        %v2618 = vsel %vm2602, %v2585, %v2083
        %v2620 = vsel %vm2602, %v2587, %v2085
        %v2622 = vsel %vm2602, %v2589, %v2087
        %v2624 = vsel %vm2602, %v2591, %v2089
        %v2626 = vsel %vm2602, %v2593, %v2091
        %v2628 = vsel %vm2602, %v2595, %v2093
        %v2630 = vsel %vm2602, %v2597, %v2095
        %v2632 = vsel %vm2602, %v2599, %v2097
        %v2634 = vsel %vm2602, %v2601, %v2099
        %vm2635 = vcmask 359424
        %v2637 = vsel %vm2635, %v2604, %v2113
        %v2639 = vsel %vm2635, %v2606, %v2115
        %v2641 = vsel %vm2635, %v2608, %v2117
        %v2643 = vsel %vm2635, %v2610, %v2119
        %v2645 = vsel %vm2635, %v2612, %v2121
        %v2647 = vsel %vm2635, %v2614, %v2123
        %v2649 = vsel %vm2635, %v2616, %v2125
        %v2651 = vsel %vm2635, %v2618, %v2127
        %v2653 = vsel %vm2635, %v2620, %v2129
        %v2655 = vsel %vm2635, %v2622, %v2131
        %v2657 = vsel %vm2635, %v2624, %v2133
        %v2659 = vsel %vm2635, %v2626, %v2135
        %v2661 = vsel %vm2635, %v2628, %v2137
        %v2663 = vsel %vm2635, %v2630, %v2139
        %v2665 = vsel %vm2635, %v2632, %v2141
        %v2667 = vsel %vm2635, %v2634, %v2143
        %vm2668 = vcmask 392192
        %v2670 = vsel %vm2668, %v2637, %v2150
        %v2672 = vsel %vm2668, %v2639, %v2152
        %v2674 = vsel %vm2668, %v2641, %v2154
        %v2676 = vsel %vm2668, %v2643, %v2156
        %v2678 = vsel %vm2668, %v2645, %v2158
        %v2680 = vsel %vm2668, %v2647, %v2160
        %v2682 = vsel %vm2668, %v2649, %v2162
        %v2684 = vsel %vm2668, %v2651, %v2164
        %v2686 = vsel %vm2668, %v2653, %v2166
        %v2688 = vsel %vm2668, %v2655, %v2168
        %v2690 = vsel %vm2668, %v2657, %v2170
        %v2692 = vsel %vm2668, %v2659, %v2172
        %v2694 = vsel %vm2668, %v2661, %v2174
        %v2696 = vsel %vm2668, %v2663, %v2176
        %v2698 = vsel %vm2668, %v2665, %v2178
        %v2700 = vsel %vm2668, %v2667, %v2180
        %vm2701 = vcmask 424960
        %v2703 = vsel %vm2701, %v2670, %v2187
        %v2705 = vsel %vm2701, %v2672, %v2189
        %v2707 = vsel %vm2701, %v2674, %v2191
        %v2709 = vsel %vm2701, %v2676, %v2193
        %v2711 = vsel %vm2701, %v2678, %v2195
        %v2713 = vsel %vm2701, %v2680, %v2197
        %v2715 = vsel %vm2701, %v2682, %v2199
        %v2717 = vsel %vm2701, %v2684, %v2201
        %v2719 = vsel %vm2701, %v2686, %v2203
        %v2721 = vsel %vm2701, %v2688, %v2205
        %v2723 = vsel %vm2701, %v2690, %v2207
        %v2725 = vsel %vm2701, %v2692, %v2209
        %v2727 = vsel %vm2701, %v2694, %v2211
        %v2729 = vsel %vm2701, %v2696, %v2213
        %v2731 = vsel %vm2701, %v2698, %v2215
        %v2733 = vsel %vm2701, %v2700, %v2217
        %vm2734 = vcmask 457728
        %v2736 = vsel %vm2734, %v2703, %v2224
        %v2738 = vsel %vm2734, %v2705, %v2226
        %v2740 = vsel %vm2734, %v2707, %v2228
        %v2742 = vsel %vm2734, %v2709, %v2230
        %v2744 = vsel %vm2734, %v2711, %v2232
        %v2746 = vsel %vm2734, %v2713, %v2234
        %v2748 = vsel %vm2734, %v2715, %v2236
        %v2750 = vsel %vm2734, %v2717, %v2238
        %v2752 = vsel %vm2734, %v2719, %v2240
        %v2754 = vsel %vm2734, %v2721, %v2242
        %v2756 = vsel %vm2734, %v2723, %v2244
        %v2758 = vsel %vm2734, %v2725, %v2246
        %v2760 = vsel %vm2734, %v2727, %v2248
        %v2762 = vsel %vm2734, %v2729, %v2250
        %v2764 = vsel %vm2734, %v2731, %v2252
        %v2766 = vsel %vm2734, %v2733, %v2254
        %vm2767 = vcmask 490496
        %v2769 = vsel %vm2767, %v2736, %v2258
        %v2771 = vsel %vm2767, %v2738, %v2260
        %v2773 = vsel %vm2767, %v2740, %v2262
        %v2775 = vsel %vm2767, %v2742, %v2264
        %v2777 = vsel %vm2767, %v2744, %v2266
        %v2779 = vsel %vm2767, %v2746, %v2268
        %v2781 = vsel %vm2767, %v2748, %v2270
        %v2783 = vsel %vm2767, %v2750, %v2272
        %v2785 = vsel %vm2767, %v2752, %v2274
        %v2787 = vsel %vm2767, %v2754, %v2276
        %v2789 = vsel %vm2767, %v2756, %v2278
        %v2791 = vsel %vm2767, %v2758, %v2280
        %v2793 = vsel %vm2767, %v2760, %v2282
        %v2795 = vsel %vm2767, %v2762, %v2284
        %v2797 = vsel %vm2767, %v2764, %v2286
        %v2799 = vsel %vm2767, %v2766, %v2288
        %v2800 = vunpack.c.l.b16 %v1321
        %v2801 = vpack.c.b16 %v2800, %v2181
        %v2802 = vunpack.c.l.b16 %v1327
        %v2803 = vpack.c.b16 %v2802, %v2218
        %2804 = vrot.lane.b32.xlu0 %v1693, 4
        %v2805 = vpop.permute.xlu0 %2804
        %2806 = vrot.lane.b32.xlu0 %v1694, 4
        %v2807 = vpop.permute.xlu0 %2806
        %2808 = vrot.lane.b32.xlu0 %v1695, 4
        %v2809 = vpop.permute.xlu0 %2808
        %2810 = vrot.lane.b32.xlu0 %v1977, 4
        %v2811 = vpop.permute.xlu0 %2810
        %2812 = vrot.lane.b32.xlu0 %v1697, 4
        %v2813 = vpop.permute.xlu0 %2812
        %2814 = vrot.lane.b32.xlu0 %v1698, 4
        %v2815 = vpop.permute.xlu0 %2814
        %2816 = vrot.lane.b32.xlu0 %v1699, 4
        %v2817 = vpop.permute.xlu0 %2816
        %2818 = vrot.lane.b32.xlu0 %v1978, 4
        %v2819 = vpop.permute.xlu0 %2818
        %2820 = vrot.lane.b32.xlu0 %v1701, 4
        %v2821 = vpop.permute.xlu0 %2820
        %2822 = vrot.lane.b32.xlu0 %v1702, 4
        %v2823 = vpop.permute.xlu0 %2822
        %2824 = vrot.lane.b32.xlu0 %v1703, 4
        %v2825 = vpop.permute.xlu0 %2824
        %2826 = vrot.lane.b32.xlu0 %v1979, 4
        %v2827 = vpop.permute.xlu0 %2826
        %2828 = vrot.lane.b32.xlu0 %v2109, 4
        %v2829 = vpop.permute.xlu0 %2828
        %2830 = vrot.lane.b32.xlu0 %v2110, 4
        %v2831 = vpop.permute.xlu0 %2830
        %2832 = vrot.lane.b32.xlu0 %v2111, 4
        %v2833 = vpop.permute.xlu0 %2832
        %2834 = vrot.lane.b32.xlu0 %v2803, 4
        %v2835 = vpop.permute.xlu0 %2834
        %v2836 = vunpack.c.l.b16 %v302
        %v2837 = vunpack.c.l.b16 %v304
        %v2838 = vunpack.c.l.b16 %v306
        %v2839 = vunpack.c.l.b16 %v308
        %v2840 = vunpack.c.l.b16 %v310
        %v2841 = vunpack.c.l.b16 %v312
        %v2842 = vunpack.c.l.b16 %v314
        %v2843 = vunpack.c.l.b16 %v316
        %v2844 = vpack.c.b16 %v2837, %v2836
        %v2845 = vpack.c.b16 %v2839, %v2838
        %v2846 = vpack.c.b16 %v2841, %v2840
        %v2847 = vpack.c.b16 %v2843, %v2842
        %2848 = vrot.lane.b32.xlu0 %v1568, 8
        %v2849 = vpop.permute.xlu0 %2848
        %2850 = vrot.lane.b32.xlu0 %v1569, 8
        %v2851 = vpop.permute.xlu0 %2850
        %2852 = vrot.lane.b32.xlu0 %v1570, 8
        %v2853 = vpop.permute.xlu0 %2852
        %2854 = vrot.lane.b32.xlu0 %v1571, 8
        %v2855 = vpop.permute.xlu0 %2854
        %2856 = vrot.lane.b32.xlu0 %v1572, 8
        %v2857 = vpop.permute.xlu0 %2856
        %2858 = vrot.lane.b32.xlu0 %v1573, 8
        %v2859 = vpop.permute.xlu0 %2858
        %2860 = vrot.lane.b32.xlu0 %v1574, 8
        %v2861 = vpop.permute.xlu0 %2860
        %2862 = vrot.lane.b32.xlu0 %v1575, 8
        %v2863 = vpop.permute.xlu0 %2862
        %2864 = vrot.lane.b32.xlu0 %v2020, 8
        %v2865 = vpop.permute.xlu0 %2864
        %2866 = vrot.lane.b32.xlu0 %v2021, 8
        %v2867 = vpop.permute.xlu0 %2866
        %2868 = vrot.lane.b32.xlu0 %v2022, 8
        %v2869 = vpop.permute.xlu0 %2868
        %2870 = vrot.lane.b32.xlu0 %v2023, 8
        %v2871 = vpop.permute.xlu0 %2870
        %2872 = vrot.lane.b32.xlu0 %v2844, 8
        %v2873 = vpop.permute.xlu0 %2872
        %2874 = vrot.lane.b32.xlu0 %v2845, 8
        %v2875 = vpop.permute.xlu0 %2874
        %2876 = vrot.lane.b32.xlu0 %v2846, 8
        %v2877 = vpop.permute.xlu0 %2876
        %2878 = vrot.lane.b32.xlu0 %v2847, 8
        %v2879 = vpop.permute.xlu0 %2878
        %v2880 = vunpack.c.l.b16 %v1341
        %v2881 = vunpack.c.l.b16 %v1355
        %v2882 = vunpack.c.l.b16 %v1369
        %v2883 = vunpack.c.l.b16 %v1383
        %v2884 = vunpack.c.l.b16 %v1397
        %v2885 = vunpack.c.l.b16 %v1411
        %v2886 = vunpack.c.l.b16 %v1425
        %v2887 = vunpack.c.l.b16 %v1439
        %v2888 = vpack.c.b16 %v2881, %v2880
        %v2889 = vpack.c.b16 %v2883, %v2882
        %v2890 = vpack.c.b16 %v2885, %v2884
        %v2891 = vpack.c.b16 %v2887, %v2886
        %2892 = vrot.lane.b32.xlu0 %v1616, 12
        %v2893 = vpop.permute.xlu0 %2892
        %2894 = vrot.lane.b32.xlu0 %v1617, 12
        %v2895 = vpop.permute.xlu0 %2894
        %2896 = vrot.lane.b32.xlu0 %v1618, 12
        %v2897 = vpop.permute.xlu0 %2896
        %2898 = vrot.lane.b32.xlu0 %v1619, 12
        %v2899 = vpop.permute.xlu0 %2898
        %2900 = vrot.lane.b32.xlu0 %v1620, 12
        %v2901 = vpop.permute.xlu0 %2900
        %2902 = vrot.lane.b32.xlu0 %v1621, 12
        %v2903 = vpop.permute.xlu0 %2902
        %2904 = vrot.lane.b32.xlu0 %v1622, 12
        %v2905 = vpop.permute.xlu0 %2904
        %2906 = vrot.lane.b32.xlu0 %v1623, 12
        %v2907 = vpop.permute.xlu0 %2906
        %2908 = vrot.lane.b32.xlu0 %v2064, 12
        %v2909 = vpop.permute.xlu0 %2908
        %2910 = vrot.lane.b32.xlu0 %v2065, 12
        %v2911 = vpop.permute.xlu0 %2910
        %2912 = vrot.lane.b32.xlu0 %v2066, 12
        %v2913 = vpop.permute.xlu0 %2912
        %2914 = vrot.lane.b32.xlu0 %v2067, 12
        %v2915 = vpop.permute.xlu0 %2914
        %2916 = vrot.lane.b32.xlu0 %v2888, 12
        %v2917 = vpop.permute.xlu0 %2916
        %2918 = vrot.lane.b32.xlu0 %v2889, 12
        %v2919 = vpop.permute.xlu0 %2918
        %2920 = vrot.lane.b32.xlu0 %v2890, 12
        %v2921 = vpop.permute.xlu0 %2920
        %2922 = vrot.lane.b32.xlu0 %v2891, 12
        %v2923 = vpop.permute.xlu0 %2922
        %v2924 = vunpack.c.l.b16 %v1459
        %v2925 = vunpack.c.l.b16 %v1463
        %v2926 = vunpack.c.l.b16 %v1467
        %v2927 = vunpack.c.l.b16 %v1471
        %v2928 = vunpack.c.l.b16 %v1475
        %v2929 = vunpack.c.l.b16 %v1479
        %v2930 = vunpack.c.l.b16 %v1483
        %v2931 = vunpack.c.l.b16 %v1487
        %v2932 = vpack.c.b16 %v2925, %v2924
        %v2933 = vpack.c.b16 %v2927, %v2926
        %v2934 = vpack.c.b16 %v2929, %v2928
        %v2935 = vpack.c.b16 %v2931, %v2930
        %2936 = vrot.lane.b32.xlu0 %v1696, 16
        %v2937 = vpop.permute.xlu0 %2936
        %2938 = vrot.lane.b32.xlu0 %v1697, 16
        %v2939 = vpop.permute.xlu0 %2938
        %2940 = vrot.lane.b32.xlu0 %v1698, 16
        %v2941 = vpop.permute.xlu0 %2940
        %2942 = vrot.lane.b32.xlu0 %v1699, 16
        %v2943 = vpop.permute.xlu0 %2942
        %2944 = vrot.lane.b32.xlu0 %v1700, 16
        %v2945 = vpop.permute.xlu0 %2944
        %2946 = vrot.lane.b32.xlu0 %v1701, 16
        %v2947 = vpop.permute.xlu0 %2946
        %2948 = vrot.lane.b32.xlu0 %v1702, 16
        %v2949 = vpop.permute.xlu0 %2948
        %2950 = vrot.lane.b32.xlu0 %v1703, 16
        %v2951 = vpop.permute.xlu0 %2950
        %2952 = vrot.lane.b32.xlu0 %v2108, 16
        %v2953 = vpop.permute.xlu0 %2952
        %2954 = vrot.lane.b32.xlu0 %v2109, 16
        %v2955 = vpop.permute.xlu0 %2954
        %2956 = vrot.lane.b32.xlu0 %v2110, 16
        %v2957 = vpop.permute.xlu0 %2956
        %2958 = vrot.lane.b32.xlu0 %v2111, 16
        %v2959 = vpop.permute.xlu0 %2958
        %2960 = vrot.lane.b32.xlu0 %v2932, 16
        %v2961 = vpop.permute.xlu0 %2960
        %2962 = vrot.lane.b32.xlu0 %v2933, 16
        %v2963 = vpop.permute.xlu0 %2962
        %2964 = vrot.lane.b32.xlu0 %v2934, 16
        %v2965 = vpop.permute.xlu0 %2964
        %2966 = vrot.lane.b32.xlu0 %v2935, 16
        %v2967 = vpop.permute.xlu0 %2966
        %v2968 = vunpack.c.l.b16 %v318
        %v2969 = vpack.c.b16 %v2838, %v2837
        %v2970 = vpack.c.b16 %v2840, %v2839
        %v2971 = vpack.c.b16 %v2842, %v2841
        %v2972 = vpack.c.b16 %v2968, %v2843
        %2973 = vrot.lane.b32.xlu0 %v1748, 20
        %v2974 = vpop.permute.xlu0 %2973
        %2975 = vrot.lane.b32.xlu0 %v1749, 20
        %v2976 = vpop.permute.xlu0 %2975
        %2977 = vrot.lane.b32.xlu0 %v1750, 20
        %v2978 = vpop.permute.xlu0 %2977
        %2979 = vrot.lane.b32.xlu0 %v1751, 20
        %v2980 = vpop.permute.xlu0 %2979
        %2981 = vrot.lane.b32.xlu0 %v1752, 20
        %v2982 = vpop.permute.xlu0 %2981
        %2983 = vrot.lane.b32.xlu0 %v1753, 20
        %v2984 = vpop.permute.xlu0 %2983
        %2985 = vrot.lane.b32.xlu0 %v1754, 20
        %v2986 = vpop.permute.xlu0 %2985
        %2987 = vrot.lane.b32.xlu0 %v1755, 20
        %v2988 = vpop.permute.xlu0 %2987
        %2989 = vrot.lane.b32.xlu0 %v2145, 20
        %v2990 = vpop.permute.xlu0 %2989
        %2991 = vrot.lane.b32.xlu0 %v2146, 20
        %v2992 = vpop.permute.xlu0 %2991
        %2993 = vrot.lane.b32.xlu0 %v2147, 20
        %v2994 = vpop.permute.xlu0 %2993
        %2995 = vrot.lane.b32.xlu0 %v2148, 20
        %v2996 = vpop.permute.xlu0 %2995
        %2997 = vrot.lane.b32.xlu0 %v2969, 20
        %v2998 = vpop.permute.xlu0 %2997
        %2999 = vrot.lane.b32.xlu0 %v2970, 20
        %v3000 = vpop.permute.xlu0 %2999
        %3001 = vrot.lane.b32.xlu0 %v2971, 20
        %v3002 = vpop.permute.xlu0 %3001
        %3003 = vrot.lane.b32.xlu0 %v2972, 20
        %v3004 = vpop.permute.xlu0 %3003
        %v3005 = vunpack.c.l.b16 %v1501
        %v3006 = vpack.c.b16 %v2882, %v2881
        %v3007 = vpack.c.b16 %v2884, %v2883
        %v3008 = vpack.c.b16 %v2886, %v2885
        %v3009 = vpack.c.b16 %v3005, %v2887
        %3010 = vrot.lane.b32.xlu0 %v1800, 24
        %v3011 = vpop.permute.xlu0 %3010
        %3012 = vrot.lane.b32.xlu0 %v1801, 24
        %v3013 = vpop.permute.xlu0 %3012
        %3014 = vrot.lane.b32.xlu0 %v1802, 24
        %v3015 = vpop.permute.xlu0 %3014
        %3016 = vrot.lane.b32.xlu0 %v1803, 24
        %v3017 = vpop.permute.xlu0 %3016
        %3018 = vrot.lane.b32.xlu0 %v1804, 24
        %v3019 = vpop.permute.xlu0 %3018
        %3020 = vrot.lane.b32.xlu0 %v1805, 24
        %v3021 = vpop.permute.xlu0 %3020
        %3022 = vrot.lane.b32.xlu0 %v1806, 24
        %v3023 = vpop.permute.xlu0 %3022
        %3024 = vrot.lane.b32.xlu0 %v1807, 24
        %v3025 = vpop.permute.xlu0 %3024
        %3026 = vrot.lane.b32.xlu0 %v2182, 24
        %v3027 = vpop.permute.xlu0 %3026
        %3028 = vrot.lane.b32.xlu0 %v2183, 24
        %v3029 = vpop.permute.xlu0 %3028
        %3030 = vrot.lane.b32.xlu0 %v2184, 24
        %v3031 = vpop.permute.xlu0 %3030
        %3032 = vrot.lane.b32.xlu0 %v2185, 24
        %v3033 = vpop.permute.xlu0 %3032
        %3034 = vrot.lane.b32.xlu0 %v3006, 24
        %v3035 = vpop.permute.xlu0 %3034
        %3036 = vrot.lane.b32.xlu0 %v3007, 24
        %v3037 = vpop.permute.xlu0 %3036
        %3038 = vrot.lane.b32.xlu0 %v3008, 24
        %v3039 = vpop.permute.xlu0 %3038
        %3040 = vrot.lane.b32.xlu0 %v3009, 24
        %v3041 = vpop.permute.xlu0 %3040
        %v3042 = vunpack.c.l.b16 %v1507
        %v3043 = vpack.c.b16 %v2926, %v2925
        %v3044 = vpack.c.b16 %v2928, %v2927
        %v3045 = vpack.c.b16 %v2930, %v2929
        %v3046 = vpack.c.b16 %v3042, %v2931
        %3047 = vrot.lane.b32.xlu0 %v1852, 28
        %v3048 = vpop.permute.xlu0 %3047
        %3049 = vrot.lane.b32.xlu0 %v1853, 28
        %v3050 = vpop.permute.xlu0 %3049
        %3051 = vrot.lane.b32.xlu0 %v1854, 28
        %v3052 = vpop.permute.xlu0 %3051
        %3053 = vrot.lane.b32.xlu0 %v1855, 28
        %v3054 = vpop.permute.xlu0 %3053
        %3055 = vrot.lane.b32.xlu0 %v1856, 28
        %v3056 = vpop.permute.xlu0 %3055
        %3057 = vrot.lane.b32.xlu0 %v1857, 28
        %v3058 = vpop.permute.xlu0 %3057
        %3059 = vrot.lane.b32.xlu0 %v1858, 28
        %v3060 = vpop.permute.xlu0 %3059
        %3061 = vrot.lane.b32.xlu0 %v1859, 28
        %v3062 = vpop.permute.xlu0 %3061
        %3063 = vrot.lane.b32.xlu0 %v2219, 28
        %v3064 = vpop.permute.xlu0 %3063
        %3065 = vrot.lane.b32.xlu0 %v2220, 28
        %v3066 = vpop.permute.xlu0 %3065
        %3067 = vrot.lane.b32.xlu0 %v2221, 28
        %v3068 = vpop.permute.xlu0 %3067
        %3069 = vrot.lane.b32.xlu0 %v2222, 28
        %v3070 = vpop.permute.xlu0 %3069
        %3071 = vrot.lane.b32.xlu0 %v3043, 28
        %v3072 = vpop.permute.xlu0 %3071
        %3073 = vrot.lane.b32.xlu0 %v3044, 28
        %v3074 = vpop.permute.xlu0 %3073
        %3075 = vrot.lane.b32.xlu0 %v3045, 28
        %v3076 = vpop.permute.xlu0 %3075
        %3077 = vrot.lane.b32.xlu0 %v3046, 28
        %v3078 = vpop.permute.xlu0 %3077
        %v3079 = vunpack.c.l.b16 %v320
        %v3080 = vpack.c.b16 %v3079, %v2968
        %3081 = vrot.lane.b32.xlu0 %v1569, 32
        %v3082 = vpop.permute.xlu0 %3081
        %3083 = vrot.lane.b32.xlu0 %v1570, 32
        %v3084 = vpop.permute.xlu0 %3083
        %3085 = vrot.lane.b32.xlu0 %v1571, 32
        %v3086 = vpop.permute.xlu0 %3085
        %3087 = vrot.lane.b32.xlu0 %v1898, 32
        %v3088 = vpop.permute.xlu0 %3087
        %3089 = vrot.lane.b32.xlu0 %v1573, 32
        %v3090 = vpop.permute.xlu0 %3089
        %3091 = vrot.lane.b32.xlu0 %v1574, 32
        %v3092 = vpop.permute.xlu0 %3091
        %3093 = vrot.lane.b32.xlu0 %v1575, 32
        %v3094 = vpop.permute.xlu0 %3093
        %3095 = vrot.lane.b32.xlu0 %v1899, 32
        %v3096 = vpop.permute.xlu0 %3095
        %3097 = vrot.lane.b32.xlu0 %v2021, 32
        %v3098 = vpop.permute.xlu0 %3097
        %3099 = vrot.lane.b32.xlu0 %v2022, 32
        %v3100 = vpop.permute.xlu0 %3099
        %3101 = vrot.lane.b32.xlu0 %v2023, 32
        %v3102 = vpop.permute.xlu0 %3101
        %3103 = vrot.lane.b32.xlu0 %v2256, 32
        %v3104 = vpop.permute.xlu0 %3103
        %3105 = vrot.lane.b32.xlu0 %v2845, 32
        %v3106 = vpop.permute.xlu0 %3105
        %3107 = vrot.lane.b32.xlu0 %v2846, 32
        %v3108 = vpop.permute.xlu0 %3107
        %3109 = vrot.lane.b32.xlu0 %v2847, 32
        %v3110 = vpop.permute.xlu0 %3109
        %3111 = vrot.lane.b32.xlu0 %v3080, 32
        %v3112 = vpop.permute.xlu0 %3111
        %v3113 = vunpack.c.l.b16 %v1521
        %v3114 = vpack.c.b16 %v3113, %v3005
        %3115 = vrot.lane.b32.xlu0 %v1617, 36
        %v3116 = vpop.permute.xlu0 %3115
        %3117 = vrot.lane.b32.xlu0 %v1618, 36
        %v3118 = vpop.permute.xlu0 %3117
        %3119 = vrot.lane.b32.xlu0 %v1619, 36
        %v3120 = vpop.permute.xlu0 %3119
        %3121 = vrot.lane.b32.xlu0 %v1938, 36
        %v3122 = vpop.permute.xlu0 %3121
        %3123 = vrot.lane.b32.xlu0 %v1621, 36
        %v3124 = vpop.permute.xlu0 %3123
        %3125 = vrot.lane.b32.xlu0 %v1622, 36
        %v3126 = vpop.permute.xlu0 %3125
        %3127 = vrot.lane.b32.xlu0 %v1623, 36
        %v3128 = vpop.permute.xlu0 %3127
        %3129 = vrot.lane.b32.xlu0 %v1939, 36
        %v3130 = vpop.permute.xlu0 %3129
        %3131 = vrot.lane.b32.xlu0 %v2065, 36
        %v3132 = vpop.permute.xlu0 %3131
        %3133 = vrot.lane.b32.xlu0 %v2066, 36
        %v3134 = vpop.permute.xlu0 %3133
        %3135 = vrot.lane.b32.xlu0 %v2067, 36
        %v3136 = vpop.permute.xlu0 %3135
        %3137 = vrot.lane.b32.xlu0 %v2801, 36
        %v3138 = vpop.permute.xlu0 %3137
        %3139 = vrot.lane.b32.xlu0 %v2889, 36
        %v3140 = vpop.permute.xlu0 %3139
        %3141 = vrot.lane.b32.xlu0 %v2890, 36
        %v3142 = vpop.permute.xlu0 %3141
        %3143 = vrot.lane.b32.xlu0 %v2891, 36
        %v3144 = vpop.permute.xlu0 %3143
        %3145 = vrot.lane.b32.xlu0 %v3114, 36
        %v3146 = vpop.permute.xlu0 %3145
        %v3147 = vunpack.c.l.b16 %v1527
        %v3148 = vpack.c.b16 %v3147, %v3042
        %3149 = vrot.lane.b32.xlu0 %v1697, 40
        %v3150 = vpop.permute.xlu0 %3149
        %3151 = vrot.lane.b32.xlu0 %v1698, 40
        %v3152 = vpop.permute.xlu0 %3151
        %3153 = vrot.lane.b32.xlu0 %v1699, 40
        %v3154 = vpop.permute.xlu0 %3153
        %3155 = vrot.lane.b32.xlu0 %v1978, 40
        %v3156 = vpop.permute.xlu0 %3155
        %3157 = vrot.lane.b32.xlu0 %v1701, 40
        %v3158 = vpop.permute.xlu0 %3157
        %3159 = vrot.lane.b32.xlu0 %v1702, 40
        %v3160 = vpop.permute.xlu0 %3159
        %3161 = vrot.lane.b32.xlu0 %v1703, 40
        %v3162 = vpop.permute.xlu0 %3161
        %3163 = vrot.lane.b32.xlu0 %v1979, 40
        %v3164 = vpop.permute.xlu0 %3163
        %3165 = vrot.lane.b32.xlu0 %v2109, 40
        %v3166 = vpop.permute.xlu0 %3165
        %3167 = vrot.lane.b32.xlu0 %v2110, 40
        %v3168 = vpop.permute.xlu0 %3167
        %3169 = vrot.lane.b32.xlu0 %v2111, 40
        %v3170 = vpop.permute.xlu0 %3169
        %3171 = vrot.lane.b32.xlu0 %v2803, 40
        %v3172 = vpop.permute.xlu0 %3171
        %3173 = vrot.lane.b32.xlu0 %v2933, 40
        %v3174 = vpop.permute.xlu0 %3173
        %3175 = vrot.lane.b32.xlu0 %v2934, 40
        %v3176 = vpop.permute.xlu0 %3175
        %3177 = vrot.lane.b32.xlu0 %v2935, 40
        %v3178 = vpop.permute.xlu0 %3177
        %3179 = vrot.lane.b32.xlu0 %v3148, 40
        %v3180 = vpop.permute.xlu0 %3179
        %v3183 = vsel %vm2289, %v1613, %v2805
        %v3186 = vsel %vm2289, %v1614, %v2807
        %v3189 = vsel %vm2289, %v1615, %v2809
        %v3192 = vsel %vm2289, %v1937, %v2811
        %v3195 = vsel %vm2289, %v1617, %v2813
        %v3198 = vsel %vm2289, %v1618, %v2815
        %v3201 = vsel %vm2289, %v1619, %v2817
        %v3204 = vsel %vm2289, %v1938, %v2819
        %v3207 = vsel %vm2289, %v1621, %v2821
        %v3210 = vsel %vm2289, %v1622, %v2823
        %v3213 = vsel %vm2289, %v1623, %v2825
        %v3216 = vsel %vm2289, %v1939, %v2827
        %v3219 = vsel %vm2289, %v2065, %v2829
        %v3222 = vsel %vm2289, %v2066, %v2831
        %v3225 = vsel %vm2289, %v2067, %v2833
        %v3228 = vsel %vm2289, %v2801, %v2835
        %v3230 = vsel %vm2338, %v3183, %v2849
        %v3232 = vsel %vm2338, %v3186, %v2851
        %v3234 = vsel %vm2338, %v3189, %v2853
        %v3236 = vsel %vm2338, %v3192, %v2855
        %v3238 = vsel %vm2338, %v3195, %v2857
        %v3240 = vsel %vm2338, %v3198, %v2859
        %v3242 = vsel %vm2338, %v3201, %v2861
        %v3244 = vsel %vm2338, %v3204, %v2863
        %v3246 = vsel %vm2338, %v3207, %v2865
        %v3248 = vsel %vm2338, %v3210, %v2867
        %v3250 = vsel %vm2338, %v3213, %v2869
        %v3252 = vsel %vm2338, %v3216, %v2871
        %v3254 = vsel %vm2338, %v3219, %v2873
        %v3256 = vsel %vm2338, %v3222, %v2875
        %v3258 = vsel %vm2338, %v3225, %v2877
        %v3260 = vsel %vm2338, %v3228, %v2879
        %v3262 = vsel %vm2371, %v3230, %v2893
        %v3264 = vsel %vm2371, %v3232, %v2895
        %v3266 = vsel %vm2371, %v3234, %v2897
        %v3268 = vsel %vm2371, %v3236, %v2899
        %v3270 = vsel %vm2371, %v3238, %v2901
        %v3272 = vsel %vm2371, %v3240, %v2903
        %v3274 = vsel %vm2371, %v3242, %v2905
        %v3276 = vsel %vm2371, %v3244, %v2907
        %v3278 = vsel %vm2371, %v3246, %v2909
        %v3280 = vsel %vm2371, %v3248, %v2911
        %v3282 = vsel %vm2371, %v3250, %v2913
        %v3284 = vsel %vm2371, %v3252, %v2915
        %v3286 = vsel %vm2371, %v3254, %v2917
        %v3288 = vsel %vm2371, %v3256, %v2919
        %v3290 = vsel %vm2371, %v3258, %v2921
        %v3292 = vsel %vm2371, %v3260, %v2923
        %v3294 = vsel %vm2404, %v3262, %v2937
        %v3296 = vsel %vm2404, %v3264, %v2939
        %v3298 = vsel %vm2404, %v3266, %v2941
        %v3300 = vsel %vm2404, %v3268, %v2943
        %v3302 = vsel %vm2404, %v3270, %v2945
        %v3304 = vsel %vm2404, %v3272, %v2947
        %v3306 = vsel %vm2404, %v3274, %v2949
        %v3308 = vsel %vm2404, %v3276, %v2951
        %v3310 = vsel %vm2404, %v3278, %v2953
        %v3312 = vsel %vm2404, %v3280, %v2955
        %v3314 = vsel %vm2404, %v3282, %v2957
        %v3316 = vsel %vm2404, %v3284, %v2959
        %v3318 = vsel %vm2404, %v3286, %v2961
        %v3320 = vsel %vm2404, %v3288, %v2963
        %v3322 = vsel %vm2404, %v3290, %v2965
        %v3324 = vsel %vm2404, %v3292, %v2967
        %v3326 = vsel %vm2437, %v3294, %v2974
        %v3328 = vsel %vm2437, %v3296, %v2976
        %v3330 = vsel %vm2437, %v3298, %v2978
        %v3332 = vsel %vm2437, %v3300, %v2980
        %v3334 = vsel %vm2437, %v3302, %v2982
        %v3336 = vsel %vm2437, %v3304, %v2984
        %v3338 = vsel %vm2437, %v3306, %v2986
        %v3340 = vsel %vm2437, %v3308, %v2988
        %v3342 = vsel %vm2437, %v3310, %v2990
        %v3344 = vsel %vm2437, %v3312, %v2992
        %v3346 = vsel %vm2437, %v3314, %v2994
        %v3348 = vsel %vm2437, %v3316, %v2996
        %v3350 = vsel %vm2437, %v3318, %v2998
        %v3352 = vsel %vm2437, %v3320, %v3000
        %v3354 = vsel %vm2437, %v3322, %v3002
        %v3356 = vsel %vm2437, %v3324, %v3004
        %v3358 = vsel %vm2470, %v3326, %v3011
        %v3360 = vsel %vm2470, %v3328, %v3013
        %v3362 = vsel %vm2470, %v3330, %v3015
        %v3364 = vsel %vm2470, %v3332, %v3017
        %v3366 = vsel %vm2470, %v3334, %v3019
        %v3368 = vsel %vm2470, %v3336, %v3021
        %v3370 = vsel %vm2470, %v3338, %v3023
        %v3372 = vsel %vm2470, %v3340, %v3025
        %v3374 = vsel %vm2470, %v3342, %v3027
        %v3376 = vsel %vm2470, %v3344, %v3029
        %v3378 = vsel %vm2470, %v3346, %v3031
        %v3380 = vsel %vm2470, %v3348, %v3033
        %v3382 = vsel %vm2470, %v3350, %v3035
        %v3384 = vsel %vm2470, %v3352, %v3037
        %v3386 = vsel %vm2470, %v3354, %v3039
        %v3388 = vsel %vm2470, %v3356, %v3041
        %v3390 = vsel %vm2503, %v3358, %v3048
        %v3392 = vsel %vm2503, %v3360, %v3050
        %v3394 = vsel %vm2503, %v3362, %v3052
        %v3396 = vsel %vm2503, %v3364, %v3054
        %v3398 = vsel %vm2503, %v3366, %v3056
        %v3400 = vsel %vm2503, %v3368, %v3058
        %v3402 = vsel %vm2503, %v3370, %v3060
        %v3404 = vsel %vm2503, %v3372, %v3062
        %v3406 = vsel %vm2503, %v3374, %v3064
        %v3408 = vsel %vm2503, %v3376, %v3066
        %v3410 = vsel %vm2503, %v3378, %v3068
        %v3412 = vsel %vm2503, %v3380, %v3070
        %v3414 = vsel %vm2503, %v3382, %v3072
        %v3416 = vsel %vm2503, %v3384, %v3074
        %v3418 = vsel %vm2503, %v3386, %v3076
        %v3420 = vsel %vm2503, %v3388, %v3078
        %v3422 = vsel %vm2536, %v3390, %v3082
        %v3424 = vsel %vm2536, %v3392, %v3084
        %v3426 = vsel %vm2536, %v3394, %v3086
        %v3428 = vsel %vm2536, %v3396, %v3088
        %v3430 = vsel %vm2536, %v3398, %v3090
        %v3432 = vsel %vm2536, %v3400, %v3092
        %v3434 = vsel %vm2536, %v3402, %v3094
        %v3436 = vsel %vm2536, %v3404, %v3096
        %v3438 = vsel %vm2536, %v3406, %v3098
        %v3440 = vsel %vm2536, %v3408, %v3100
        %v3442 = vsel %vm2536, %v3410, %v3102
        %v3444 = vsel %vm2536, %v3412, %v3104
        %v3446 = vsel %vm2536, %v3414, %v3106
        %v3448 = vsel %vm2536, %v3416, %v3108
        %v3450 = vsel %vm2536, %v3418, %v3110
        %v3452 = vsel %vm2536, %v3420, %v3112
        %v3454 = vsel %vm2569, %v3422, %v3116
        %v3456 = vsel %vm2569, %v3424, %v3118
        %v3458 = vsel %vm2569, %v3426, %v3120
        %v3460 = vsel %vm2569, %v3428, %v3122
        %v3462 = vsel %vm2569, %v3430, %v3124
        %v3464 = vsel %vm2569, %v3432, %v3126
        %v3466 = vsel %vm2569, %v3434, %v3128
        %v3468 = vsel %vm2569, %v3436, %v3130
        %v3470 = vsel %vm2569, %v3438, %v3132
        %v3472 = vsel %vm2569, %v3440, %v3134
        %v3474 = vsel %vm2569, %v3442, %v3136
        %v3476 = vsel %vm2569, %v3444, %v3138
        %v3478 = vsel %vm2569, %v3446, %v3140
        %v3480 = vsel %vm2569, %v3448, %v3142
        %v3482 = vsel %vm2569, %v3450, %v3144
        %v3484 = vsel %vm2569, %v3452, %v3146
        %v3486 = vsel %vm2602, %v3454, %v3150
        %v3488 = vsel %vm2602, %v3456, %v3152
        %v3490 = vsel %vm2602, %v3458, %v3154
        %v3492 = vsel %vm2602, %v3460, %v3156
        %v3494 = vsel %vm2602, %v3462, %v3158
        %v3496 = vsel %vm2602, %v3464, %v3160
        %v3498 = vsel %vm2602, %v3466, %v3162
        %v3500 = vsel %vm2602, %v3468, %v3164
        %v3502 = vsel %vm2602, %v3470, %v3166
        %v3504 = vsel %vm2602, %v3472, %v3168
        %v3506 = vsel %vm2602, %v3474, %v3170
        %v3508 = vsel %vm2602, %v3476, %v3172
        %v3510 = vsel %vm2602, %v3478, %v3174
        %v3512 = vsel %vm2602, %v3480, %v3176
        %v3514 = vsel %vm2602, %v3482, %v3178
        %v3516 = vsel %vm2602, %v3484, %v3180
        %3533 = vrot.lane.b32.xlu0 %v3486, 64
        %v3534 = vpop.permute.xlu0 %3533
        %3535 = vrot.lane.b32.xlu0 %v3488, 64
        %v3536 = vpop.permute.xlu0 %3535
        %3537 = vrot.lane.b32.xlu0 %v3490, 64
        %v3538 = vpop.permute.xlu0 %3537
        %3539 = vrot.lane.b32.xlu0 %v3492, 64
        %v3540 = vpop.permute.xlu0 %3539
        %3541 = vrot.lane.b32.xlu0 %v3494, 64
        %v3542 = vpop.permute.xlu0 %3541
        %3543 = vrot.lane.b32.xlu0 %v3496, 64
        %v3544 = vpop.permute.xlu0 %3543
        %3545 = vrot.lane.b32.xlu0 %v3498, 64
        %v3546 = vpop.permute.xlu0 %3545
        %3547 = vrot.lane.b32.xlu0 %v3500, 64
        %v3548 = vpop.permute.xlu0 %3547
        %3549 = vrot.lane.b32.xlu0 %v3502, 64
        %v3550 = vpop.permute.xlu0 %3549
        %3551 = vrot.lane.b32.xlu0 %v3504, 64
        %v3552 = vpop.permute.xlu0 %3551
        %3553 = vrot.lane.b32.xlu0 %v3506, 64
        %v3554 = vpop.permute.xlu0 %3553
        %3555 = vrot.lane.b32.xlu0 %v3508, 64
        %v3556 = vpop.permute.xlu0 %3555
        %3557 = vrot.lane.b32.xlu0 %v3510, 64
        %v3558 = vpop.permute.xlu0 %3557
        %3559 = vrot.lane.b32.xlu0 %v3512, 64
        %v3560 = vpop.permute.xlu0 %3559
        %3561 = vrot.lane.b32.xlu0 %v3514, 64
        %v3562 = vpop.permute.xlu0 %3561
        %3563 = vrot.lane.b32.xlu0 %v3516, 64
        %v3564 = vpop.permute.xlu0 %3563
        %vm3565 = vcmask 523264
        %v3567 = vsel %vm3565, %v2769, %v3534
        %v3569 = vsel %vm3565, %v2771, %v3536
        %v3571 = vsel %vm3565, %v2773, %v3538
        %v3573 = vsel %vm3565, %v2775, %v3540
        %v3575 = vsel %vm3565, %v2777, %v3542
        %v3577 = vsel %vm3565, %v2779, %v3544
        %v3579 = vsel %vm3565, %v2781, %v3546
        %v3581 = vsel %vm3565, %v2783, %v3548
        %v3583 = vsel %vm3565, %v2785, %v3550
        %v3585 = vsel %vm3565, %v2787, %v3552
        %v3587 = vsel %vm3565, %v2789, %v3554
        %v3589 = vsel %vm3565, %v2791, %v3556
        %v3591 = vsel %vm3565, %v2793, %v3558
        %v3593 = vsel %vm3565, %v2795, %v3560
        %v3595 = vsel %vm3565, %v2797, %v3562
        %v3597 = vsel %vm3565, %v2799, %v3564
        %v3598 = vld [vmem:[%s1] sm:$0xf]
        %v3599 = vld [vmem:[%s1 + $0x4] sm:$0xf]
        %v3600 = vld [vmem:[%s1 + $0x8] sm:$0xf]
        %v3601 = vld [vmem:[%s1 + $0xc] sm:$0xf]
        %v3602 = vld [vmem:[%s1 + $0x10] sm:$0xf]
        %v3603 = vld [vmem:[%s1 + $0x14] sm:$0xf]
        %v3604 = vld [vmem:[%s1 + $0x18] sm:$0xf]
        %v3605 = vld [vmem:[%s1 + $0x1c] sm:$0xf]
        %v3606 = vld [vmem:[%s1 + $0x20] sm:$0xf]
        %v3607 = vld [vmem:[%s1 + $0x24] sm:$0xf]
        %v3608 = vld [vmem:[%s1 + $0x28] sm:$0xf]
        %v3609 = vld [vmem:[%s1 + $0x2c] sm:$0xf]
        %v3610 = vld [vmem:[%s1 + $0x30] sm:$0xf]
        %v3611 = vld [vmem:[%s1 + $0x34] sm:$0x3]
        %v3626 = vunpack.c.l.b16 %v3598
        %v3627 = vunpack.c.l.b16 %v3599
        %v3628 = vunpack.c.l.b16 %v3600
        %v3629 = vunpack.c.l.b16 %v3601
        %v3630 = vunpack.c.l.b16 %v3602
        %v3631 = vunpack.c.l.b16 %v3603
        %v3632 = vunpack.c.l.b16 %v3604
        %v3633 = vunpack.c.l.b16 %v3605
        %v3634 = vunpack.c.l.b16 %v3606
        %v3635 = vunpack.c.l.b16 %v3607
        %v3636 = vunpack.c.l.b16 %v3608
        %v3637 = vunpack.c.l.b16 %v3609
        %v3638 = vunpack.c.l.b16 %v3610
        %v3639 = vunpack.c.l.b16 %v3611
        %v3640 = vpack.c.b16 %v3627, %v3626
        %v3641 = vpack.c.b16 %v3629, %v3628
        %v3642 = vpack.c.b16 %v3631, %v3630
        %v3643 = vpack.c.b16 %v3633, %v3632
        %v3644 = vpack.c.b16 %v3635, %v3634
        %v3645 = vpack.c.b16 %v3637, %v3636
        %v3646 = vpack.c.b16 %v3639, %v3638
        %vm3653 = vcmask 883712
        %v3654 = vsel %vm3653, %v3567, 0
        %v3656 = vsel %vm3653, %v3569, 0
        %v3658 = vsel %vm3653, %v3571, 0
        %v3660 = vsel %vm3653, %v3573, 0
        %v3662 = vsel %vm3653, %v3575, 0
        %v3664 = vsel %vm3653, %v3577, 0
        %v3666 = vsel %vm3653, %v3579, 0
        %v3668 = vsel %vm3653, %v3581, 0
        %v3670 = vsel %vm3653, %v3583, 0
        %v3672 = vsel %vm3653, %v3585, 0
        %v3674 = vsel %vm3653, %v3587, 0
        %v3676 = vsel %vm3653, %v3589, 0
        %v3678 = vsel %vm3653, %v3591, 0
        %v3680 = vsel %vm3653, %v3593, 0
        %v3682 = vsel %vm3653, %v3595, 0
        %v3684 = vsel %vm3653, %v3597, 0
        %vm3686 = vcmask 1045504
        %v3688 = vsel %vm3686, %v3646, 0
        %3690 = vmatpush.bf16.msra.mxu0 0
        %3691 = vmatpush.bf16.msra.mxu0 %v3688
        %3692 = vmatpush.bf16.msra.mxu0 %v3645
        %3693 = vmatpush.bf16.msra.mxu0 %v3644
        %3694 = vmatpush.bf16.msra.mxu0 %v3643
        %3695 = vmatpush.bf16.msra.mxu0 %v3642
        %3696 = vmatpush.bf16.msra.mxu0 %v3641
        %3697 = vmatpush.bf16.msra.mxu0 %v3640
        %3698 = vmatmul.bf16.gmra.mxu0 %v3654
        %v3699 = vpop.f32.mrf.mxu0
        %v3700 = vadd.f32 0.0, %v3699
        %v3701 = vpop.f32.mrf.mxu0
        %v3702 = vadd.f32 0.0, %v3701
        %3703 = vmatmul.bf16.gmra.mxu0 %v3656
        %v3704 = vpop.f32.mrf.mxu0
        %v3705 = vadd.f32 0.0, %v3704
        %v3706 = vpop.f32.mrf.mxu0
        %v3707 = vadd.f32 0.0, %v3706
        %3708 = vmatmul.bf16.gmra.mxu0 %v3658
        %v3709 = vpop.f32.mrf.mxu0
        %v3710 = vadd.f32 0.0, %v3709
        %v3711 = vpop.f32.mrf.mxu0
        %v3712 = vadd.f32 0.0, %v3711
        %3713 = vmatmul.bf16.gmra.mxu0 %v3660
        %v3714 = vpop.f32.mrf.mxu0
        %v3715 = vadd.f32 0.0, %v3714
        %v3716 = vpop.f32.mrf.mxu0
        %v3717 = vadd.f32 0.0, %v3716
        %3718 = vmatmul.bf16.gmra.mxu0 %v3662
        %v3719 = vpop.f32.mrf.mxu0
        %v3720 = vadd.f32 0.0, %v3719
        %v3721 = vpop.f32.mrf.mxu0
        %v3722 = vadd.f32 0.0, %v3721
        %3723 = vmatmul.bf16.gmra.mxu0 %v3664
        %v3724 = vpop.f32.mrf.mxu0
        %v3725 = vadd.f32 0.0, %v3724
        %v3726 = vpop.f32.mrf.mxu0
        %v3727 = vadd.f32 0.0, %v3726
        %3728 = vmatmul.bf16.gmra.mxu0 %v3666
        %v3729 = vpop.f32.mrf.mxu0
        %v3730 = vadd.f32 0.0, %v3729
        %v3731 = vpop.f32.mrf.mxu0
        %v3732 = vadd.f32 0.0, %v3731
        %3733 = vmatmul.bf16.gmra.mxu0 %v3668
        %v3734 = vpop.f32.mrf.mxu0
        %v3735 = vadd.f32 0.0, %v3734
        %v3736 = vpop.f32.mrf.mxu0
        %v3737 = vadd.f32 0.0, %v3736
        %3738 = vmatmul.bf16.gmra.mxu0 %v3670
        %v3739 = vpop.f32.mrf.mxu0
        %v3740 = vadd.f32 0.0, %v3739
        %v3741 = vpop.f32.mrf.mxu0
        %v3742 = vadd.f32 0.0, %v3741
        %3743 = vmatmul.bf16.gmra.mxu0 %v3672
        %v3744 = vpop.f32.mrf.mxu0
        %v3745 = vadd.f32 0.0, %v3744
        %v3746 = vpop.f32.mrf.mxu0
        %v3747 = vadd.f32 0.0, %v3746
        %3748 = vmatmul.bf16.gmra.mxu0 %v3674
        %v3749 = vpop.f32.mrf.mxu0
        %v3750 = vadd.f32 0.0, %v3749
        %v3751 = vpop.f32.mrf.mxu0
        %v3752 = vadd.f32 0.0, %v3751
        %3753 = vmatmul.bf16.gmra.mxu0 %v3676
        %v3754 = vpop.f32.mrf.mxu0
        %v3755 = vadd.f32 0.0, %v3754
        %v3756 = vpop.f32.mrf.mxu0
        %v3757 = vadd.f32 0.0, %v3756
        %3758 = vmatmul.bf16.gmra.mxu0 %v3678
        %v3759 = vpop.f32.mrf.mxu0
        %v3760 = vadd.f32 0.0, %v3759
        %v3761 = vpop.f32.mrf.mxu0
        %v3762 = vadd.f32 0.0, %v3761
        %3763 = vmatmul.bf16.gmra.mxu0 %v3680
        %v3764 = vpop.f32.mrf.mxu0
        %v3765 = vadd.f32 0.0, %v3764
        %v3766 = vpop.f32.mrf.mxu0
        %v3767 = vadd.f32 0.0, %v3766
        %3768 = vmatmul.bf16.gmra.mxu0 %v3682
        %v3769 = vpop.f32.mrf.mxu0
        %v3770 = vadd.f32 0.0, %v3769
        %v3771 = vpop.f32.mrf.mxu0
        %v3772 = vadd.f32 0.0, %v3771
        %3773 = vmatmul.bf16.gmra.mxu0 %v3684
        %v3774 = vpop.f32.mrf.mxu0
        %v3775 = vadd.f32 0.0, %v3774
        %v3776 = vpop.f32.mrf.mxu0
        %v3777 = vadd.f32 0.0, %v3776
        %3778 = vdwg.mxu0
        %v3779 = vpack.c.bf16 %v3700, %v3700
        %v3780 = vpack.c.bf16 %v3702, %v3702
        %v3781 = vpack.c.bf16 %v3705, %v3705
        %v3782 = vpack.c.bf16 %v3707, %v3707
        %v3783 = vpack.c.bf16 %v3710, %v3710
        %v3784 = vpack.c.bf16 %v3712, %v3712
        %v3785 = vpack.c.bf16 %v3715, %v3715
        %v3786 = vpack.c.bf16 %v3717, %v3717
        %v3787 = vpack.c.bf16 %v3720, %v3720
        %v3788 = vpack.c.bf16 %v3722, %v3722
        %v3789 = vpack.c.bf16 %v3725, %v3725
        %v3790 = vpack.c.bf16 %v3727, %v3727
        %v3791 = vpack.c.bf16 %v3730, %v3730
        %v3792 = vpack.c.bf16 %v3732, %v3732
        %v3793 = vpack.c.bf16 %v3735, %v3735
        %v3794 = vpack.c.bf16 %v3737, %v3737
        %v3795 = vpack.c.bf16 %v3740, %v3740
        %v3796 = vpack.c.bf16 %v3742, %v3742
        %v3797 = vpack.c.bf16 %v3745, %v3745
        %v3798 = vpack.c.bf16 %v3747, %v3747
        %v3799 = vpack.c.bf16 %v3750, %v3750
        %v3800 = vpack.c.bf16 %v3752, %v3752
        %v3801 = vpack.c.bf16 %v3755, %v3755
        %v3802 = vpack.c.bf16 %v3757, %v3757
        %v3803 = vpack.c.bf16 %v3760, %v3760
        %v3804 = vpack.c.bf16 %v3762, %v3762
        %v3805 = vpack.c.bf16 %v3765, %v3765
        %v3806 = vpack.c.bf16 %v3767, %v3767
        %v3807 = vpack.c.bf16 %v3770, %v3770
        %v3808 = vpack.c.bf16 %v3772, %v3772
        %v3809 = vpack.c.bf16 %v3775, %v3775
        %v3810 = vpack.c.bf16 %v3777, %v3777
        %3811 = vst [vmem:[%s183] sm:$0xf] %v3779
        %3812 = vst [vmem:[%s183 + $0x4] sm:$0xf] %v3780
        %3813 = vst [vmem:[%s183 + $0x8] sm:$0xf] %v3781
        %3814 = vst [vmem:[%s183 + $0xc] sm:$0xf] %v3782
        %3815 = vst [vmem:[%s183 + $0x10] sm:$0xf] %v3783
        %3816 = vst [vmem:[%s183 + $0x14] sm:$0xf] %v3784
        %3817 = vst [vmem:[%s183 + $0x18] sm:$0xf] %v3785
        %3818 = vst [vmem:[%s183 + $0x1c] sm:$0xf] %v3786
        %3819 = vst [vmem:[%s183 + $0x20] sm:$0xf] %v3787
        %3820 = vst [vmem:[%s183 + $0x24] sm:$0xf] %v3788
        %3821 = vst [vmem:[%s183 + $0x28] sm:$0xf] %v3789
        %3822 = vst [vmem:[%s183 + $0x2c] sm:$0xf] %v3790
        %3823 = vst [vmem:[%s183 + $0x30] sm:$0xf] %v3791
        %3824 = vst [vmem:[%s183 + $0x34] sm:$0xf] %v3792
        %3825 = vst [vmem:[%s183 + $0x38] sm:$0xf] %v3793
        %3826 = vst [vmem:[%s183 + $0x3c] sm:$0xf] %v3794
        %3827 = vst [vmem:[%s183 + $0x40] sm:$0xf] %v3795
        %3828 = vst [vmem:[%s183 + $0x44] sm:$0xf] %v3796
        %3829 = vst [vmem:[%s183 + $0x48] sm:$0xf] %v3797
        %3830 = vst [vmem:[%s183 + $0x4c] sm:$0xf] %v3798
        %3831 = vst [vmem:[%s183 + $0x50] sm:$0xf] %v3799
        %3832 = vst [vmem:[%s183 + $0x54] sm:$0xf] %v3800
        %3833 = vst [vmem:[%s183 + $0x58] sm:$0xf] %v3801
        %3834 = vst [vmem:[%s183 + $0x5c] sm:$0xf] %v3802
        %3835 = vst [vmem:[%s183 + $0x60] sm:$0xf] %v3803
        %3836 = vst [vmem:[%s183 + $0x64] sm:$0xf] %v3804
        %3837 = vst [vmem:[%s183 + $0x68] sm:$0xf] %v3805
        %3838 = vst [vmem:[%s183 + $0x6c] sm:$0xf] %v3806
        %3839 = vst [vmem:[%s183 + $0x70] sm:$0xf] %v3807
        %3840 = vst [vmem:[%s183 + $0x74] sm:$0xf] %v3808
        %3841 = vst [vmem:[%s183 + $0x78] sm:$0xf] %v3809
        %3842 = vst [vmem:[%s183 + $0x7c] sm:$0xf] %v3810
        %v3843 = vadd.f32 %v3700, %v3702
        %v3844 = vadd.f32 %v3843, %v3705
        %v3845 = vadd.f32 %v3844, %v3707
        %v3846 = vadd.f32 %v3845, %v3710
        %v3847 = vadd.f32 %v3846, %v3712
        %v3848 = vadd.f32 %v3847, %v3715
        %v3849 = vadd.f32 %v3848, %v3717
        %v3850 = vadd.f32 %v3849, %v3720
        %v3851 = vadd.f32 %v3850, %v3722
        %v3852 = vadd.f32 %v3851, %v3725
        %v3853 = vadd.f32 %v3852, %v3727
        %v3854 = vadd.f32 %v3853, %v3730
        %v3855 = vadd.f32 %v3854, %v3732
        %v3856 = vadd.f32 %v3855, %v3735
        %v3857 = vadd.f32 %v3856, %v3737
        %v3858 = vadd.f32 %v3857, %v3740
        %v3859 = vadd.f32 %v3858, %v3742
        %v3860 = vadd.f32 %v3859, %v3745
        %v3861 = vadd.f32 %v3860, %v3747
        %v3862 = vadd.f32 %v3861, %v3750
        %v3863 = vadd.f32 %v3862, %v3752
        %v3864 = vadd.f32 %v3863, %v3755
        %v3865 = vadd.f32 %v3864, %v3757
        %v3866 = vadd.f32 %v3865, %v3760
        %v3867 = vadd.f32 %v3866, %v3762
        %v3868 = vadd.f32 %v3867, %v3765
        %v3869 = vadd.f32 %v3868, %v3767
        %v3870 = vadd.f32 %v3869, %v3770
        %v3871 = vadd.f32 %v3870, %v3772
        %v3872 = vadd.f32 %v3871, %v3775
        %v3873 = vadd.f32 %v3872, %v3777
        %v3874 = vrot.slane %v3873, 4
        %v3875 = vadd.f32 %v3873, %v3874
        %v3876 = vrot.slane %v3875, 2
        %v3877 = vadd.f32 %v3875, %v3876
        %v3878 = vrot.slane %v3877, 1
        %v3879 = vadd.f32 %v3877, %v3878
        %v3880 = vmul.f32 %v3700, %v3700
        %v3881 = vmul.f32 %v3702, %v3702
        %v3882 = vmul.f32 %v3705, %v3705
        %v3883 = vmul.f32 %v3707, %v3707
        %v3884 = vmul.f32 %v3710, %v3710
        %v3885 = vmul.f32 %v3712, %v3712
        %v3886 = vmul.f32 %v3715, %v3715
        %v3887 = vmul.f32 %v3717, %v3717
        %v3888 = vmul.f32 %v3720, %v3720
        %v3889 = vmul.f32 %v3722, %v3722
        %v3890 = vmul.f32 %v3725, %v3725
        %v3891 = vmul.f32 %v3727, %v3727
        %v3892 = vmul.f32 %v3730, %v3730
        %v3893 = vmul.f32 %v3732, %v3732
        %v3894 = vmul.f32 %v3735, %v3735
        %v3895 = vmul.f32 %v3737, %v3737
        %v3896 = vmul.f32 %v3740, %v3740
        %v3897 = vmul.f32 %v3742, %v3742
        %v3898 = vmul.f32 %v3745, %v3745
        %v3899 = vmul.f32 %v3747, %v3747
        %v3900 = vmul.f32 %v3750, %v3750
        %v3901 = vmul.f32 %v3752, %v3752
        %v3902 = vmul.f32 %v3755, %v3755
        %v3903 = vmul.f32 %v3757, %v3757
        %v3904 = vmul.f32 %v3760, %v3760
        %v3905 = vmul.f32 %v3762, %v3762
        %v3906 = vmul.f32 %v3765, %v3765
        %v3907 = vmul.f32 %v3767, %v3767
        %v3908 = vmul.f32 %v3770, %v3770
        %v3909 = vmul.f32 %v3772, %v3772
        %v3910 = vmul.f32 %v3775, %v3775
        %v3911 = vmul.f32 %v3777, %v3777
        %v3912 = vadd.f32 %v3880, %v3881
        %v3913 = vadd.f32 %v3912, %v3882
        %v3914 = vadd.f32 %v3913, %v3883
        %v3915 = vadd.f32 %v3914, %v3884
        %v3916 = vadd.f32 %v3915, %v3885
        %v3917 = vadd.f32 %v3916, %v3886
        %v3918 = vadd.f32 %v3917, %v3887
        %v3919 = vadd.f32 %v3918, %v3888
        %v3920 = vadd.f32 %v3919, %v3889
        %v3921 = vadd.f32 %v3920, %v3890
        %v3922 = vadd.f32 %v3921, %v3891
        %v3923 = vadd.f32 %v3922, %v3892
        %v3924 = vadd.f32 %v3923, %v3893
        %v3925 = vadd.f32 %v3924, %v3894
        %v3926 = vadd.f32 %v3925, %v3895
        %v3927 = vadd.f32 %v3926, %v3896
        %v3928 = vadd.f32 %v3927, %v3897
        %v3929 = vadd.f32 %v3928, %v3898
        %v3930 = vadd.f32 %v3929, %v3899
        %v3931 = vadd.f32 %v3930, %v3900
        %v3932 = vadd.f32 %v3931, %v3901
        %v3933 = vadd.f32 %v3932, %v3902
        %v3934 = vadd.f32 %v3933, %v3903
        %v3935 = vadd.f32 %v3934, %v3904
        %v3936 = vadd.f32 %v3935, %v3905
        %v3937 = vadd.f32 %v3936, %v3906
        %v3938 = vadd.f32 %v3937, %v3907
        %v3939 = vadd.f32 %v3938, %v3908
        %v3940 = vadd.f32 %v3939, %v3909
        %v3941 = vadd.f32 %v3940, %v3910
        %v3942 = vadd.f32 %v3941, %v3911
        %v3943 = vrot.slane %v3942, 4
        %v3944 = vadd.f32 %v3942, %v3943
        %v3945 = vrot.slane %v3944, 2
        %v3946 = vadd.f32 %v3944, %v3945
        %v3947 = vrot.slane %v3946, 1
        %v3948 = vadd.f32 %v3946, %v3947
        %vm3949 = vcmask 1040384
        %v3950 = vsel %vm3949, %v3879, %v3948
        %3951 = vst [vmem:[%s190] sm:$0x3] %v3950
        %s3952 = sand.u32 %s90, 1
        %s3953 = scalar_lea.sflag [#allocation3], %s3952
        %s3954 = sand.u32 %s90, 1
        %s3955 = smul.addr %s3954, 128
        %s3956 = scalar_lea.vmem [#allocation2], %s3955
        %s3957 = sand.u32 %s118, 1
        %s3958 = scalar_lea.sflag [#allocation5], %s3957
        %s3959 = sand.u32 %s118, 1
        %s3960 = smul.addr %s3959, 2
        %s3961 = scalar_lea.vmem [#allocation4], %s3960
        // Predicated region
        $region29: #{tpu_custom_call.1} parent=27 // pred_check
          %p3962 = pneg %p100
        $region30: #{tpu_custom_call.1} parent=27 // pred_check_branch
          %3964 = sbr.rel (%p3962) target = $region32
        $region31: #{tpu_custom_call.1} parent=27 // pred_region
          %s3965 = smul.u32 4, %s26
          %3967 = vsyncadd %s3953, 0
          %s3968 = smul.addr %s3965, 8
          %s3969 = smul.addr %s25, 32
          %s3970 = sadd.s32 %s3968, %s3969
          %s3971 = smul.addr %s3970, 4
          %s3972 = scalar_lea.hbm %s2, %s3971
          %s3973 = sshll.u32 %s3956, 4
          %s3974 = int_to_ptr.vmem [resolvable:$true] %s3973
          %s3975 = sshll.u32 %s3972, 4
          %s3976 = int_to_ptr.hbm [resolvable:$true] %s3975
          %3981 = dma.vmem_to_hbm [thread:$0]  %s3974, 2048, %s3976, %s3953, 64, 64, 4
        $region32: #{tpu_custom_call.1} parent=27 // pred_fallthru
          _
        // Predicated region
        $region33: #{tpu_custom_call.1} parent=27 // pred_check
          %p3982 = pneg %p128
        $region34: #{tpu_custom_call.1} parent=27 // pred_check_branch
          %3984 = sbr.rel (%p3982) target = $region36
        $region35: #{tpu_custom_call.1} parent=27 // pred_region
          %3986 = vsyncadd %s3958, 0
          %s3987 = sadd.s32 %s26, %s25
          %s3988 = smul.addr %s3987, 2
          %s3989 = scalar_lea.hbm %s3, %s3988
          %s3991 = sshll.u32 %s3961, 4
          %s3992 = int_to_ptr.vmem [resolvable:$true] %s3991
          %s3993 = sshll.u32 %s3989, 4
          %s3994 = int_to_ptr.hbm [resolvable:$true] %s3993
          %3996 = dma.vmem_to_hbm [thread:$0]  %s3992, 32, %s3994, %s3958
        $region36: #{tpu_custom_call.1} parent=27 // pred_fallthru
          _
      $region28: #{tpu_custom_call.1} parent=5 // pred_fallthru
        _
      %p3997 = scmp.le.s32.totalorder 2, %s16
      // Predicated region
      $region37: #{tpu_custom_call.1} parent=5 // pred_check
        %p3998 = pneg %p3997
      $region38: #{tpu_custom_call.1} parent=5 // pred_check_branch
        %4000 = sbr.rel (%p3998) target = $region40
      $region39: #{tpu_custom_call.1} parent=5 // pred_region
        %s4001 = ssub.s32 %s16, 2
        // Predicated region
        $region41: #{tpu_custom_call.1} parent=39 // pred_check
          %p4002 = pneg %p106
        $region42: #{tpu_custom_call.1} parent=39 // pred_check_branch
          %4004 = sbr.rel (%p4002) target = $region44
        $region43: #{tpu_custom_call.1} parent=39 // pred_region
          %s4005 = sand.u32 %s91, 1
          %s4006 = scalar_lea.sflag [#allocation3], %s4005
          %s4007 = sand.u32 %s91, 1
          %s4008 = smul.addr %s4007, 128
          %s4009 = scalar_lea.vmem [#allocation2], %s4008
          %4011 = dma.done %s4006, 2048
        $region44: #{tpu_custom_call.1} parent=39 // pred_fallthru
          _
        // Predicated region
        $region45: #{tpu_custom_call.1} parent=39 // pred_check
          %p4012 = pneg %p134
        $region46: #{tpu_custom_call.1} parent=39 // pred_check_branch
          %4014 = sbr.rel (%p4012) target = $region48
        $region47: #{tpu_custom_call.1} parent=39 // pred_region
          %s4015 = sand.u32 %s119, 1
          %s4016 = scalar_lea.sflag [#allocation5], %s4015
          %s4017 = sand.u32 %s119, 1
          %s4018 = smul.addr %s4017, 2
          %s4019 = scalar_lea.vmem [#allocation4], %s4018
          %4021 = dma.done %s4016, 32
        $region48: #{tpu_custom_call.1} parent=39 // pred_fallthru
          _
      $region40: #{tpu_custom_call.1} parent=5 // pred_fallthru
        _
    $region6: #{tpu_custom_call.1} parent=1 // loop_footer
      %s20 = sadd.s32 1, %s16
    $region7: #{tpu_custom_call.1} parent=1 // loop_footer_branch
      %15 = sbr.rel target = $region3
    $region8: #{tpu_custom_call.1} parent=1 // loop_exit
      _
    %4022 = vsyncpa [#allocation3], 1
    %s4023 = scalar_lea.sflag [#allocation3], 1
    %4024 = vsyncpa %s4023, 1
    %4025 = vsyncpa [#allocation5], 1
    %s4026 = scalar_lea.sflag [#allocation5], 1
    %4027 = vsyncpa %s4026, 1

</llo_original>
